<compile_context>
chip_gen: v7x
topology: tpu7x:2x2x1
jax: 0.10.0
libtpu: 0.0.40
codegen_flags: <defaults>
</compile_context>

<pallas_src>
import functools
import math

import numpy as np
import jax
import jax.numpy as jnp
from jax.experimental import pallas as pl
from jax.experimental.pallas import tpu as pltpu

_SENTINEL = -1.0e4     # below the lowest knot; GELU(sentinel) == 0, all bases == 0
_LANE = 128


def autopad(k, p=None, d=1):
    if d > 1:
        k = d * (k - 1) + 1
    if p is None:
        p = k // 2
    return p


def _round_up(v, m):
    return -(-v // m) * m


def _im2col(x, k, s, p, d, pad_value=0.0):
    """x: (N, C, H, W) -> (N, Ho*Wo, C*k*k); feature order (c, ki, kj)."""
    N, C, H, W = x.shape
    Ho = (H + 2 * p - d * (k - 1) - 1) // s + 1
    Wo = (W + 2 * p - d * (k - 1) - 1) // s + 1
    xp = jnp.pad(x, ((0, 0), (0, 0), (p, p), (p, p)), constant_values=pad_value)
    cols = []
    for i in range(k):
        for j in range(k):
            cols.append(xp[:, :,
                           i * d:i * d + (Ho - 1) * s + 1:s,
                           j * d:j * d + (Wo - 1) * s + 1:s])
    col = jnp.stack(cols, axis=2)                 # (N, C, k*k, Ho, Wo)
    col = col.reshape(N, C * k * k, Ho * Wo)
    return jnp.transpose(col, (0, 2, 1)), Ho, Wo  # (N, P, C*k*k)


# --------------------------- in-kernel math helpers ---------------------------

def _erf(x):
    # Abramowitz & Stegun 7.1.26 (max abs err 1.5e-7).  The rational-term
    # divide goes to the EUP via pl.reciprocal(approx=True); everything else is
    # mul/add/exp so it never relies on a lax.erf lowering inside Mosaic.
    a1, a2, a3, a4, a5 = 0.254829592, -0.284496736, 1.421413741, -1.453152027, 1.061405429
    sgn = jnp.where(x < 0.0, -1.0, 1.0)
    ax = jnp.abs(x)
    t = pl.reciprocal(1.0 + 0.3275911 * ax, approx=True)
    poly = ((((a5 * t + a4) * t + a3) * t + a2) * t + a1) * t
    return sgn * (1.0 - poly * jnp.exp(-ax * ax))


def _gelu_exact(x):
    return 0.5 * x * (1.0 + _erf(x * 0.7071067811865476))


# ------------------------------- Pallas kernels -------------------------------

def _conv_stats_kernel(x_ref, wb_ref, ws_ref, y_ref, stats_ref, *,
                       knots, spline_order, operand_dtype):
    """Pass 1: base + spline conv for one P tile over the FULL Coutp width;
    accumulate per-channel sum / sum-of-squares across P tiles (resident
    stats block, last grid axis 'arbitrary')."""
    t = pl.program_id(2)
    x = x_ref[...].astype(jnp.float32)                       # (PT, F)

    # base branch: exact GELU then one bf16 MXU matmul with f32 accumulation
    g = _gelu_exact(x)
    acc = jnp.dot(g.astype(operand_dtype), wb_ref[...],
                  preferred_element_type=jnp.float32)        # (PT, Coutp)

    # spline branch: Cox-de Boor recursion on the VPU.  Order-0 indicators are
    # differences of step functions (12 compares total); reciprocals of the
    # knot spans are Python constants (uniform grid => distinct knots).  All
    # bases of the sentinel pad value are exactly zero, matching Conv2d zero
    # padding of the bases.
    steps = [(x >= kt).astype(jnp.float32) for kt in knots]
    bases = [steps[i] - steps[i + 1] for i in range(len(knots) - 1)]
    for order in range(1, spline_order + 1):
        nxt = []
        for i in range(len(bases) - 1):
            r1 = 1.0 / (knots[i + order] - knots[i])
            r2 = 1.0 / (knots[i + order + 1] - knots[i + 1])
            nxt.append((x - knots[i]) * r1 * bases[i]
                       + (knots[i + order + 1] - x) * r2 * bases[i + 1])
        bases = nxt
    for j in range(len(bases)):
        acc = acc + jnp.dot(bases[j].astype(operand_dtype), ws_ref[j],
                            preferred_element_type=jnp.float32)

    y_ref[...] = acc.astype(y_ref.dtype)

    # stats from the f32 accumulator (before any bf16 cast)
    s = jnp.sum(acc, axis=0, keepdims=True)                  # (1, Coutp)
    ss = jnp.sum(acc * acc, axis=0, keepdims=True)           # (1, Coutp)

    @pl.when(t == 0)
    def _init():
        stats_ref[0:1, :] = s
        stats_ref[1:2, :] = ss

    @pl.when(t != 0)
    def _accumulate():
        stats_ref[0:1, :] = stats_ref[0:1, :] + s
        stats_ref[1:2, :] = stats_ref[1:2, :] + ss


def _norm_act_kernel(y_ref, stats_ref, bns_ref, bnb_ref, prelu_ref, o_ref, *,
                     inv_count, eps, act):
    """Pass 2: fused InstanceNorm -> PReLU -> folded BatchNorm -> SiLU.
    Combines partial stats of the P halves, one read of y per tile."""
    st = stats_ref[...]                                      # (NH, 2, Coutp) f32
    mean = jnp.sum(st[:, 0:1, :], axis=0) * inv_count        # (1, Coutp)
    ex2 = jnp.sum(st[:, 1:2, :], axis=0) * inv_count
    var = jnp.maximum(ex2 - mean * mean, 0.0)
    inv = jax.lax.rsqrt(var + eps)
    slope = prelu_ref[0, 0]                                  # scalar from SMEM
    y = y_ref[...].astype(jnp.float32)                       # (PT2, Coutp)
    yn = (y - mean) * inv
    yp = jnp.where(yn >= 0.0, yn, slope * yn)
    yb = yp * bns_ref[...] + bnb_ref[...]
    if act:
        yb = yb * jax.nn.sigmoid(yb)
    o_ref[...] = yb.astype(o_ref.dtype)


# ---------------------------------- wrapper -----------------------------------

def _vmem_limit_bytes():
    """Generation-aware VMEM limit (v5e/v6e: 128 MiB physical, v7x: 64 MiB)."""
    cap = 64 << 20                                   # conservative fallback
    try:
        cap = int(getattr(pltpu.get_tpu_info(), "vmem_capacity_bytes", cap))
    except Exception:
        pass
    return max(16 << 20, min(cap * 3 // 4, 100 << 20))


def conv_with_kan(x, params, *, k=3, s=1, p=None, d=1,
                  grid_size=5, spline_order=3, grid_range=(-1.0, 1.0),
                  act=True, precise=False,
                  patch_dtype=jnp.bfloat16, mxu_dtype=jnp.bfloat16,
                  y_dtype=jnp.bfloat16, out_dtype=jnp.float32,
                  p_tile=None, use_pallas=True):
    # TODO(synk): only the groups=1 / kan_type='KANConv2DLayer' path is implemented.
    if precise:   # f32 validation path
        patch_dtype = mxu_dtype = y_dtype = jnp.float32
    p = autopad(k, p, d)
    N, C, H, W = x.shape
    Cout = params['w_base'].shape[0]
    nb = grid_size + spline_order
    eps_in = 1e-5                                    # nn.InstanceNorm2d default

    # fold eval-mode BatchNorm into per-channel scale/bias
    bn_scale = params['bn_gamma'] / jnp.sqrt(params['bn_var'] + params['bn_eps'])
    bn_bias = params['bn_beta'] - params['bn_mean'] * bn_scale

    if not use_pallas:
        return _reference(x, params, bn_scale, bn_bias, k=k, s=s, p=p, d=d,
                          grid_size=grid_size, spline_order=spline_order,
                          grid_range=grid_range, act=act)

    # knots as static Python floats (uniform grid => distinct knots)
    h_knot = (grid_range[1] - grid_range[0]) / grid_size
    knots = tuple(float(v) for v in np.linspace(
        grid_range[0] - h_knot * spline_order,
        grid_range[1] + h_knot * spline_order,
        grid_size + 2 * spline_order + 1, dtype=np.float32))

    # im2col of raw x (cast to patch dtype first so the 9x expanded x_col is
    # never materialized in f32); bases & GELU are produced in-kernel, so no
    # 81x spline im2col ever touches HBM.  Sentinel padding => zero conv taps.
    x_col, Ho, Wo = _im2col(x.astype(patch_dtype), k, s, p, d,
                            pad_value=_SENTINEL)              # (N, P, F)
    P = Ho * Wo
    F = C * k * k
    Coutp = _round_up(Cout, _LANE)                            # lane-dense channels

    patch_bytes = np.dtype(patch_dtype).itemsize
    mxu_bytes = np.dtype(mxu_dtype).itemsize
    y_bytes = np.dtype(y_dtype).itemsize
    out_bytes = np.dtype(out_dtype).itemsize

    vmem_limit = _vmem_limit_bytes()
    budget = int(vmem_limit * 0.7)

    # ---- pass-1 P tile: account patches, y, accumulator, live basis slabs,
    # bf16 operand copies (per-row) plus resident weights and stats (fixed) ----
    n0 = len(knots) - 1                                       # order-0 basis count
    row_bytes = (2 * F * patch_bytes                          # x patches (x2 buf)
                 + 2 * Coutp * y_bytes                        # y tile (x2 buf)
                 + Coutp * 4                                  # f32 accumulator
                 + (2 * n0 + 2) * F * 4                       # live f32 slabs
                 + (nb + 1) * F * mxu_bytes)                  # MXU operand copies
    fixed_bytes = 2 * (1 + nb) * F * Coutp * mxu_bytes + 4 * Coutp * 4
    if p_tile is None:
        avail = max(budget - fixed_bytes, 1 << 20)
        pt = min(1024, _round_up(P, 16))
        while pt > 16 and pt * row_bytes > avail:
            pt = max(16, _round_up(pt // 2, 16))
        p_tile = pt
    p_tile = max(16, _round_up(min(p_tile, _round_up(P, 16)), 16))

    # split P into NH "parallel" halves so N=1 still feeds 2 TensorCores (v7x)
    NH = 2 if (N == 1 and _round_up(P, p_tile) // p_tile >= 2) else 1
    Ppad = _round_up(P, p_tile * NH)
    PT_total = Ppad // p_tile
    PTh = PT_total // NH
    if Ppad > P:     # padded rows carry the sentinel -> their conv rows are 0
        x_col = jnp.pad(x_col, ((0, 0), (0, Ppad - P), (0, 0)),
                        constant_values=_SENTINEL)

    # weights: (F, Coutp) base and (nb, F, Coutp) spline, basis-major, bf16;
    # constant block index => resident in VMEM, fetched once.
    wb = jnp.transpose(params['w_base'].reshape(Cout, F)).astype(mxu_dtype)
    ws = params['w_spline'].reshape(Cout, C, nb, k, k)
    ws = jnp.transpose(ws, (2, 1, 3, 4, 0)).reshape(nb, F, Cout).astype(mxu_dtype)
    if Coutp > Cout:
        wb = jnp.pad(wb, ((0, 0), (0, Coutp - Cout)))
        ws = jnp.pad(ws, ((0, 0), (0, 0), (0, Coutp - Cout)))

    bn_scale_p = jnp.pad(bn_scale.astype(jnp.float32), (0, Coutp - Cout),
                         constant_values=1.0).reshape(1, Coutp)
    bn_bias_p = jnp.pad(bn_bias.astype(jnp.float32),
                        (0, Coutp - Cout)).reshape(1, Coutp)
    prelu = jnp.asarray(params['prelu'], jnp.float32).reshape(1, 1)

    # ---------------- pass 1: conv + per-channel sum / sumsq ----------------
    conv_kernel = functools.partial(_conv_stats_kernel, knots=knots,
                                    spline_order=spline_order,
                                    operand_dtype=mxu_dtype)
    y, stats = pl.pallas_call(
        conv_kernel,
        out_shape=(jax.ShapeDtypeStruct((N, Ppad, Coutp), y_dtype),
                   jax.ShapeDtypeStruct((N, NH, 2, Coutp), jnp.float32)),
        grid_spec=pltpu.PrefetchScalarGridSpec(
            num_scalar_prefetch=0,
            grid=(N, NH, PTh),
            in_specs=[
                pl.BlockSpec((None, p_tile, F),
                             lambda n, h, t: (n, h * PTh + t, 0)),
                pl.BlockSpec((F, Coutp), lambda n, h, t: (0, 0)),
                pl.BlockSpec((nb, F, Coutp), lambda n, h, t: (0, 0, 0)),
            ],
            out_specs=[
                pl.BlockSpec((None, p_tile, Coutp),
                             lambda n, h, t: (n, h * PTh + t, 0)),
                pl.BlockSpec((None, None, 2, Coutp),
                             lambda n, h, t: (n, h, 0, 0)),
            ],
        ),
        compiler_params=pltpu.CompilerParams(
            dimension_semantics=("parallel", "parallel", "arbitrary"),
            vmem_limit_bytes=vmem_limit),
    )(x_col, wb, ws)

    # ------------- pass 2: fused InstanceNorm / PReLU / BN / SiLU -------------
    # Decoupled, much larger P tile (HBM-bound epilogue) over the full Coutp.
    row_bytes2 = Coutp * (2 * y_bytes + 2 * out_bytes + 3 * 4)
    max_rows2 = max(p_tile, min(4096, budget // row_bytes2))
    q = 1
    for cand in range(1, PT_total + 1):
        if PT_total % cand == 0 and cand * p_tile <= max_rows2:
            q = cand
    p_tile2 = q * p_tile
    PT2 = PT_total // q

    norm_kernel = functools.partial(_norm_act_kernel, inv_count=1.0 / float(P),
                                    eps=eps_in, act=act)
    out = pl.pallas_call(
        norm_kernel,
        out_shape=jax.ShapeDtypeStruct((N, Ppad, Coutp), out_dtype),
        grid_spec=pltpu.PrefetchScalarGridSpec(
            num_scalar_prefetch=0,
            grid=(N, PT2),
            in_specs=[
                pl.BlockSpec((None, p_tile2, Coutp), lambda n, t: (n, t, 0)),
                pl.BlockSpec((None, NH, 2, Coutp), lambda n, t: (n, 0, 0, 0)),
                pl.BlockSpec((1, Coutp), lambda n, t: (0, 0)),
                pl.BlockSpec((1, Coutp), lambda n, t: (0, 0)),
                pl.BlockSpec(memory_space=pltpu.MemorySpace.SMEM),
            ],
            out_specs=pl.BlockSpec((None, p_tile2, Coutp), lambda n, t: (n, t, 0)),
        ),
        compiler_params=pltpu.CompilerParams(
            dimension_semantics=("parallel", "parallel"),
            vmem_limit_bytes=vmem_limit),
    )(y, stats, bn_scale_p, bn_bias_p, prelu)

    out = out[:, :P, :Cout].reshape(N, Ho, Wo, Cout)
    return jnp.transpose(out, (0, 3, 1, 2))                   # back to NCHW


# -------------------------- pure-JAX f32 reference ----------------------------

def _bspline_bases(x, grid, spline_order):
    """Cox-de Boor recursion, matching torchkan KANConvNDLayer.forward_kan."""
    xe = x[..., None]
    bases = ((xe >= grid[:-1]) & (xe < grid[1:])).astype(x.dtype)
    for k in range(1, spline_order + 1):
        left = grid[:-(k + 1)]
        right = grid[k:-1]
        delta = jnp.where(right == left, jnp.ones_like(right), right - left)
        bases = ((xe - left) / delta) * bases[..., :-1] + \
                ((grid[k + 1:] - xe) / (grid[k + 1:] - grid[1:-k])) * bases[..., 1:]
    return bases


def _reference(x, params, bn_scale, bn_bias, *, k, s, p, d,
               grid_size, spline_order, grid_range, act):
    """Original-formulation reference (materializes the spline im2col, f32)."""
    N, C, H, W = x.shape
    Cout = params['w_base'].shape[0]
    nb = grid_size + spline_order
    h = (grid_range[1] - grid_range[0]) / grid_size
    grid = jnp.linspace(grid_range[0] - h * spline_order,
                        grid_range[1] + h * spline_order,
                        grid_size + 2 * spline_order + 1, dtype=x.dtype)

    x_base = jax.nn.gelu(x, approximate=False)
    base_col, Ho, Wo = _im2col(x_base, k, s, p, d)
    bases = _bspline_bases(x, grid, spline_order)
    bases = jnp.moveaxis(bases, -1, 2).reshape(N, C * nb, H, W)
    spl_col, _, _ = _im2col(bases, k, s, p, d)

    wb = params['w_base'].reshape(Cout, -1).T
    ws = params['w_spline'].reshape(Cout, -1).T
    y = jnp.einsum('npf,fc->npc', base_col, wb, precision='highest') + \
        jnp.einsum('npf,fc->npc', spl_col, ws, precision='highest')
    mean = jnp.mean(y, axis=1, keepdims=True)
    var = jnp.mean(jnp.square(y - mean), axis=1, keepdims=True)
    yn = (y - mean) / jnp.sqrt(var + 1e-5)
    slope = jnp.asarray(params['prelu'], jnp.float32)
    yp = jnp.where(yn >= 0, yn, slope * yn)
    yb = yp * bn_scale.reshape(1, 1, Cout) + bn_bias.reshape(1, 1, Cout)
    out = yb * jax.nn.sigmoid(yb) if act else yb
    out = out.reshape(N, Ho, Wo, Cout)
    return jnp.transpose(out, (0, 3, 1, 2))


if __name__ == "__main__":
    key = jax.random.PRNGKey(0)
    N, c1, c2, H, W, k = 2, 4, 8, 16, 16, 3
    grid_size, spline_order = 5, 3
    nb = grid_size + spline_order

    kx, kb, ks, kg, kbt, km, kv = jax.random.split(key, 7)
    x = jax.random.normal(kx, (N, c1, H, W), dtype=jnp.float32)

    fan_b = c1 * k * k
    fan_s = c1 * nb * k * k
    params = dict(
        w_base=jax.random.normal(kb, (c2, c1, k, k), jnp.float32) / math.sqrt(fan_b),
        w_spline=jax.random.normal(ks, (c2, c1 * nb, k, k), jnp.float32) / math.sqrt(fan_s),
        prelu=jnp.array(0.25, jnp.float32),                   # nn.PReLU default init
        bn_gamma=1.0 + 0.1 * jax.random.normal(kg, (c2,), jnp.float32),
        bn_beta=0.1 * jax.random.normal(kbt, (c2,), jnp.float32),
        bn_mean=0.1 * jax.random.normal(km, (c2,), jnp.float32),
        bn_var=jax.random.uniform(kv, (c2,), jnp.float32, minval=0.5, maxval=1.5),
        bn_eps=1e-5,
    )

    ref = conv_with_kan(x, params, k=k, use_pallas=False)

    # 1) precise (f32) path, small P tile -> multi-tile two-pass InstanceNorm
    out = jax.block_until_ready(conv_with_kan(x, params, k=k, precise=True, p_tile=64))
    assert out.shape == (N, c2, H, W)
    err = float(jnp.max(jnp.abs(out - ref)))
    assert jnp.allclose(out, ref, atol=3e-2, rtol=3e-2), f"f32 max abs err {err}"

    # 2) default production path: bf16 patches, bf16 MXU operands/weights, bf16 y
    out_bf16 = jax.block_until_ready(conv_with_kan(x, params, k=k))
    err_bf16 = float(jnp.max(jnp.abs(out_bf16 - ref)))
    assert jnp.allclose(out_bf16, ref, atol=1e-1, rtol=1e-1), f"bf16 max abs err {err_bf16}"

    # 3) stride-2 case (different P, single tile)
    out_s2 = jax.block_until_ready(conv_with_kan(x, params, k=k, s=2, precise=True))
    ref_s2 = conv_with_kan(x, params, k=k, s=2, use_pallas=False)
    assert out_s2.shape == (N, c2, H // 2, W // 2)
    assert jnp.allclose(out_s2, ref_s2, atol=3e-2, rtol=3e-2)

    # 4) N=1 exercises the split-P "two parallel halves" path (for v7x 2 TCs)
    out_n1 = jax.block_until_ready(conv_with_kan(x[:1], params, k=k,
                                                 precise=True, p_tile=64))
    err_n1 = float(jnp.max(jnp.abs(out_n1 - ref[:1])))
    assert jnp.allclose(out_n1, ref[:1], atol=3e-2, rtol=3e-2), f"N=1 max abs err {err_n1}"

    print("KERNEL_OK")
</pallas_src>

<mosaic_0001>
module attributes {stable_mosaic.version = 11 : i64} {
  func.func @_conv_stats_kernel(%arg0: i32, %arg1: i32, %arg2: i32, %arg3: memref<1x64x36xf32, #tpu.memory_space<vmem>>, %arg4: memref<36x128xf32, #tpu.memory_space<vmem>>, %arg5: memref<8x36x128xf32, #tpu.memory_space<vmem>>, %arg6: memref<1x64x128xf32, #tpu.memory_space<vmem>>, %arg7: memref<1x1x2x128xf32, #tpu.memory_space<vmem>>) attributes {dimension_semantics = [#tpu.dimension_semantics<parallel>, #tpu.dimension_semantics<parallel>, #tpu.dimension_semantics<arbitrary>], iteration_bounds = array<i64: 2, 1, 4>, scalar_prefetch = 0 : i64, scratch_operands = 0 : i64, tpu.core_type = #tpu.core_type<tc>, window_params = [{transform_indices = @transform_0, window_bounds = array<i64: 1, 64, 36>}, {pipeline_mode = #tpu.pipeline_mode<synchronous>, transform_indices = @transform_1, window_bounds = array<i64: 36, 128>}, {pipeline_mode = #tpu.pipeline_mode<synchronous>, transform_indices = @transform_2, window_bounds = array<i64: 8, 36, 128>}, {transform_indices = @transform_3, window_bounds = array<i64: 1, 64, 128>}, {transform_indices = @transform_4, window_bounds = array<i64: 1, 1, 2, 128>}]} {
    %c0 = arith.constant 0 : index
    %c0_0 = arith.constant 0 : index
    %c0_1 = arith.constant 0 : index
    %0 = vector.load %arg3[%c0, %c0_0, %c0_1] : memref<1x64x36xf32, #tpu.memory_space<vmem>>, vector<1x64x36xf32>
    %1 = vector.shape_cast %0 : vector<1x64x36xf32> to vector<64x36xf32>
    %cst = arith.constant 5.000000e-01 : f32
    %2 = vector.broadcast %cst : f32 to vector<64x36xf32>
    %3 = arith.mulf %2, %1 : vector<64x36xf32>
    %cst_2 = arith.constant 0.707106769 : f32
    %4 = vector.broadcast %cst_2 : f32 to vector<64x36xf32>
    %5 = arith.mulf %1, %4 : vector<64x36xf32>
    %cst_3 = arith.constant 0.000000e+00 : f32
    %6 = vector.broadcast %cst_3 : f32 to vector<64x36xf32>
    %7 = arith.cmpf olt, %5, %6 : vector<64x36xf32>
    %cst_4 = arith.constant -1.000000e+00 : f32
    %cst_5 = arith.constant 1.000000e+00 : f32
    %8 = vector.broadcast %cst_4 : f32 to vector<64x36xf32>
    %9 = vector.broadcast %cst_5 : f32 to vector<64x36xf32>
    %10 = arith.select %7, %8, %9 : vector<64x36xi1>, vector<64x36xf32>
    %11 = math.absf %5 : vector<64x36xf32>
    %cst_6 = arith.constant 0.327591091 : f32
    %12 = vector.broadcast %cst_6 : f32 to vector<64x36xf32>
    %13 = arith.mulf %12, %11 : vector<64x36xf32>
    %cst_7 = arith.constant 1.000000e+00 : f32
    %14 = vector.broadcast %cst_7 : f32 to vector<64x36xf32>
    %15 = arith.addf %14, %13 : vector<64x36xf32>
    %16 = tpu.reciprocal %15 {approx = true} : vector<64x36xf32> -> vector<64x36xf32>
    %cst_8 = arith.constant 1.06140542 : f32
    %17 = vector.broadcast %cst_8 : f32 to vector<64x36xf32>
    %18 = arith.mulf %17, %16 : vector<64x36xf32>
    %cst_9 = arith.constant -1.45315206 : f32
    %19 = vector.broadcast %cst_9 : f32 to vector<64x36xf32>
    %20 = arith.addf %18, %19 : vector<64x36xf32>
    %21 = arith.mulf %20, %16 : vector<64x36xf32>
    %cst_10 = arith.constant 1.42141378 : f32
    %22 = vector.broadcast %cst_10 : f32 to vector<64x36xf32>
    %23 = arith.addf %21, %22 : vector<64x36xf32>
    %24 = arith.mulf %23, %16 : vector<64x36xf32>
    %cst_11 = arith.constant -0.284496725 : f32
    %25 = vector.broadcast %cst_11 : f32 to vector<64x36xf32>
    %26 = arith.addf %24, %25 : vector<64x36xf32>
    %27 = arith.mulf %26, %16 : vector<64x36xf32>
    %cst_12 = arith.constant 0.254829586 : f32
    %28 = vector.broadcast %cst_12 : f32 to vector<64x36xf32>
    %29 = arith.addf %27, %28 : vector<64x36xf32>
    %30 = arith.mulf %29, %16 : vector<64x36xf32>
    %cst_13 = arith.constant 0.000000e+00 : f32
    %31 = vector.broadcast %cst_13 : f32 to vector<64x36xf32>
    %32 = arith.subf %31, %11 : vector<64x36xf32>
    %33 = arith.mulf %32, %11 : vector<64x36xf32>
    %34 = math.exp %33 : vector<64x36xf32>
    %35 = arith.mulf %30, %34 : vector<64x36xf32>
    %cst_14 = arith.constant 1.000000e+00 : f32
    %36 = vector.broadcast %cst_14 : f32 to vector<64x36xf32>
    %37 = arith.subf %36, %35 : vector<64x36xf32>
    %38 = arith.mulf %10, %37 : vector<64x36xf32>
    %cst_15 = arith.constant 1.000000e+00 : f32
    %39 = vector.broadcast %cst_15 : f32 to vector<64x36xf32>
    %40 = arith.addf %39, %38 : vector<64x36xf32>
    %41 = arith.mulf %3, %40 : vector<64x36xf32>
    %c0_16 = arith.constant 0 : index
    %c0_17 = arith.constant 0 : index
    %42 = vector.load %arg4[%c0_16, %c0_17] : memref<36x128xf32, #tpu.memory_space<vmem>>, vector<36x128xf32>
    %cst_18 = arith.constant dense<0.000000e+00> : vector<64x128xf32>
    %43 = tpu.matmul %41, %42, %cst_18 {dimension_numbers = #tpu.dot_dimension_numbers<[1], [0], [0], [1], [0, 0, 1, 1], [], []>} : vector<64x36xf32>, vector<36x128xf32>, vector<64x128xf32> -> vector<64x128xf32>
    %cst_19 = arith.constant -2.200000e+00 : f32
    %44 = vector.broadcast %cst_19 : f32 to vector<64x36xf32>
    %45 = arith.cmpf oge, %1, %44 : vector<64x36xf32>
    %46 = arith.extui %45 : vector<64x36xi1> to vector<64x36xi32>
    %47 = arith.sitofp %46 : vector<64x36xi32> to vector<64x36xf32>
    %cst_20 = arith.constant -1.800000e+00 : f32
    %48 = vector.broadcast %cst_20 : f32 to vector<64x36xf32>
    %49 = arith.cmpf oge, %1, %48 : vector<64x36xf32>
    %50 = arith.extui %49 : vector<64x36xi1> to vector<64x36xi32>
    %51 = arith.sitofp %50 : vector<64x36xi32> to vector<64x36xf32>
    %cst_21 = arith.constant -1.400000e+00 : f32
    %52 = vector.broadcast %cst_21 : f32 to vector<64x36xf32>
    %53 = arith.cmpf oge, %1, %52 : vector<64x36xf32>
    %54 = arith.extui %53 : vector<64x36xi1> to vector<64x36xi32>
    %55 = arith.sitofp %54 : vector<64x36xi32> to vector<64x36xf32>
    %cst_22 = arith.constant -1.000000e+00 : f32
    %56 = vector.broadcast %cst_22 : f32 to vector<64x36xf32>
    %57 = arith.cmpf oge, %1, %56 : vector<64x36xf32>
    %58 = arith.extui %57 : vector<64x36xi1> to vector<64x36xi32>
    %59 = arith.sitofp %58 : vector<64x36xi32> to vector<64x36xf32>
    %cst_23 = arith.constant -6.000000e-01 : f32
    %60 = vector.broadcast %cst_23 : f32 to vector<64x36xf32>
    %61 = arith.cmpf oge, %1, %60 : vector<64x36xf32>
    %62 = arith.extui %61 : vector<64x36xi1> to vector<64x36xi32>
    %63 = arith.sitofp %62 : vector<64x36xi32> to vector<64x36xf32>
    %cst_24 = arith.constant -2.000000e-01 : f32
    %64 = vector.broadcast %cst_24 : f32 to vector<64x36xf32>
    %65 = arith.cmpf oge, %1, %64 : vector<64x36xf32>
    %66 = arith.extui %65 : vector<64x36xi1> to vector<64x36xi32>
    %67 = arith.sitofp %66 : vector<64x36xi32> to vector<64x36xf32>
    %cst_25 = arith.constant 2.000000e-01 : f32
    %68 = vector.broadcast %cst_25 : f32 to vector<64x36xf32>
    %69 = arith.cmpf oge, %1, %68 : vector<64x36xf32>
    %70 = arith.extui %69 : vector<64x36xi1> to vector<64x36xi32>
    %71 = arith.sitofp %70 : vector<64x36xi32> to vector<64x36xf32>
    %cst_26 = arith.constant 6.000000e-01 : f32
    %72 = vector.broadcast %cst_26 : f32 to vector<64x36xf32>
    %73 = arith.cmpf oge, %1, %72 : vector<64x36xf32>
    %74 = arith.extui %73 : vector<64x36xi1> to vector<64x36xi32>
    %75 = arith.sitofp %74 : vector<64x36xi32> to vector<64x36xf32>
    %cst_27 = arith.constant 1.000000e+00 : f32
    %76 = vector.broadcast %cst_27 : f32 to vector<64x36xf32>
    %77 = arith.cmpf oge, %1, %76 : vector<64x36xf32>
    %78 = arith.extui %77 : vector<64x36xi1> to vector<64x36xi32>
    %79 = arith.sitofp %78 : vector<64x36xi32> to vector<64x36xf32>
    %cst_28 = arith.constant 1.400000e+00 : f32
    %80 = vector.broadcast %cst_28 : f32 to vector<64x36xf32>
    %81 = arith.cmpf oge, %1, %80 : vector<64x36xf32>
    %82 = arith.extui %81 : vector<64x36xi1> to vector<64x36xi32>
    %83 = arith.sitofp %82 : vector<64x36xi32> to vector<64x36xf32>
    %cst_29 = arith.constant 1.800000e+00 : f32
    %84 = vector.broadcast %cst_29 : f32 to vector<64x36xf32>
    %85 = arith.cmpf oge, %1, %84 : vector<64x36xf32>
    %86 = arith.extui %85 : vector<64x36xi1> to vector<64x36xi32>
    %87 = arith.sitofp %86 : vector<64x36xi32> to vector<64x36xf32>
    %cst_30 = arith.constant 2.200000e+00 : f32
    %88 = vector.broadcast %cst_30 : f32 to vector<64x36xf32>
    %89 = arith.cmpf oge, %1, %88 : vector<64x36xf32>
    %90 = arith.extui %89 : vector<64x36xi1> to vector<64x36xi32>
    %91 = arith.sitofp %90 : vector<64x36xi32> to vector<64x36xf32>
    %92 = arith.subf %47, %51 : vector<64x36xf32>
    %93 = arith.subf %51, %55 : vector<64x36xf32>
    %94 = arith.subf %55, %59 : vector<64x36xf32>
    %95 = arith.subf %59, %63 : vector<64x36xf32>
    %96 = arith.subf %63, %67 : vector<64x36xf32>
    %97 = arith.subf %67, %71 : vector<64x36xf32>
    %98 = arith.subf %71, %75 : vector<64x36xf32>
    %99 = arith.subf %75, %79 : vector<64x36xf32>
    %100 = arith.subf %79, %83 : vector<64x36xf32>
    %101 = arith.subf %83, %87 : vector<64x36xf32>
    %102 = arith.subf %87, %91 : vector<64x36xf32>
    %cst_31 = arith.constant -2.200000e+00 : f32
    %103 = vector.broadcast %cst_31 : f32 to vector<64x36xf32>
    %104 = arith.subf %1, %103 : vector<64x36xf32>
    %cst_32 = arith.constant 2.49999952 : f32
    %105 = vector.broadcast %cst_32 : f32 to vector<64x36xf32>
    %106 = arith.mulf %104, %105 : vector<64x36xf32>
    %107 = arith.mulf %106, %92 : vector<64x36xf32>
    %cst_33 = arith.constant -1.400000e+00 : f32
    %108 = vector.broadcast %cst_33 : f32 to vector<64x36xf32>
    %109 = arith.subf %108, %1 : vector<64x36xf32>
    %cst_34 = arith.constant 2.50000024 : f32
    %110 = vector.broadcast %cst_34 : f32 to vector<64x36xf32>
    %111 = arith.mulf %109, %110 : vector<64x36xf32>
    %112 = arith.mulf %111, %93 : vector<64x36xf32>
    %113 = arith.addf %107, %112 : vector<64x36xf32>
    %cst_35 = arith.constant -1.800000e+00 : f32
    %114 = vector.broadcast %cst_35 : f32 to vector<64x36xf32>
    %115 = arith.subf %1, %114 : vector<64x36xf32>
    %cst_36 = arith.constant 2.50000024 : f32
    %116 = vector.broadcast %cst_36 : f32 to vector<64x36xf32>
    %117 = arith.mulf %115, %116 : vector<64x36xf32>
    %118 = arith.mulf %117, %93 : vector<64x36xf32>
    %cst_37 = arith.constant -1.000000e+00 : f32
    %119 = vector.broadcast %cst_37 : f32 to vector<64x36xf32>
    %120 = arith.subf %119, %1 : vector<64x36xf32>
    %cst_38 = arith.constant 2.50000024 : f32
    %121 = vector.broadcast %cst_38 : f32 to vector<64x36xf32>
    %122 = arith.mulf %120, %121 : vector<64x36xf32>
    %123 = arith.mulf %122, %94 : vector<64x36xf32>
    %124 = arith.addf %118, %123 : vector<64x36xf32>
    %cst_39 = arith.constant -1.400000e+00 : f32
    %125 = vector.broadcast %cst_39 : f32 to vector<64x36xf32>
    %126 = arith.subf %1, %125 : vector<64x36xf32>
    %cst_40 = arith.constant 2.50000024 : f32
    %127 = vector.broadcast %cst_40 : f32 to vector<64x36xf32>
    %128 = arith.mulf %126, %127 : vector<64x36xf32>
    %129 = arith.mulf %128, %94 : vector<64x36xf32>
    %cst_41 = arith.constant -6.000000e-01 : f32
    %130 = vector.broadcast %cst_41 : f32 to vector<64x36xf32>
    %131 = arith.subf %130, %1 : vector<64x36xf32>
    %cst_42 = arith.constant 2.50000024 : f32
    %132 = vector.broadcast %cst_42 : f32 to vector<64x36xf32>
    %133 = arith.mulf %131, %132 : vector<64x36xf32>
    %134 = arith.mulf %133, %95 : vector<64x36xf32>
    %135 = arith.addf %129, %134 : vector<64x36xf32>
    %cst_43 = arith.constant -1.000000e+00 : f32
    %136 = vector.broadcast %cst_43 : f32 to vector<64x36xf32>
    %137 = arith.subf %1, %136 : vector<64x36xf32>
    %cst_44 = arith.constant 2.50000024 : f32
    %138 = vector.broadcast %cst_44 : f32 to vector<64x36xf32>
    %139 = arith.mulf %137, %138 : vector<64x36xf32>
    %140 = arith.mulf %139, %95 : vector<64x36xf32>
    %cst_45 = arith.constant -2.000000e-01 : f32
    %141 = vector.broadcast %cst_45 : f32 to vector<64x36xf32>
    %142 = arith.subf %141, %1 : vector<64x36xf32>
    %cst_46 = arith.constant 2.49999976 : f32
    %143 = vector.broadcast %cst_46 : f32 to vector<64x36xf32>
    %144 = arith.mulf %142, %143 : vector<64x36xf32>
    %145 = arith.mulf %144, %96 : vector<64x36xf32>
    %146 = arith.addf %140, %145 : vector<64x36xf32>
    %cst_47 = arith.constant -6.000000e-01 : f32
    %147 = vector.broadcast %cst_47 : f32 to vector<64x36xf32>
    %148 = arith.subf %1, %147 : vector<64x36xf32>
    %cst_48 = arith.constant 2.49999976 : f32
    %149 = vector.broadcast %cst_48 : f32 to vector<64x36xf32>
    %150 = arith.mulf %148, %149 : vector<64x36xf32>
    %151 = arith.mulf %150, %96 : vector<64x36xf32>
    %cst_49 = arith.constant 2.000000e-01 : f32
    %152 = vector.broadcast %cst_49 : f32 to vector<64x36xf32>
    %153 = arith.subf %152, %1 : vector<64x36xf32>
    %cst_50 = arith.constant 2.500000e+00 : f32
    %154 = vector.broadcast %cst_50 : f32 to vector<64x36xf32>
    %155 = arith.mulf %153, %154 : vector<64x36xf32>
    %156 = arith.mulf %155, %97 : vector<64x36xf32>
    %157 = arith.addf %151, %156 : vector<64x36xf32>
    %cst_51 = arith.constant -2.000000e-01 : f32
    %158 = vector.broadcast %cst_51 : f32 to vector<64x36xf32>
    %159 = arith.subf %1, %158 : vector<64x36xf32>
    %cst_52 = arith.constant 2.500000e+00 : f32
    %160 = vector.broadcast %cst_52 : f32 to vector<64x36xf32>
    %161 = arith.mulf %159, %160 : vector<64x36xf32>
    %162 = arith.mulf %161, %97 : vector<64x36xf32>
    %cst_53 = arith.constant 6.000000e-01 : f32
    %163 = vector.broadcast %cst_53 : f32 to vector<64x36xf32>
    %164 = arith.subf %163, %1 : vector<64x36xf32>
    %cst_54 = arith.constant 2.49999976 : f32
    %165 = vector.broadcast %cst_54 : f32 to vector<64x36xf32>
    %166 = arith.mulf %164, %165 : vector<64x36xf32>
    %167 = arith.mulf %166, %98 : vector<64x36xf32>
    %168 = arith.addf %162, %167 : vector<64x36xf32>
    %cst_55 = arith.constant 2.000000e-01 : f32
    %169 = vector.broadcast %cst_55 : f32 to vector<64x36xf32>
    %170 = arith.subf %1, %169 : vector<64x36xf32>
    %cst_56 = arith.constant 2.49999976 : f32
    %171 = vector.broadcast %cst_56 : f32 to vector<64x36xf32>
    %172 = arith.mulf %170, %171 : vector<64x36xf32>
    %173 = arith.mulf %172, %98 : vector<64x36xf32>
    %cst_57 = arith.constant 1.000000e+00 : f32
    %174 = vector.broadcast %cst_57 : f32 to vector<64x36xf32>
    %175 = arith.subf %174, %1 : vector<64x36xf32>
    %cst_58 = arith.constant 2.50000024 : f32
    %176 = vector.broadcast %cst_58 : f32 to vector<64x36xf32>
    %177 = arith.mulf %175, %176 : vector<64x36xf32>
    %178 = arith.mulf %177, %99 : vector<64x36xf32>
    %179 = arith.addf %173, %178 : vector<64x36xf32>
    %cst_59 = arith.constant 6.000000e-01 : f32
    %180 = vector.broadcast %cst_59 : f32 to vector<64x36xf32>
    %181 = arith.subf %1, %180 : vector<64x36xf32>
    %cst_60 = arith.constant 2.50000024 : f32
    %182 = vector.broadcast %cst_60 : f32 to vector<64x36xf32>
    %183 = arith.mulf %181, %182 : vector<64x36xf32>
    %184 = arith.mulf %183, %99 : vector<64x36xf32>
    %cst_61 = arith.constant 1.400000e+00 : f32
    %185 = vector.broadcast %cst_61 : f32 to vector<64x36xf32>
    %186 = arith.subf %185, %1 : vector<64x36xf32>
    %cst_62 = arith.constant 2.50000024 : f32
    %187 = vector.broadcast %cst_62 : f32 to vector<64x36xf32>
    %188 = arith.mulf %186, %187 : vector<64x36xf32>
    %189 = arith.mulf %188, %100 : vector<64x36xf32>
    %190 = arith.addf %184, %189 : vector<64x36xf32>
    %cst_63 = arith.constant 1.000000e+00 : f32
    %191 = vector.broadcast %cst_63 : f32 to vector<64x36xf32>
    %192 = arith.subf %1, %191 : vector<64x36xf32>
    %cst_64 = arith.constant 2.50000024 : f32
    %193 = vector.broadcast %cst_64 : f32 to vector<64x36xf32>
    %194 = arith.mulf %192, %193 : vector<64x36xf32>
    %195 = arith.mulf %194, %100 : vector<64x36xf32>
    %cst_65 = arith.constant 1.800000e+00 : f32
    %196 = vector.broadcast %cst_65 : f32 to vector<64x36xf32>
    %197 = arith.subf %196, %1 : vector<64x36xf32>
    %cst_66 = arith.constant 2.50000024 : f32
    %198 = vector.broadcast %cst_66 : f32 to vector<64x36xf32>
    %199 = arith.mulf %197, %198 : vector<64x36xf32>
    %200 = arith.mulf %199, %101 : vector<64x36xf32>
    %201 = arith.addf %195, %200 : vector<64x36xf32>
    %cst_67 = arith.constant 1.400000e+00 : f32
    %202 = vector.broadcast %cst_67 : f32 to vector<64x36xf32>
    %203 = arith.subf %1, %202 : vector<64x36xf32>
    %cst_68 = arith.constant 2.50000024 : f32
    %204 = vector.broadcast %cst_68 : f32 to vector<64x36xf32>
    %205 = arith.mulf %203, %204 : vector<64x36xf32>
    %206 = arith.mulf %205, %101 : vector<64x36xf32>
    %cst_69 = arith.constant 2.200000e+00 : f32
    %207 = vector.broadcast %cst_69 : f32 to vector<64x36xf32>
    %208 = arith.subf %207, %1 : vector<64x36xf32>
    %cst_70 = arith.constant 2.49999952 : f32
    %209 = vector.broadcast %cst_70 : f32 to vector<64x36xf32>
    %210 = arith.mulf %208, %209 : vector<64x36xf32>
    %211 = arith.mulf %210, %102 : vector<64x36xf32>
    %212 = arith.addf %206, %211 : vector<64x36xf32>
    %cst_71 = arith.constant -2.200000e+00 : f32
    %213 = vector.broadcast %cst_71 : f32 to vector<64x36xf32>
    %214 = arith.subf %1, %213 : vector<64x36xf32>
    %cst_72 = arith.constant 1.24999988 : f32
    %215 = vector.broadcast %cst_72 : f32 to vector<64x36xf32>
    %216 = arith.mulf %214, %215 : vector<64x36xf32>
    %217 = arith.mulf %216, %113 : vector<64x36xf32>
    %cst_73 = arith.constant -1.000000e+00 : f32
    %218 = vector.broadcast %cst_73 : f32 to vector<64x36xf32>
    %219 = arith.subf %218, %1 : vector<64x36xf32>
    %cst_74 = arith.constant 1.25000012 : f32
    %220 = vector.broadcast %cst_74 : f32 to vector<64x36xf32>
    %221 = arith.mulf %219, %220 : vector<64x36xf32>
    %222 = arith.mulf %221, %124 : vector<64x36xf32>
    %223 = arith.addf %217, %222 : vector<64x36xf32>
    %cst_75 = arith.constant -1.800000e+00 : f32
    %224 = vector.broadcast %cst_75 : f32 to vector<64x36xf32>
    %225 = arith.subf %1, %224 : vector<64x36xf32>
    %cst_76 = arith.constant 1.25000012 : f32
    %226 = vector.broadcast %cst_76 : f32 to vector<64x36xf32>
    %227 = arith.mulf %225, %226 : vector<64x36xf32>
    %228 = arith.mulf %227, %124 : vector<64x36xf32>
    %cst_77 = arith.constant -6.000000e-01 : f32
    %229 = vector.broadcast %cst_77 : f32 to vector<64x36xf32>
    %230 = arith.subf %229, %1 : vector<64x36xf32>
    %cst_78 = arith.constant 1.25000012 : f32
    %231 = vector.broadcast %cst_78 : f32 to vector<64x36xf32>
    %232 = arith.mulf %230, %231 : vector<64x36xf32>
    %233 = arith.mulf %232, %135 : vector<64x36xf32>
    %234 = arith.addf %228, %233 : vector<64x36xf32>
    %cst_79 = arith.constant -1.400000e+00 : f32
    %235 = vector.broadcast %cst_79 : f32 to vector<64x36xf32>
    %236 = arith.subf %1, %235 : vector<64x36xf32>
    %cst_80 = arith.constant 1.25000012 : f32
    %237 = vector.broadcast %cst_80 : f32 to vector<64x36xf32>
    %238 = arith.mulf %236, %237 : vector<64x36xf32>
    %239 = arith.mulf %238, %135 : vector<64x36xf32>
    %cst_81 = arith.constant -2.000000e-01 : f32
    %240 = vector.broadcast %cst_81 : f32 to vector<64x36xf32>
    %241 = arith.subf %240, %1 : vector<64x36xf32>
    %cst_82 = arith.constant 1.250000e+00 : f32
    %242 = vector.broadcast %cst_82 : f32 to vector<64x36xf32>
    %243 = arith.mulf %241, %242 : vector<64x36xf32>
    %244 = arith.mulf %243, %146 : vector<64x36xf32>
    %245 = arith.addf %239, %244 : vector<64x36xf32>
    %cst_83 = arith.constant -1.000000e+00 : f32
    %246 = vector.broadcast %cst_83 : f32 to vector<64x36xf32>
    %247 = arith.subf %1, %246 : vector<64x36xf32>
    %cst_84 = arith.constant 1.250000e+00 : f32
    %248 = vector.broadcast %cst_84 : f32 to vector<64x36xf32>
    %249 = arith.mulf %247, %248 : vector<64x36xf32>
    %250 = arith.mulf %249, %146 : vector<64x36xf32>
    %cst_85 = arith.constant 2.000000e-01 : f32
    %251 = vector.broadcast %cst_85 : f32 to vector<64x36xf32>
    %252 = arith.subf %251, %1 : vector<64x36xf32>
    %cst_86 = arith.constant 1.250000e+00 : f32
    %253 = vector.broadcast %cst_86 : f32 to vector<64x36xf32>
    %254 = arith.mulf %252, %253 : vector<64x36xf32>
    %255 = arith.mulf %254, %157 : vector<64x36xf32>
    %256 = arith.addf %250, %255 : vector<64x36xf32>
    %cst_87 = arith.constant -6.000000e-01 : f32
    %257 = vector.broadcast %cst_87 : f32 to vector<64x36xf32>
    %258 = arith.subf %1, %257 : vector<64x36xf32>
    %cst_88 = arith.constant 1.250000e+00 : f32
    %259 = vector.broadcast %cst_88 : f32 to vector<64x36xf32>
    %260 = arith.mulf %258, %259 : vector<64x36xf32>
    %261 = arith.mulf %260, %157 : vector<64x36xf32>
    %cst_89 = arith.constant 6.000000e-01 : f32
    %262 = vector.broadcast %cst_89 : f32 to vector<64x36xf32>
    %263 = arith.subf %262, %1 : vector<64x36xf32>
    %cst_90 = arith.constant 1.250000e+00 : f32
    %264 = vector.broadcast %cst_90 : f32 to vector<64x36xf32>
    %265 = arith.mulf %263, %264 : vector<64x36xf32>
    %266 = arith.mulf %265, %168 : vector<64x36xf32>
    %267 = arith.addf %261, %266 : vector<64x36xf32>
    %cst_91 = arith.constant -2.000000e-01 : f32
    %268 = vector.broadcast %cst_91 : f32 to vector<64x36xf32>
    %269 = arith.subf %1, %268 : vector<64x36xf32>
    %cst_92 = arith.constant 1.250000e+00 : f32
    %270 = vector.broadcast %cst_92 : f32 to vector<64x36xf32>
    %271 = arith.mulf %269, %270 : vector<64x36xf32>
    %272 = arith.mulf %271, %168 : vector<64x36xf32>
    %cst_93 = arith.constant 1.000000e+00 : f32
    %273 = vector.broadcast %cst_93 : f32 to vector<64x36xf32>
    %274 = arith.subf %273, %1 : vector<64x36xf32>
    %cst_94 = arith.constant 1.250000e+00 : f32
    %275 = vector.broadcast %cst_94 : f32 to vector<64x36xf32>
    %276 = arith.mulf %274, %275 : vector<64x36xf32>
    %277 = arith.mulf %276, %179 : vector<64x36xf32>
    %278 = arith.addf %272, %277 : vector<64x36xf32>
    %cst_95 = arith.constant 2.000000e-01 : f32
    %279 = vector.broadcast %cst_95 : f32 to vector<64x36xf32>
    %280 = arith.subf %1, %279 : vector<64x36xf32>
    %cst_96 = arith.constant 1.250000e+00 : f32
    %281 = vector.broadcast %cst_96 : f32 to vector<64x36xf32>
    %282 = arith.mulf %280, %281 : vector<64x36xf32>
    %283 = arith.mulf %282, %179 : vector<64x36xf32>
    %cst_97 = arith.constant 1.400000e+00 : f32
    %284 = vector.broadcast %cst_97 : f32 to vector<64x36xf32>
    %285 = arith.subf %284, %1 : vector<64x36xf32>
    %cst_98 = arith.constant 1.25000012 : f32
    %286 = vector.broadcast %cst_98 : f32 to vector<64x36xf32>
    %287 = arith.mulf %285, %286 : vector<64x36xf32>
    %288 = arith.mulf %287, %190 : vector<64x36xf32>
    %289 = arith.addf %283, %288 : vector<64x36xf32>
    %cst_99 = arith.constant 6.000000e-01 : f32
    %290 = vector.broadcast %cst_99 : f32 to vector<64x36xf32>
    %291 = arith.subf %1, %290 : vector<64x36xf32>
    %cst_100 = arith.constant 1.25000012 : f32
    %292 = vector.broadcast %cst_100 : f32 to vector<64x36xf32>
    %293 = arith.mulf %291, %292 : vector<64x36xf32>
    %294 = arith.mulf %293, %190 : vector<64x36xf32>
    %cst_101 = arith.constant 1.800000e+00 : f32
    %295 = vector.broadcast %cst_101 : f32 to vector<64x36xf32>
    %296 = arith.subf %295, %1 : vector<64x36xf32>
    %cst_102 = arith.constant 1.25000012 : f32
    %297 = vector.broadcast %cst_102 : f32 to vector<64x36xf32>
    %298 = arith.mulf %296, %297 : vector<64x36xf32>
    %299 = arith.mulf %298, %201 : vector<64x36xf32>
    %300 = arith.addf %294, %299 : vector<64x36xf32>
    %cst_103 = arith.constant 1.000000e+00 : f32
    %301 = vector.broadcast %cst_103 : f32 to vector<64x36xf32>
    %302 = arith.subf %1, %301 : vector<64x36xf32>
    %cst_104 = arith.constant 1.25000012 : f32
    %303 = vector.broadcast %cst_104 : f32 to vector<64x36xf32>
    %304 = arith.mulf %302, %303 : vector<64x36xf32>
    %305 = arith.mulf %304, %201 : vector<64x36xf32>
    %cst_105 = arith.constant 2.200000e+00 : f32
    %306 = vector.broadcast %cst_105 : f32 to vector<64x36xf32>
    %307 = arith.subf %306, %1 : vector<64x36xf32>
    %cst_106 = arith.constant 1.24999988 : f32
    %308 = vector.broadcast %cst_106 : f32 to vector<64x36xf32>
    %309 = arith.mulf %307, %308 : vector<64x36xf32>
    %310 = arith.mulf %309, %212 : vector<64x36xf32>
    %311 = arith.addf %305, %310 : vector<64x36xf32>
    %cst_107 = arith.constant -2.200000e+00 : f32
    %312 = vector.broadcast %cst_107 : f32 to vector<64x36xf32>
    %313 = arith.subf %1, %312 : vector<64x36xf32>
    %cst_108 = arith.constant 0.833333313 : f32
    %314 = vector.broadcast %cst_108 : f32 to vector<64x36xf32>
    %315 = arith.mulf %313, %314 : vector<64x36xf32>
    %316 = arith.mulf %315, %223 : vector<64x36xf32>
    %cst_109 = arith.constant -6.000000e-01 : f32
    %317 = vector.broadcast %cst_109 : f32 to vector<64x36xf32>
    %318 = arith.subf %317, %1 : vector<64x36xf32>
    %cst_110 = arith.constant 0.833333373 : f32
    %319 = vector.broadcast %cst_110 : f32 to vector<64x36xf32>
    %320 = arith.mulf %318, %319 : vector<64x36xf32>
    %321 = arith.mulf %320, %234 : vector<64x36xf32>
    %322 = arith.addf %316, %321 : vector<64x36xf32>
    %cst_111 = arith.constant -1.800000e+00 : f32
    %323 = vector.broadcast %cst_111 : f32 to vector<64x36xf32>
    %324 = arith.subf %1, %323 : vector<64x36xf32>
    %cst_112 = arith.constant 0.833333373 : f32
    %325 = vector.broadcast %cst_112 : f32 to vector<64x36xf32>
    %326 = arith.mulf %324, %325 : vector<64x36xf32>
    %327 = arith.mulf %326, %234 : vector<64x36xf32>
    %cst_113 = arith.constant -2.000000e-01 : f32
    %328 = vector.broadcast %cst_113 : f32 to vector<64x36xf32>
    %329 = arith.subf %328, %1 : vector<64x36xf32>
    %cst_114 = arith.constant 0.833333373 : f32
    %330 = vector.broadcast %cst_114 : f32 to vector<64x36xf32>
    %331 = arith.mulf %329, %330 : vector<64x36xf32>
    %332 = arith.mulf %331, %245 : vector<64x36xf32>
    %333 = arith.addf %327, %332 : vector<64x36xf32>
    %cst_115 = arith.constant -1.400000e+00 : f32
    %334 = vector.broadcast %cst_115 : f32 to vector<64x36xf32>
    %335 = arith.subf %1, %334 : vector<64x36xf32>
    %cst_116 = arith.constant 0.833333373 : f32
    %336 = vector.broadcast %cst_116 : f32 to vector<64x36xf32>
    %337 = arith.mulf %335, %336 : vector<64x36xf32>
    %338 = arith.mulf %337, %245 : vector<64x36xf32>
    %cst_117 = arith.constant 2.000000e-01 : f32
    %339 = vector.broadcast %cst_117 : f32 to vector<64x36xf32>
    %340 = arith.subf %339, %1 : vector<64x36xf32>
    %cst_118 = arith.constant 0.833333313 : f32
    %341 = vector.broadcast %cst_118 : f32 to vector<64x36xf32>
    %342 = arith.mulf %340, %341 : vector<64x36xf32>
    %343 = arith.mulf %342, %256 : vector<64x36xf32>
    %344 = arith.addf %338, %343 : vector<64x36xf32>
    %cst_119 = arith.constant -1.000000e+00 : f32
    %345 = vector.broadcast %cst_119 : f32 to vector<64x36xf32>
    %346 = arith.subf %1, %345 : vector<64x36xf32>
    %cst_120 = arith.constant 0.833333313 : f32
    %347 = vector.broadcast %cst_120 : f32 to vector<64x36xf32>
    %348 = arith.mulf %346, %347 : vector<64x36xf32>
    %349 = arith.mulf %348, %256 : vector<64x36xf32>
    %cst_121 = arith.constant 6.000000e-01 : f32
    %350 = vector.broadcast %cst_121 : f32 to vector<64x36xf32>
    %351 = arith.subf %350, %1 : vector<64x36xf32>
    %cst_122 = arith.constant 0.833333313 : f32
    %352 = vector.broadcast %cst_122 : f32 to vector<64x36xf32>
    %353 = arith.mulf %351, %352 : vector<64x36xf32>
    %354 = arith.mulf %353, %267 : vector<64x36xf32>
    %355 = arith.addf %349, %354 : vector<64x36xf32>
    %cst_123 = arith.constant -6.000000e-01 : f32
    %356 = vector.broadcast %cst_123 : f32 to vector<64x36xf32>
    %357 = arith.subf %1, %356 : vector<64x36xf32>
    %cst_124 = arith.constant 0.833333313 : f32
    %358 = vector.broadcast %cst_124 : f32 to vector<64x36xf32>
    %359 = arith.mulf %357, %358 : vector<64x36xf32>
    %360 = arith.mulf %359, %267 : vector<64x36xf32>
    %cst_125 = arith.constant 1.000000e+00 : f32
    %361 = vector.broadcast %cst_125 : f32 to vector<64x36xf32>
    %362 = arith.subf %361, %1 : vector<64x36xf32>
    %cst_126 = arith.constant 0.833333313 : f32
    %363 = vector.broadcast %cst_126 : f32 to vector<64x36xf32>
    %364 = arith.mulf %362, %363 : vector<64x36xf32>
    %365 = arith.mulf %364, %278 : vector<64x36xf32>
    %366 = arith.addf %360, %365 : vector<64x36xf32>
    %cst_127 = arith.constant -2.000000e-01 : f32
    %367 = vector.broadcast %cst_127 : f32 to vector<64x36xf32>
    %368 = arith.subf %1, %367 : vector<64x36xf32>
    %cst_128 = arith.constant 0.833333313 : f32
    %369 = vector.broadcast %cst_128 : f32 to vector<64x36xf32>
    %370 = arith.mulf %368, %369 : vector<64x36xf32>
    %371 = arith.mulf %370, %278 : vector<64x36xf32>
    %cst_129 = arith.constant 1.400000e+00 : f32
    %372 = vector.broadcast %cst_129 : f32 to vector<64x36xf32>
    %373 = arith.subf %372, %1 : vector<64x36xf32>
    %cst_130 = arith.constant 0.833333373 : f32
    %374 = vector.broadcast %cst_130 : f32 to vector<64x36xf32>
    %375 = arith.mulf %373, %374 : vector<64x36xf32>
    %376 = arith.mulf %375, %289 : vector<64x36xf32>
    %377 = arith.addf %371, %376 : vector<64x36xf32>
    %cst_131 = arith.constant 2.000000e-01 : f32
    %378 = vector.broadcast %cst_131 : f32 to vector<64x36xf32>
    %379 = arith.subf %1, %378 : vector<64x36xf32>
    %cst_132 = arith.constant 0.833333373 : f32
    %380 = vector.broadcast %cst_132 : f32 to vector<64x36xf32>
    %381 = arith.mulf %379, %380 : vector<64x36xf32>
    %382 = arith.mulf %381, %289 : vector<64x36xf32>
    %cst_133 = arith.constant 1.800000e+00 : f32
    %383 = vector.broadcast %cst_133 : f32 to vector<64x36xf32>
    %384 = arith.subf %383, %1 : vector<64x36xf32>
    %cst_134 = arith.constant 0.833333373 : f32
    %385 = vector.broadcast %cst_134 : f32 to vector<64x36xf32>
    %386 = arith.mulf %384, %385 : vector<64x36xf32>
    %387 = arith.mulf %386, %300 : vector<64x36xf32>
    %388 = arith.addf %382, %387 : vector<64x36xf32>
    %cst_135 = arith.constant 6.000000e-01 : f32
    %389 = vector.broadcast %cst_135 : f32 to vector<64x36xf32>
    %390 = arith.subf %1, %389 : vector<64x36xf32>
    %cst_136 = arith.constant 0.833333373 : f32
    %391 = vector.broadcast %cst_136 : f32 to vector<64x36xf32>
    %392 = arith.mulf %390, %391 : vector<64x36xf32>
    %393 = arith.mulf %392, %300 : vector<64x36xf32>
    %cst_137 = arith.constant 2.200000e+00 : f32
    %394 = vector.broadcast %cst_137 : f32 to vector<64x36xf32>
    %395 = arith.subf %394, %1 : vector<64x36xf32>
    %cst_138 = arith.constant 0.833333313 : f32
    %396 = vector.broadcast %cst_138 : f32 to vector<64x36xf32>
    %397 = arith.mulf %395, %396 : vector<64x36xf32>
    %398 = arith.mulf %397, %311 : vector<64x36xf32>
    %399 = arith.addf %393, %398 : vector<64x36xf32>
    %c0_139 = arith.constant 0 : index
    %c0_140 = arith.constant 0 : index
    %c0_141 = arith.constant 0 : index
    %400 = vector.load %arg5[%c0_139, %c0_140, %c0_141] : memref<8x36x128xf32, #tpu.memory_space<vmem>>, vector<1x36x128xf32>
    %401 = vector.shape_cast %400 : vector<1x36x128xf32> to vector<36x128xf32>
    %cst_142 = arith.constant dense<0.000000e+00> : vector<64x128xf32>
    %402 = tpu.matmul %322, %401, %cst_142 {dimension_numbers = #tpu.dot_dimension_numbers<[1], [0], [0], [1], [0, 0, 1, 1], [], []>} : vector<64x36xf32>, vector<36x128xf32>, vector<64x128xf32> -> vector<64x128xf32>
    %403 = arith.addf %43, %402 : vector<64x128xf32>
    %c1 = arith.constant 1 : index
    %c0_143 = arith.constant 0 : index
    %c0_144 = arith.constant 0 : index
    %404 = vector.load %arg5[%c1, %c0_143, %c0_144] : memref<8x36x128xf32, #tpu.memory_space<vmem>>, vector<1x36x128xf32>
    %405 = vector.shape_cast %404 : vector<1x36x128xf32> to vector<36x128xf32>
    %cst_145 = arith.constant dense<0.000000e+00> : vector<64x128xf32>
    %406 = tpu.matmul %333, %405, %cst_145 {dimension_numbers = #tpu.dot_dimension_numbers<[1], [0], [0], [1], [0, 0, 1, 1], [], []>} : vector<64x36xf32>, vector<36x128xf32>, vector<64x128xf32> -> vector<64x128xf32>
    %407 = arith.addf %403, %406 : vector<64x128xf32>
    %c2 = arith.constant 2 : index
    %c0_146 = arith.constant 0 : index
    %c0_147 = arith.constant 0 : index
    %408 = vector.load %arg5[%c2, %c0_146, %c0_147] : memref<8x36x128xf32, #tpu.memory_space<vmem>>, vector<1x36x128xf32>
    %409 = vector.shape_cast %408 : vector<1x36x128xf32> to vector<36x128xf32>
    %cst_148 = arith.constant dense<0.000000e+00> : vector<64x128xf32>
    %410 = tpu.matmul %344, %409, %cst_148 {dimension_numbers = #tpu.dot_dimension_numbers<[1], [0], [0], [1], [0, 0, 1, 1], [], []>} : vector<64x36xf32>, vector<36x128xf32>, vector<64x128xf32> -> vector<64x128xf32>
    %411 = arith.addf %407, %410 : vector<64x128xf32>
    %c3 = arith.constant 3 : index
    %c0_149 = arith.constant 0 : index
    %c0_150 = arith.constant 0 : index
    %412 = vector.load %arg5[%c3, %c0_149, %c0_150] : memref<8x36x128xf32, #tpu.memory_space<vmem>>, vector<1x36x128xf32>
    %413 = vector.shape_cast %412 : vector<1x36x128xf32> to vector<36x128xf32>
    %cst_151 = arith.constant dense<0.000000e+00> : vector<64x128xf32>
    %414 = tpu.matmul %355, %413, %cst_151 {dimension_numbers = #tpu.dot_dimension_numbers<[1], [0], [0], [1], [0, 0, 1, 1], [], []>} : vector<64x36xf32>, vector<36x128xf32>, vector<64x128xf32> -> vector<64x128xf32>
    %415 = arith.addf %411, %414 : vector<64x128xf32>
    %c4 = arith.constant 4 : index
    %c0_152 = arith.constant 0 : index
    %c0_153 = arith.constant 0 : index
    %416 = vector.load %arg5[%c4, %c0_152, %c0_153] : memref<8x36x128xf32, #tpu.memory_space<vmem>>, vector<1x36x128xf32>
    %417 = vector.shape_cast %416 : vector<1x36x128xf32> to vector<36x128xf32>
    %cst_154 = arith.constant dense<0.000000e+00> : vector<64x128xf32>
    %418 = tpu.matmul %366, %417, %cst_154 {dimension_numbers = #tpu.dot_dimension_numbers<[1], [0], [0], [1], [0, 0, 1, 1], [], []>} : vector<64x36xf32>, vector<36x128xf32>, vector<64x128xf32> -> vector<64x128xf32>
    %419 = arith.addf %415, %418 : vector<64x128xf32>
    %c5 = arith.constant 5 : index
    %c0_155 = arith.constant 0 : index
    %c0_156 = arith.constant 0 : index
    %420 = vector.load %arg5[%c5, %c0_155, %c0_156] : memref<8x36x128xf32, #tpu.memory_space<vmem>>, vector<1x36x128xf32>
    %421 = vector.shape_cast %420 : vector<1x36x128xf32> to vector<36x128xf32>
    %cst_157 = arith.constant dense<0.000000e+00> : vector<64x128xf32>
    %422 = tpu.matmul %377, %421, %cst_157 {dimension_numbers = #tpu.dot_dimension_numbers<[1], [0], [0], [1], [0, 0, 1, 1], [], []>} : vector<64x36xf32>, vector<36x128xf32>, vector<64x128xf32> -> vector<64x128xf32>
    %423 = arith.addf %419, %422 : vector<64x128xf32>
    %c6 = arith.constant 6 : index
    %c0_158 = arith.constant 0 : index
    %c0_159 = arith.constant 0 : index
    %424 = vector.load %arg5[%c6, %c0_158, %c0_159] : memref<8x36x128xf32, #tpu.memory_space<vmem>>, vector<1x36x128xf32>
    %425 = vector.shape_cast %424 : vector<1x36x128xf32> to vector<36x128xf32>
    %cst_160 = arith.constant dense<0.000000e+00> : vector<64x128xf32>
    %426 = tpu.matmul %388, %425, %cst_160 {dimension_numbers = #tpu.dot_dimension_numbers<[1], [0], [0], [1], [0, 0, 1, 1], [], []>} : vector<64x36xf32>, vector<36x128xf32>, vector<64x128xf32> -> vector<64x128xf32>
    %427 = arith.addf %423, %426 : vector<64x128xf32>
    %c7 = arith.constant 7 : index
    %c0_161 = arith.constant 0 : index
    %c0_162 = arith.constant 0 : index
    %428 = vector.load %arg5[%c7, %c0_161, %c0_162] : memref<8x36x128xf32, #tpu.memory_space<vmem>>, vector<1x36x128xf32>
    %429 = vector.shape_cast %428 : vector<1x36x128xf32> to vector<36x128xf32>
    %cst_163 = arith.constant dense<0.000000e+00> : vector<64x128xf32>
    %430 = tpu.matmul %399, %429, %cst_163 {dimension_numbers = #tpu.dot_dimension_numbers<[1], [0], [0], [1], [0, 0, 1, 1], [], []>} : vector<64x36xf32>, vector<36x128xf32>, vector<64x128xf32> -> vector<64x128xf32>
    %431 = arith.addf %427, %430 : vector<64x128xf32>
    %c0_164 = arith.constant 0 : index
    %c0_165 = arith.constant 0 : index
    %c0_166 = arith.constant 0 : index
    %432 = vector.load %arg6[%c0_164, %c0_165, %c0_166] : memref<1x64x128xf32, #tpu.memory_space<vmem>>, vector<1x64x128xf32>
    %433 = vector.shape_cast %432 : vector<1x64x128xf32> to vector<64x128xf32>
    %434 = vector.shape_cast %431 : vector<64x128xf32> to vector<1x64x128xf32>
    tpu.vector_store %arg6[%c0_164, %c0_165, %c0_166], %434 {strides = array<i32>} : memref<1x64x128xf32, #tpu.memory_space<vmem>>, vector<1x64x128xf32>,
    %cst_167 = arith.constant dense<0.000000e+00> : vector<128xf32>
    %435 = vector.multi_reduction <add>, %431, %cst_167 [0] : vector<64x128xf32> to vector<128xf32>
    %436 = vector.shape_cast %435 : vector<128xf32> to vector<1x128xf32>
    %437 = arith.mulf %431, %431 : vector<64x128xf32>
    %cst_168 = arith.constant dense<0.000000e+00> : vector<128xf32>
    %438 = vector.multi_reduction <add>, %437, %cst_168 [0] : vector<64x128xf32> to vector<128xf32>
    %439 = vector.shape_cast %438 : vector<128xf32> to vector<1x128xf32>
    %c0_i32 = arith.constant 0 : i32
    %440 = arith.cmpi eq, %arg2, %c0_i32 : i32
    %441 = arith.extui %440 : i1 to i32
    %c0_i32_169 = arith.constant 0 : i32
    %442 = arith.cmpi ne, %441, %c0_i32_169 : i32
    scf.if %442 {
      %c0_172 = arith.constant 0 : index
      %c0_173 = arith.constant 0 : index
      %c0_174 = arith.constant 0 : index
      %c0_175 = arith.constant 0 : index
      %446 = vector.load %arg7[%c0_172, %c0_173, %c0_174, %c0_175] : memref<1x1x2x128xf32, #tpu.memory_space<vmem>>, vector<1x1x1x128xf32>
      %447 = vector.shape_cast %446 : vector<1x1x1x128xf32> to vector<1x128xf32>
      %448 = vector.shape_cast %436 : vector<1x128xf32> to vector<1x1x1x128xf32>
      tpu.vector_store %arg7[%c0_172, %c0_173, %c0_174, %c0_175], %448 {strides = array<i32>} : memref<1x1x2x128xf32, #tpu.memory_space<vmem>>, vector<1x1x1x128xf32>,
      %c0_176 = arith.constant 0 : index
      %c0_177 = arith.constant 0 : index
      %c1_178 = arith.constant 1 : index
      %c0_179 = arith.constant 0 : index
      %449 = vector.load %arg7[%c0_176, %c0_177, %c1_178, %c0_179] : memref<1x1x2x128xf32, #tpu.memory_space<vmem>>, vector<1x1x1x128xf32>
      %450 = vector.shape_cast %449 : vector<1x1x1x128xf32> to vector<1x128xf32>
      %451 = vector.shape_cast %439 : vector<1x128xf32> to vector<1x1x1x128xf32>
      tpu.vector_store %arg7[%c0_176, %c0_177, %c1_178, %c0_179], %451 {strides = array<i32>} : memref<1x1x2x128xf32, #tpu.memory_space<vmem>>, vector<1x1x1x128xf32>,
    } else {
    }
    %c0_i32_170 = arith.constant 0 : i32
    %443 = arith.cmpi ne, %arg2, %c0_i32_170 : i32
    %444 = arith.extui %443 : i1 to i32
    %c0_i32_171 = arith.constant 0 : i32
    %445 = arith.cmpi ne, %444, %c0_i32_171 : i32
    scf.if %445 {
      %c0_172 = arith.constant 0 : index
      %c0_173 = arith.constant 0 : index
      %c0_174 = arith.constant 0 : index
      %c0_175 = arith.constant 0 : index
      %446 = vector.load %arg7[%c0_172, %c0_173, %c0_174, %c0_175] : memref<1x1x2x128xf32, #tpu.memory_space<vmem>>, vector<1x1x1x128xf32>
      %447 = vector.shape_cast %446 : vector<1x1x1x128xf32> to vector<1x128xf32>
      %448 = arith.addf %447, %436 : vector<1x128xf32>
      %c0_176 = arith.constant 0 : index
      %c0_177 = arith.constant 0 : index
      %c0_178 = arith.constant 0 : index
      %c0_179 = arith.constant 0 : index
      %449 = vector.load %arg7[%c0_176, %c0_177, %c0_178, %c0_179] : memref<1x1x2x128xf32, #tpu.memory_space<vmem>>, vector<1x1x1x128xf32>
      %450 = vector.shape_cast %449 : vector<1x1x1x128xf32> to vector<1x128xf32>
      %451 = vector.shape_cast %448 : vector<1x128xf32> to vector<1x1x1x128xf32>
      tpu.vector_store %arg7[%c0_176, %c0_177, %c0_178, %c0_179], %451 {strides = array<i32>} : memref<1x1x2x128xf32, #tpu.memory_space<vmem>>, vector<1x1x1x128xf32>,
      %c0_180 = arith.constant 0 : index
      %c0_181 = arith.constant 0 : index
      %c1_182 = arith.constant 1 : index
      %c0_183 = arith.constant 0 : index
      %452 = vector.load %arg7[%c0_180, %c0_181, %c1_182, %c0_183] : memref<1x1x2x128xf32, #tpu.memory_space<vmem>>, vector<1x1x1x128xf32>
      %453 = vector.shape_cast %452 : vector<1x1x1x128xf32> to vector<1x128xf32>
      %454 = arith.addf %453, %439 : vector<1x128xf32>
      %c0_184 = arith.constant 0 : index
      %c0_185 = arith.constant 0 : index
      %c1_186 = arith.constant 1 : index
      %c0_187 = arith.constant 0 : index
      %455 = vector.load %arg7[%c0_184, %c0_185, %c1_186, %c0_187] : memref<1x1x2x128xf32, #tpu.memory_space<vmem>>, vector<1x1x1x128xf32>
      %456 = vector.shape_cast %455 : vector<1x1x1x128xf32> to vector<1x128xf32>
      %457 = vector.shape_cast %454 : vector<1x128xf32> to vector<1x1x1x128xf32>
      tpu.vector_store %arg7[%c0_184, %c0_185, %c1_186, %c0_187], %457 {strides = array<i32>} : memref<1x1x2x128xf32, #tpu.memory_space<vmem>>, vector<1x1x1x128xf32>,
    } else {
    }
    return
  }
  func.func @transform_0(%arg0: i32, %arg1: i32, %arg2: i32) -> (i32, i32, i32) {
    %c4_i32 = arith.constant 4 : i32
    %0 = arith.muli %arg1, %c4_i32 : i32
    %1 = arith.addi %0, %arg2 : i32
    %c0_i32 = arith.constant 0 : i32
    %c0_i32_0 = arith.constant 0 : i32
    return %arg0, %1, %c0_i32 : i32, i32, i32
  }
  func.func @transform_1(%arg0: i32, %arg1: i32, %arg2: i32) -> (i32, i32) {
    %c0_i32 = arith.constant 0 : i32
    %c0_i32_0 = arith.constant 0 : i32
    %c0_i32_1 = arith.constant 0 : i32
    return %c0_i32, %c0_i32_0 : i32, i32
  }
  func.func @transform_2(%arg0: i32, %arg1: i32, %arg2: i32) -> (i32, i32, i32) {
    %c0_i32 = arith.constant 0 : i32
    %c0_i32_0 = arith.constant 0 : i32
    %c0_i32_1 = arith.constant 0 : i32
    %c0_i32_2 = arith.constant 0 : i32
    return %c0_i32, %c0_i32_0, %c0_i32_1 : i32, i32, i32
  }
  func.func @transform_3(%arg0: i32, %arg1: i32, %arg2: i32) -> (i32, i32, i32) {
    %c4_i32 = arith.constant 4 : i32
    %0 = arith.muli %arg1, %c4_i32 : i32
    %1 = arith.addi %0, %arg2 : i32
    %c0_i32 = arith.constant 0 : i32
    %c0_i32_0 = arith.constant 0 : i32
    return %arg0, %1, %c0_i32 : i32, i32, i32
  }
  func.func @transform_4(%arg0: i32, %arg1: i32, %arg2: i32) -> (i32, i32, i32, i32) {
    %c0_i32 = arith.constant 0 : i32
    %c0_i32_0 = arith.constant 0 : i32
    %c0_i32_1 = arith.constant 0 : i32
    return %arg0, %arg1, %c0_i32, %c0_i32_0 : i32, i32, i32, i32
  }
}

</mosaic_0001>

<llo_original>
// kernel: tpu_custom_call.1
$region0: #{tpu_custom_call.1}
  #allocation0 [shape = 'u32[]', space=smem, size = 0x4, offset = 0x4, fixed_abs, tag = 'smem constant byte address 0x4 - core index']
  #allocation1 [shape = 'u32[144,128]{1,0:T(1,128)}', space=vmem, size = 0x12000, scoped, tag = 'internal scratch']
  %s0 = inlined_call_operand.vmem [shape: f32[2,256,36], index: 0, kind: input, shape index: {}]
  %s1 = inlined_call_operand.vmem [shape: f32[36,128], index: 1, kind: input, shape index: {}]
  %s2 = inlined_call_operand.vmem [shape: f32[8,36,128], index: 2, kind: input, shape index: {}]
  %s3 = inlined_call_operand.hbm [shape: f32[2,256,128], index: 3, kind: output, shape index: {0}]
  %s4 = inlined_call_operand.hbm [shape: f32[2,1,2,128], index: 4, kind: output, shape index: {1}]
  %5 = xla_tuple %s3, %s4
  %s6 = sld [smem:[#allocation0]]
  $region61: #{tpu_custom_call.1} parent=0
    _
  %s8 = ssub.s32 1, %s6
  %s9 = scalar_select 0, %s8, %s6
  $region1: #{tpu_custom_call.1} parent=0
    #allocation2 [shape = 'u8[65536]{0}', space=vmem, size = 0x10000, scoped, tag = 'output window, operand 0']
    #allocation3 [shape = 's32[2]{0}', space=sflag, size = 0x8, scoped, tag = 'scoped memory for tpu_custom_call.1']
    #allocation4 [shape = 'u8[2048]{0}', space=vmem, size = 0x800, scoped, tag = 'output window, operand 1']
    #allocation5 [shape = 's32[2]{0}', space=sflag, size = 0x8, scoped, tag = 'scoped memory for tpu_custom_call.1']
    %10 = vsyncpa [#allocation3], 0
    %s11 = scalar_lea.sflag [#allocation3], 1
    %12 = vsyncpa %s11, 0
    %13 = vsyncpa [#allocation5], 0
    %s14 = scalar_lea.sflag [#allocation5], 1
    %15 = vsyncpa %s14, 0
    loop: start=0, step=1, limit=10
    $region2: #{tpu_custom_call.1} parent=1 // loop_pre_header
      _
    $region3: #{tpu_custom_call.1} parent=1 // loop_header
      %s17 = sphi 0, %s21
      %p18 = scmp.ge.s32.totalorder %s17, 10
      %s24 = sphi 0, %s43
      %s25 = sphi 0, %s39
      %s26 = sphi 0, %s35
      %s27 = sphi 0, %s24
      %s28 = sphi 0, %s25
      %s29 = sphi 0, %s26
      %s30 = sphi 0, %s27
      %s31 = sphi 0, %s28
      %s32 = sphi 0, %s29
      %s52 = sphi 0, %s54
      %s55 = sphi 0, %s52
      %s56 = sphi 0, %s55
      %s72 = sphi 0, %s56
      %s76 = sphi 0, %s76
      %s78 = sphi 0, %s76
      %s79 = sphi 0, %s78
      %s93 = sphi 0, %s79
      %s97 = sphi 0, %s97
      %s99 = sphi 0, %s97
      %s100 = sphi 0, %s99
      %s114 = sphi 0, %s100
      %s126 = sphi 0, %s128
      %s129 = sphi 0, %s126
      %s130 = sphi 0, %s129
      %s146 = sphi 0, %s130
      %s154 = sphi 0, %s156
      %s157 = sphi 0, %s154
      %s158 = sphi 0, %s157
      %s174 = sphi 0, %s158
    $region4: #{tpu_custom_call.1} parent=1 // loop_header_branch
      %20 = sbr.rel (%p18) target = $region8
    $region5: #{tpu_custom_call.1} parent=1 // loop_body
      %s22 = ssub.s32 %s17, 1
      %s23 = ssub.s32 %s17, 2
      %s33 = sadd.s32 1, %s26
      %p34 = scmp.ge.s32.totalorder %s33, 4
      %s35 = scalar_select %p34, 0, %s33
      %s36 = sadd.s32 1, %s25
      %s37 = scalar_select %p34, %s36, %s25
      %p38 = scmp.ge.s32.totalorder %s37, 1
      %s39 = scalar_select %p38, 0, %s37
      %s40 = sadd.s32 1, %s24
      %s41 = scalar_select %p38, %s40, %s24
      %p42 = scmp.ge.s32.totalorder %s41, 2
      %s43 = scalar_select %p42, 0, %s41
      %s44 = smul.u32 %s25, 4
      %s45 = sadd.s32 %s44, %s26
      %s46 = smul.u32 %s39, 4
      %s47 = sadd.s32 %s46, %s35
      %s48 = ssub.s32 %s24, %s43
      %s49 = ssub.s32 %s45, %s47
      %s50 = sor.u32 %s48, %s49
      %p51 = scmp.eq.s32.totalorder %s50, 0
      %s53 = sadd.s32 %s52, 1
      %s54 = scalar_select %p51, %s52, %s53
      %p57 = pneg %p51
      %p58 = scmp.eq.s32.totalorder %s17, 7
      %p59 = por %p57, %p58
      %p60 = scmp.ne.s32.totalorder %s52, %s55
      %p61 = scmp.eq.s32.totalorder %s17, 0
      %p62 = por %p60, %p61
      %p63 = scmp.ne.s32.totalorder %s52, %s55
      %p64 = scmp.eq.s32.totalorder %s22, 7
      %p65 = por %p63, %p64
      %p66 = scmp.ne.s32.totalorder %s55, %s56
      %p67 = scmp.eq.s32.totalorder %s22, 0
      %p68 = por %p66, %p67
      %p69 = scmp.ne.s32.totalorder %s55, %s56
      %p70 = scmp.eq.s32.totalorder %s23, 7
      %p71 = por %p69, %p70
      %p73 = scmp.ne.s32.totalorder %s56, %s72
      %p74 = scmp.eq.s32.totalorder %s23, 0
      %p75 = por %p73, %p74
      %s77 = sadd.s32 %s76, 1
      %p80 = scmp.eq.s32.totalorder %s17, 7
      %p81 = scmp.ne.s32.totalorder %s76, %s78
      %p82 = scmp.eq.s32.totalorder %s17, 0
      %p83 = por %p81, %p82
      %p84 = scmp.ne.s32.totalorder %s76, %s78
      %p85 = scmp.eq.s32.totalorder %s22, 7
      %p86 = por %p84, %p85
      %p87 = scmp.ne.s32.totalorder %s78, %s79
      %p88 = scmp.eq.s32.totalorder %s22, 0
      %p89 = por %p87, %p88
      %p90 = scmp.ne.s32.totalorder %s78, %s79
      %p91 = scmp.eq.s32.totalorder %s23, 7
      %p92 = por %p90, %p91
      %p94 = scmp.ne.s32.totalorder %s79, %s93
      %p95 = scmp.eq.s32.totalorder %s23, 0
      %p96 = por %p94, %p95
      %s98 = sadd.s32 %s97, 1
      %p101 = scmp.eq.s32.totalorder %s17, 7
      %p102 = scmp.ne.s32.totalorder %s97, %s99
      %p103 = scmp.eq.s32.totalorder %s17, 0
      %p104 = por %p102, %p103
      %p105 = scmp.ne.s32.totalorder %s97, %s99
      %p106 = scmp.eq.s32.totalorder %s22, 7
      %p107 = por %p105, %p106
      %p108 = scmp.ne.s32.totalorder %s99, %s100
      %p109 = scmp.eq.s32.totalorder %s22, 0
      %p110 = por %p108, %p109
      %p111 = scmp.ne.s32.totalorder %s99, %s100
      %p112 = scmp.eq.s32.totalorder %s23, 7
      %p113 = por %p111, %p112
      %p115 = scmp.ne.s32.totalorder %s100, %s114
      %p116 = scmp.eq.s32.totalorder %s23, 0
      %p117 = por %p115, %p116
      %s118 = smul.u32 %s25, 4
      %s119 = sadd.s32 %s118, %s26
      %s120 = smul.u32 %s39, 4
      %s121 = sadd.s32 %s120, %s35
      %s122 = ssub.s32 %s24, %s43
      %s123 = ssub.s32 %s119, %s121
      %s124 = sor.u32 %s122, %s123
      %p125 = scmp.eq.s32.totalorder %s124, 0
      %s127 = sadd.s32 %s126, 1
      %s128 = scalar_select %p125, %s126, %s127
      %p131 = pneg %p125
      %p132 = scmp.eq.s32.totalorder %s17, 7
      %p133 = por %p131, %p132
      %p134 = scmp.ne.s32.totalorder %s126, %s129
      %p135 = scmp.eq.s32.totalorder %s17, 0
      %p136 = por %p134, %p135
      %p137 = scmp.ne.s32.totalorder %s126, %s129
      %p138 = scmp.eq.s32.totalorder %s22, 7
      %p139 = por %p137, %p138
      %p140 = scmp.ne.s32.totalorder %s129, %s130
      %p141 = scmp.eq.s32.totalorder %s22, 0
      %p142 = por %p140, %p141
      %p143 = scmp.ne.s32.totalorder %s129, %s130
      %p144 = scmp.eq.s32.totalorder %s23, 7
      %p145 = por %p143, %p144
      %p147 = scmp.ne.s32.totalorder %s130, %s146
      %p148 = scmp.eq.s32.totalorder %s23, 0
      %p149 = por %p147, %p148
      %s150 = ssub.s32 %s24, %s43
      %s151 = ssub.s32 %s25, %s39
      %s152 = sor.u32 %s150, %s151
      %p153 = scmp.eq.s32.totalorder %s152, 0
      %s155 = sadd.s32 %s154, 1
      %s156 = scalar_select %p153, %s154, %s155
      %p159 = pneg %p153
      %p160 = scmp.eq.s32.totalorder %s17, 7
      %p161 = por %p159, %p160
      %p162 = scmp.ne.s32.totalorder %s154, %s157
      %p163 = scmp.eq.s32.totalorder %s17, 0
      %p164 = por %p162, %p163
      %p165 = scmp.ne.s32.totalorder %s154, %s157
      %p166 = scmp.eq.s32.totalorder %s22, 7
      %p167 = por %p165, %p166
      %p168 = scmp.ne.s32.totalorder %s157, %s158
      %p169 = scmp.eq.s32.totalorder %s22, 0
      %p170 = por %p168, %p169
      %p171 = scmp.ne.s32.totalorder %s157, %s158
      %p172 = scmp.eq.s32.totalorder %s23, 7
      %p173 = por %p171, %p172
      %p175 = scmp.ne.s32.totalorder %s158, %s174
      %p176 = scmp.eq.s32.totalorder %s23, 0
      %p177 = por %p175, %p176
      %p178 = scmp.le.s32.totalorder 1, %s17
      %p179 = scmp.lt.s32.totalorder %s17, 9
      %p180 = pnand %p178, %p179
      %p181 = pneg %p180
      // Predicated region
      $region9: #{tpu_custom_call.1} parent=5 // pred_check
        _
      $region10: #{tpu_custom_call.1} parent=5 // pred_check_branch
        %183 = sbr.rel (%p180) target = $region12
      $region11: #{tpu_custom_call.1} parent=5 // pred_region
        %s184 = ssub.s32 %s17, 1
        // Predicated region
        $region13: #{tpu_custom_call.1} parent=11 // pred_check
          %p185 = pneg %p89
        $region14: #{tpu_custom_call.1} parent=11 // pred_check_branch
          %187 = sbr.rel (%p185) target = $region16
        $region15: #{tpu_custom_call.1} parent=11 // pred_region
          _
        $region16: #{tpu_custom_call.1} parent=11 // pred_fallthru
          _
        // Predicated region
        $region17: #{tpu_custom_call.1} parent=11 // pred_check
          %p188 = pneg %p110
        $region18: #{tpu_custom_call.1} parent=11 // pred_check_branch
          %190 = sbr.rel (%p188) target = $region20
        $region19: #{tpu_custom_call.1} parent=11 // pred_region
          _
        $region20: #{tpu_custom_call.1} parent=11 // pred_fallthru
          _
      $region12: #{tpu_custom_call.1} parent=5 // pred_fallthru
        _
      %p191 = scmp.lt.s32.totalorder %s17, 8
      // Predicated region
      $region21: #{tpu_custom_call.1} parent=5 // pred_check
        %p192 = pneg %p191
      $region22: #{tpu_custom_call.1} parent=5 // pred_check_branch
        %194 = sbr.rel (%p192) target = $region24
      $region23: #{tpu_custom_call.1} parent=5 // pred_region
        // Predicated region
        $region25: #{tpu_custom_call.1} parent=23 // pred_check
          %p195 = pneg %p62
        $region26: #{tpu_custom_call.1} parent=23 // pred_check_branch
          %197 = sbr.rel (%p195) target = $region28
        $region27: #{tpu_custom_call.1} parent=23 // pred_region
          %s198 = smul.u32 %s25, 4
          %s199 = sadd.s32 %s198, %s26
          %s200 = smul.u32 8, %s199
          %p201 = scmp.lt.s32.totalorder %s24, 1
          %s202 = scalar_select %p201, %s24, 1
          %p203 = scmp.lt.s32.totalorder %s200, 31
          %s204 = scalar_select %p203, %s200, 31
          %s205 = smul.addr %s202, 32
          %s206 = sadd.s32 %s204, %s205
          %s207 = smul.addr %s206, 8
          %s208 = scalar_lea.vmem %s0, %s207
          %s209 = smul.u32 %s25, 4
          %s210 = sadd.s32 %s209, %s26
          %s211 = smul.u32 8, %s210
        $region28: #{tpu_custom_call.1} parent=23 // pred_fallthru
          _
      $region24: #{tpu_custom_call.1} parent=5 // pred_fallthru
        _
      %p212 = scmp.le.s32.totalorder 1, %s17
      %p213 = scmp.lt.s32.totalorder %s17, 9
      %p214 = pnand %p212, %p213
      %p215 = pneg %p214
      // Predicated region
      $region29: #{tpu_custom_call.1} parent=5 // pred_check
        _
      $region30: #{tpu_custom_call.1} parent=5 // pred_check_branch
        %217 = sbr.rel (%p214) target = $region32
      $region31: #{tpu_custom_call.1} parent=5 // pred_region
        %s218 = ssub.s32 %s17, 1
        %s219 = smul.u32 %s28, 4
        %s220 = sadd.s32 %s219, %s29
        %s221 = smul.u32 8, %s220
        %p222 = scmp.lt.s32.totalorder %s27, 1
        %s223 = scalar_select %p222, %s27, 1
        %p224 = scmp.lt.s32.totalorder %s221, 31
        %s225 = scalar_select %p224, %s221, 31
        %s226 = smul.addr %s223, 32
        %s227 = sadd.s32 %s225, %s226
        %s228 = smul.addr %s227, 8
        %s229 = scalar_lea.vmem %s0, %s228
        %p230 = pneg %p68
        %p231 = pneg %p65
        %p232 = pneg %p89
        %p233 = pneg %p86
        %p234 = pneg %p110
        %p235 = pneg %p107
        %p236 = pneg %p142
        %p237 = pneg %p139
        %s238 = sand.u32 %s129, 1
        %s239 = scalar_lea.sflag [#allocation3], %s238
        %s240 = sand.u32 %s129, 1
        %s241 = smul.addr %s240, 64
        %s242 = scalar_lea.vmem [#allocation2], %s241
        %p243 = pneg %p170
        %p244 = pneg %p167
        %s245 = sand.u32 %s157, 1
        %s246 = scalar_lea.sflag [#allocation5], %s245
        %s247 = sand.u32 %s157, 1
        %s248 = smul.addr %s247, 2
        %s249 = scalar_lea.vmem [#allocation4], %s248
        %s250 = smul.u32 %s28, 4
        %s251 = sadd.s32 %s250, %s29
        %s252 = smul.u32 8, %s251
        %p253 = scmp.lt.s32.totalorder %s27, 1
        %s254 = scalar_select %p253, %s27, 1
        %p255 = scmp.lt.s32.totalorder %s252, 31
        %s256 = scalar_select %p255, %s252, 31
        %s257 = smul.addr %s254, 32
        %s258 = sadd.s32 %s256, %s257
        %s259 = smul.addr %s258, 8
        %s260 = scalar_lea.vmem %s0, %s259
        %s261 = smul.u32 %s28, 4
        %s262 = sadd.s32 %s261, %s29
        %s263 = smul.u32 8, %s262
        %s264 = smul.u32 %s28, 4
        %s265 = sadd.s32 %s264, %s29
        %s266 = smul.u32 8, %s265
        %v267 = vld [vmem:[%s260] sm:$0xff]
        %v268 = vld [vmem:[%s260 + $0x8] sm:$0xff]
        %v269 = vld [vmem:[%s260 + $0x10] sm:$0xff]
        %v270 = vld [vmem:[%s260 + $0x18] sm:$0xff]
        %v271 = vld [vmem:[%s260 + $0x20] sm:$0xff]
        %v272 = vld [vmem:[%s260 + $0x28] sm:$0xff]
        %v273 = vld [vmem:[%s260 + $0x30] sm:$0xff]
        %v274 = vld [vmem:[%s260 + $0x38] sm:$0xff]
        %v275 = vmul.f32 %v267, 0.5
        %v276 = vmul.f32 %v268, 0.5
        %v277 = vmul.f32 %v269, 0.5
        %v278 = vmul.f32 %v270, 0.5
        %v279 = vmul.f32 %v271, 0.5
        %v280 = vmul.f32 %v272, 0.5
        %v281 = vmul.f32 %v273, 0.5
        %v282 = vmul.f32 %v274, 0.5
        %v283 = vmul.f32 %v267, 0.70710677
        %v284 = vmul.f32 %v268, 0.70710677
        %v285 = vmul.f32 %v269, 0.70710677
        %v286 = vmul.f32 %v270, 0.70710677
        %v287 = vmul.f32 %v271, 0.70710677
        %v288 = vmul.f32 %v272, 0.70710677
        %v289 = vmul.f32 %v273, 0.70710677
        %v290 = vmul.f32 %v274, 0.70710677
        %vm291 = vcmp.lt.f32.partialorder %v283, 0.0
        %vm292 = vcmp.lt.f32.partialorder %v284, 0.0
        %vm293 = vcmp.lt.f32.partialorder %v285, 0.0
        %vm294 = vcmp.lt.f32.partialorder %v286, 0.0
        %vm295 = vcmp.lt.f32.partialorder %v287, 0.0
        %vm296 = vcmp.lt.f32.partialorder %v288, 0.0
        %vm297 = vcmp.lt.f32.partialorder %v289, 0.0
        %vm298 = vcmp.lt.f32.partialorder %v290, 0.0
        %v299 = vsel %vm291, -1.0, 1.0
        %v300 = vsel %vm292, -1.0, 1.0
        %v301 = vsel %vm293, -1.0, 1.0
        %v302 = vsel %vm294, -1.0, 1.0
        %v303 = vsel %vm295, -1.0, 1.0
        %v304 = vsel %vm296, -1.0, 1.0
        %v305 = vsel %vm297, -1.0, 1.0
        %v306 = vsel %vm298, -1.0, 1.0
        %v307 = vand.u32 2147483647, %v283
        %v308 = vand.u32 2147483647, %v284
        %v309 = vand.u32 2147483647, %v285
        %v310 = vand.u32 2147483647, %v286
        %v311 = vand.u32 2147483647, %v287
        %v312 = vand.u32 2147483647, %v288
        %v313 = vand.u32 2147483647, %v289
        %v314 = vand.u32 2147483647, %v290
        %v315 = vmul.f32 %v307, 0.3275911
        %v316 = vmul.f32 %v308, 0.3275911
        %v317 = vmul.f32 %v309, 0.3275911
        %v318 = vmul.f32 %v310, 0.3275911
        %v319 = vmul.f32 %v311, 0.3275911
        %v320 = vmul.f32 %v312, 0.3275911
        %v321 = vmul.f32 %v313, 0.3275911
        %v322 = vmul.f32 %v314, 0.3275911
        %v323 = vadd.f32 %v315, 1.0
        %v324 = vadd.f32 %v316, 1.0
        %v325 = vadd.f32 %v317, 1.0
        %v326 = vadd.f32 %v318, 1.0
        %v327 = vadd.f32 %v319, 1.0
        %v328 = vadd.f32 %v320, 1.0
        %v329 = vadd.f32 %v321, 1.0
        %v330 = vadd.f32 %v322, 1.0
        %v331 = vrcp.pop %v323
        %v332 = vrcp.pop %v324
        %v333 = vrcp.pop %v325
        %v334 = vrcp.pop %v326
        %v335 = vrcp.pop %v327
        %v336 = vrcp.pop %v328
        %v337 = vrcp.pop %v329
        %v338 = vrcp.pop %v330
        %v339 = vmul.f32 %v331, 1.0614054
        %v340 = vmul.f32 %v332, 1.0614054
        %v341 = vmul.f32 %v333, 1.0614054
        %v342 = vmul.f32 %v334, 1.0614054
        %v343 = vmul.f32 %v335, 1.0614054
        %v344 = vmul.f32 %v336, 1.0614054
        %v345 = vmul.f32 %v337, 1.0614054
        %v346 = vmul.f32 %v338, 1.0614054
        %v347 = vadd.f32 %v339, -1.4531521
        %v348 = vadd.f32 %v340, -1.4531521
        %v349 = vadd.f32 %v341, -1.4531521
        %v350 = vadd.f32 %v342, -1.4531521
        %v351 = vadd.f32 %v343, -1.4531521
        %v352 = vadd.f32 %v344, -1.4531521
        %v353 = vadd.f32 %v345, -1.4531521
        %v354 = vadd.f32 %v346, -1.4531521
        %v355 = vmul.f32 %v347, %v331
        %v356 = vmul.f32 %v348, %v332
        %v357 = vmul.f32 %v349, %v333
        %v358 = vmul.f32 %v350, %v334
        %v359 = vmul.f32 %v351, %v335
        %v360 = vmul.f32 %v352, %v336
        %v361 = vmul.f32 %v353, %v337
        %v362 = vmul.f32 %v354, %v338
        %v363 = vadd.f32 %v355, 1.4214138
        %v364 = vadd.f32 %v356, 1.4214138
        %v365 = vadd.f32 %v357, 1.4214138
        %v366 = vadd.f32 %v358, 1.4214138
        %v367 = vadd.f32 %v359, 1.4214138
        %v368 = vadd.f32 %v360, 1.4214138
        %v369 = vadd.f32 %v361, 1.4214138
        %v370 = vadd.f32 %v362, 1.4214138
        %v371 = vmul.f32 %v363, %v331
        %v372 = vmul.f32 %v364, %v332
        %v373 = vmul.f32 %v365, %v333
        %v374 = vmul.f32 %v366, %v334
        %v375 = vmul.f32 %v367, %v335
        %v376 = vmul.f32 %v368, %v336
        %v377 = vmul.f32 %v369, %v337
        %v378 = vmul.f32 %v370, %v338
        %v379 = vadd.f32 %v371, -0.28449672
        %v380 = vadd.f32 %v372, -0.28449672
        %v381 = vadd.f32 %v373, -0.28449672
        %v382 = vadd.f32 %v374, -0.28449672
        %v383 = vadd.f32 %v375, -0.28449672
        %v384 = vadd.f32 %v376, -0.28449672
        %v385 = vadd.f32 %v377, -0.28449672
        %v386 = vadd.f32 %v378, -0.28449672
        %v387 = vmul.f32 %v379, %v331
        %v388 = vmul.f32 %v380, %v332
        %v389 = vmul.f32 %v381, %v333
        %v390 = vmul.f32 %v382, %v334
        %v391 = vmul.f32 %v383, %v335
        %v392 = vmul.f32 %v384, %v336
        %v393 = vmul.f32 %v385, %v337
        %v394 = vmul.f32 %v386, %v338
        %v395 = vadd.f32 %v387, 0.2548296
        %v396 = vadd.f32 %v388, 0.2548296
        %v397 = vadd.f32 %v389, 0.2548296
        %v398 = vadd.f32 %v390, 0.2548296
        %v399 = vadd.f32 %v391, 0.2548296
        %v400 = vadd.f32 %v392, 0.2548296
        %v401 = vadd.f32 %v393, 0.2548296
        %v402 = vadd.f32 %v394, 0.2548296
        %v403 = vmul.f32 %v395, %v331
        %v404 = vmul.f32 %v396, %v332
        %v405 = vmul.f32 %v397, %v333
        %v406 = vmul.f32 %v398, %v334
        %v407 = vmul.f32 %v399, %v335
        %v408 = vmul.f32 %v400, %v336
        %v409 = vmul.f32 %v401, %v337
        %v410 = vmul.f32 %v402, %v338
        %v411 = vsub.f32 0.0, %v307
        %v412 = vsub.f32 0.0, %v308
        %v413 = vsub.f32 0.0, %v309
        %v414 = vsub.f32 0.0, %v310
        %v415 = vsub.f32 0.0, %v311
        %v416 = vsub.f32 0.0, %v312
        %v417 = vsub.f32 0.0, %v313
        %v418 = vsub.f32 0.0, %v314
        %v419 = vmul.f32 %v411, %v307
        %v420 = vmul.f32 %v412, %v308
        %v421 = vmul.f32 %v413, %v309
        %v422 = vmul.f32 %v414, %v310
        %v423 = vmul.f32 %v415, %v311
        %v424 = vmul.f32 %v416, %v312
        %v425 = vmul.f32 %v417, %v313
        %v426 = vmul.f32 %v418, %v314
        %v427 = vmul.f32 %v419, 1.442695
        %v428 = vpow.pop %v427
        %v429 = vmul.f32 %v420, 1.442695
        %v430 = vpow.pop %v429
        %v431 = vmul.f32 %v421, 1.442695
        %v432 = vpow.pop %v431
        %v433 = vmul.f32 %v422, 1.442695
        %v434 = vpow.pop %v433
        %v435 = vmul.f32 %v423, 1.442695
        %v436 = vpow.pop %v435
        %v437 = vmul.f32 %v424, 1.442695
        %v438 = vpow.pop %v437
        %v439 = vmul.f32 %v425, 1.442695
        %v440 = vpow.pop %v439
        %v441 = vmul.f32 %v426, 1.442695
        %v442 = vpow.pop %v441
        %v443 = vmul.f32 %v403, %v428
        %v444 = vmul.f32 %v404, %v430
        %v445 = vmul.f32 %v405, %v432
        %v446 = vmul.f32 %v406, %v434
        %v447 = vmul.f32 %v407, %v436
        %v448 = vmul.f32 %v408, %v438
        %v449 = vmul.f32 %v409, %v440
        %v450 = vmul.f32 %v410, %v442
        %v451 = vsub.f32 1.0, %v443
        %v452 = vsub.f32 1.0, %v444
        %v453 = vsub.f32 1.0, %v445
        %v454 = vsub.f32 1.0, %v446
        %v455 = vsub.f32 1.0, %v447
        %v456 = vsub.f32 1.0, %v448
        %v457 = vsub.f32 1.0, %v449
        %v458 = vsub.f32 1.0, %v450
        %v459 = vmul.f32 %v299, %v451
        %v460 = vmul.f32 %v300, %v452
        %v461 = vmul.f32 %v301, %v453
        %v462 = vmul.f32 %v302, %v454
        %v463 = vmul.f32 %v303, %v455
        %v464 = vmul.f32 %v304, %v456
        %v465 = vmul.f32 %v305, %v457
        %v466 = vmul.f32 %v306, %v458
        %v467 = vadd.f32 %v459, 1.0
        %v468 = vadd.f32 %v460, 1.0
        %v469 = vadd.f32 %v461, 1.0
        %v470 = vadd.f32 %v462, 1.0
        %v471 = vadd.f32 %v463, 1.0
        %v472 = vadd.f32 %v464, 1.0
        %v473 = vadd.f32 %v465, 1.0
        %v474 = vadd.f32 %v466, 1.0
        %v475 = vmul.f32 %v275, %v467
        %v476 = vmul.f32 %v276, %v468
        %v477 = vmul.f32 %v277, %v469
        %v478 = vmul.f32 %v278, %v470
        %v479 = vmul.f32 %v279, %v471
        %v480 = vmul.f32 %v280, %v472
        %v481 = vmul.f32 %v281, %v473
        %v482 = vmul.f32 %v282, %v474
        %v483 = vld [vmem:[%s1] sm:$0xff]
        %v484 = vld [vmem:[%s1 + $0x8] sm:$0xff]
        %v485 = vld [vmem:[%s1 + $0x10] sm:$0xff]
        %v486 = vld [vmem:[%s1 + $0x18] sm:$0xff]
        %v487 = vld [vmem:[%s1 + $0x20] sm:$0xf]
        %vm488 = vcmp.ge.f32.partialorder %v267, -2.2
        %vm489 = vcmp.ge.f32.partialorder %v268, -2.2
        %vm490 = vcmp.ge.f32.partialorder %v269, -2.2
        %vm491 = vcmp.ge.f32.partialorder %v270, -2.2
        %vm492 = vcmp.ge.f32.partialorder %v271, -2.2
        %vm493 = vcmp.ge.f32.partialorder %v272, -2.2
        %vm494 = vcmp.ge.f32.partialorder %v273, -2.2
        %vm495 = vcmp.ge.f32.partialorder %v274, -2.2
        %v496 = vsel %vm488, 1, 0
        %v497 = vsel %vm489, 1, 0
        %v498 = vsel %vm490, 1, 0
        %v499 = vsel %vm491, 1, 0
        %v500 = vsel %vm492, 1, 0
        %v501 = vsel %vm493, 1, 0
        %v502 = vsel %vm494, 1, 0
        %v503 = vsel %vm495, 1, 0
        %v504 = vcvt.s32.f32 %v496
        %v505 = vcvt.s32.f32 %v497
        %v506 = vcvt.s32.f32 %v498
        %v507 = vcvt.s32.f32 %v499
        %v508 = vcvt.s32.f32 %v500
        %v509 = vcvt.s32.f32 %v501
        %v510 = vcvt.s32.f32 %v502
        %v511 = vcvt.s32.f32 %v503
        %vm512 = vcmp.ge.f32.partialorder %v267, -1.8
        %vm513 = vcmp.ge.f32.partialorder %v268, -1.8
        %vm514 = vcmp.ge.f32.partialorder %v269, -1.8
        %vm515 = vcmp.ge.f32.partialorder %v270, -1.8
        %vm516 = vcmp.ge.f32.partialorder %v271, -1.8
        %vm517 = vcmp.ge.f32.partialorder %v272, -1.8
        %vm518 = vcmp.ge.f32.partialorder %v273, -1.8
        %vm519 = vcmp.ge.f32.partialorder %v274, -1.8
        %v520 = vsel %vm512, 1, 0
        %v521 = vsel %vm513, 1, 0
        %v522 = vsel %vm514, 1, 0
        %v523 = vsel %vm515, 1, 0
        %v524 = vsel %vm516, 1, 0
        %v525 = vsel %vm517, 1, 0
        %v526 = vsel %vm518, 1, 0
        %v527 = vsel %vm519, 1, 0
        %v528 = vcvt.s32.f32 %v520
        %v529 = vcvt.s32.f32 %v521
        %v530 = vcvt.s32.f32 %v522
        %v531 = vcvt.s32.f32 %v523
        %v532 = vcvt.s32.f32 %v524
        %v533 = vcvt.s32.f32 %v525
        %v534 = vcvt.s32.f32 %v526
        %v535 = vcvt.s32.f32 %v527
        %vm536 = vcmp.ge.f32.partialorder %v267, -1.4
        %vm537 = vcmp.ge.f32.partialorder %v268, -1.4
        %vm538 = vcmp.ge.f32.partialorder %v269, -1.4
        %vm539 = vcmp.ge.f32.partialorder %v270, -1.4
        %vm540 = vcmp.ge.f32.partialorder %v271, -1.4
        %vm541 = vcmp.ge.f32.partialorder %v272, -1.4
        %vm542 = vcmp.ge.f32.partialorder %v273, -1.4
        %vm543 = vcmp.ge.f32.partialorder %v274, -1.4
        %v544 = vsel %vm536, 1, 0
        %v545 = vsel %vm537, 1, 0
        %v546 = vsel %vm538, 1, 0
        %v547 = vsel %vm539, 1, 0
        %v548 = vsel %vm540, 1, 0
        %v549 = vsel %vm541, 1, 0
        %v550 = vsel %vm542, 1, 0
        %v551 = vsel %vm543, 1, 0
        %v552 = vcvt.s32.f32 %v544
        %v553 = vcvt.s32.f32 %v545
        %v554 = vcvt.s32.f32 %v546
        %v555 = vcvt.s32.f32 %v547
        %v556 = vcvt.s32.f32 %v548
        %v557 = vcvt.s32.f32 %v549
        %v558 = vcvt.s32.f32 %v550
        %v559 = vcvt.s32.f32 %v551
        %vm560 = vcmp.ge.f32.partialorder %v267, -1.0
        %vm561 = vcmp.ge.f32.partialorder %v268, -1.0
        %vm562 = vcmp.ge.f32.partialorder %v269, -1.0
        %vm563 = vcmp.ge.f32.partialorder %v270, -1.0
        %vm564 = vcmp.ge.f32.partialorder %v271, -1.0
        %vm565 = vcmp.ge.f32.partialorder %v272, -1.0
        %vm566 = vcmp.ge.f32.partialorder %v273, -1.0
        %vm567 = vcmp.ge.f32.partialorder %v274, -1.0
        %v568 = vsel %vm560, 1, 0
        %v569 = vsel %vm561, 1, 0
        %v570 = vsel %vm562, 1, 0
        %v571 = vsel %vm563, 1, 0
        %v572 = vsel %vm564, 1, 0
        %v573 = vsel %vm565, 1, 0
        %v574 = vsel %vm566, 1, 0
        %v575 = vsel %vm567, 1, 0
        %v576 = vcvt.s32.f32 %v568
        %v577 = vcvt.s32.f32 %v569
        %v578 = vcvt.s32.f32 %v570
        %v579 = vcvt.s32.f32 %v571
        %v580 = vcvt.s32.f32 %v572
        %v581 = vcvt.s32.f32 %v573
        %v582 = vcvt.s32.f32 %v574
        %v583 = vcvt.s32.f32 %v575
        %vm584 = vcmp.ge.f32.partialorder %v267, -0.6
        %vm585 = vcmp.ge.f32.partialorder %v268, -0.6
        %vm586 = vcmp.ge.f32.partialorder %v269, -0.6
        %vm587 = vcmp.ge.f32.partialorder %v270, -0.6
        %vm588 = vcmp.ge.f32.partialorder %v271, -0.6
        %vm589 = vcmp.ge.f32.partialorder %v272, -0.6
        %vm590 = vcmp.ge.f32.partialorder %v273, -0.6
        %vm591 = vcmp.ge.f32.partialorder %v274, -0.6
        %v592 = vsel %vm584, 1, 0
        %v593 = vsel %vm585, 1, 0
        %v594 = vsel %vm586, 1, 0
        %v595 = vsel %vm587, 1, 0
        %v596 = vsel %vm588, 1, 0
        %v597 = vsel %vm589, 1, 0
        %v598 = vsel %vm590, 1, 0
        %v599 = vsel %vm591, 1, 0
        %v600 = vcvt.s32.f32 %v592
        %v601 = vcvt.s32.f32 %v593
        %v602 = vcvt.s32.f32 %v594
        %v603 = vcvt.s32.f32 %v595
        %v604 = vcvt.s32.f32 %v596
        %v605 = vcvt.s32.f32 %v597
        %v606 = vcvt.s32.f32 %v598
        %v607 = vcvt.s32.f32 %v599
        %vm608 = vcmp.ge.f32.partialorder %v267, -0.2
        %vm609 = vcmp.ge.f32.partialorder %v268, -0.2
        %vm610 = vcmp.ge.f32.partialorder %v269, -0.2
        %vm611 = vcmp.ge.f32.partialorder %v270, -0.2
        %vm612 = vcmp.ge.f32.partialorder %v271, -0.2
        %vm613 = vcmp.ge.f32.partialorder %v272, -0.2
        %vm614 = vcmp.ge.f32.partialorder %v273, -0.2
        %vm615 = vcmp.ge.f32.partialorder %v274, -0.2
        %v616 = vsel %vm608, 1, 0
        %v617 = vsel %vm609, 1, 0
        %v618 = vsel %vm610, 1, 0
        %v619 = vsel %vm611, 1, 0
        %v620 = vsel %vm612, 1, 0
        %v621 = vsel %vm613, 1, 0
        %v622 = vsel %vm614, 1, 0
        %v623 = vsel %vm615, 1, 0
        %v624 = vcvt.s32.f32 %v616
        %v625 = vcvt.s32.f32 %v617
        %v626 = vcvt.s32.f32 %v618
        %v627 = vcvt.s32.f32 %v619
        %v628 = vcvt.s32.f32 %v620
        %v629 = vcvt.s32.f32 %v621
        %v630 = vcvt.s32.f32 %v622
        %v631 = vcvt.s32.f32 %v623
        %vm632 = vcmp.ge.f32.partialorder %v267, 0.2
        %vm633 = vcmp.ge.f32.partialorder %v268, 0.2
        %vm634 = vcmp.ge.f32.partialorder %v269, 0.2
        %vm635 = vcmp.ge.f32.partialorder %v270, 0.2
        %vm636 = vcmp.ge.f32.partialorder %v271, 0.2
        %vm637 = vcmp.ge.f32.partialorder %v272, 0.2
        %vm638 = vcmp.ge.f32.partialorder %v273, 0.2
        %vm639 = vcmp.ge.f32.partialorder %v274, 0.2
        %v640 = vsel %vm632, 1, 0
        %v641 = vsel %vm633, 1, 0
        %v642 = vsel %vm634, 1, 0
        %v643 = vsel %vm635, 1, 0
        %v644 = vsel %vm636, 1, 0
        %v645 = vsel %vm637, 1, 0
        %v646 = vsel %vm638, 1, 0
        %v647 = vsel %vm639, 1, 0
        %v648 = vcvt.s32.f32 %v640
        %v649 = vcvt.s32.f32 %v641
        %v650 = vcvt.s32.f32 %v642
        %v651 = vcvt.s32.f32 %v643
        %v652 = vcvt.s32.f32 %v644
        %v653 = vcvt.s32.f32 %v645
        %v654 = vcvt.s32.f32 %v646
        %v655 = vcvt.s32.f32 %v647
        %vm656 = vcmp.ge.f32.partialorder %v267, 0.6
        %vm657 = vcmp.ge.f32.partialorder %v268, 0.6
        %vm658 = vcmp.ge.f32.partialorder %v269, 0.6
        %vm659 = vcmp.ge.f32.partialorder %v270, 0.6
        %vm660 = vcmp.ge.f32.partialorder %v271, 0.6
        %vm661 = vcmp.ge.f32.partialorder %v272, 0.6
        %vm662 = vcmp.ge.f32.partialorder %v273, 0.6
        %vm663 = vcmp.ge.f32.partialorder %v274, 0.6
        %v664 = vsel %vm656, 1, 0
        %v665 = vsel %vm657, 1, 0
        %v666 = vsel %vm658, 1, 0
        %v667 = vsel %vm659, 1, 0
        %v668 = vsel %vm660, 1, 0
        %v669 = vsel %vm661, 1, 0
        %v670 = vsel %vm662, 1, 0
        %v671 = vsel %vm663, 1, 0
        %v672 = vcvt.s32.f32 %v664
        %v673 = vcvt.s32.f32 %v665
        %v674 = vcvt.s32.f32 %v666
        %v675 = vcvt.s32.f32 %v667
        %v676 = vcvt.s32.f32 %v668
        %v677 = vcvt.s32.f32 %v669
        %v678 = vcvt.s32.f32 %v670
        %v679 = vcvt.s32.f32 %v671
        %vm680 = vcmp.ge.f32.partialorder %v267, 1.0
        %vm681 = vcmp.ge.f32.partialorder %v268, 1.0
        %vm682 = vcmp.ge.f32.partialorder %v269, 1.0
        %vm683 = vcmp.ge.f32.partialorder %v270, 1.0
        %vm684 = vcmp.ge.f32.partialorder %v271, 1.0
        %vm685 = vcmp.ge.f32.partialorder %v272, 1.0
        %vm686 = vcmp.ge.f32.partialorder %v273, 1.0
        %vm687 = vcmp.ge.f32.partialorder %v274, 1.0
        %v688 = vsel %vm680, 1, 0
        %v689 = vsel %vm681, 1, 0
        %v690 = vsel %vm682, 1, 0
        %v691 = vsel %vm683, 1, 0
        %v692 = vsel %vm684, 1, 0
        %v693 = vsel %vm685, 1, 0
        %v694 = vsel %vm686, 1, 0
        %v695 = vsel %vm687, 1, 0
        %v696 = vcvt.s32.f32 %v688
        %v697 = vcvt.s32.f32 %v689
        %v698 = vcvt.s32.f32 %v690
        %v699 = vcvt.s32.f32 %v691
        %v700 = vcvt.s32.f32 %v692
        %v701 = vcvt.s32.f32 %v693
        %v702 = vcvt.s32.f32 %v694
        %v703 = vcvt.s32.f32 %v695
        %vm704 = vcmp.ge.f32.partialorder %v267, 1.4
        %vm705 = vcmp.ge.f32.partialorder %v268, 1.4
        %vm706 = vcmp.ge.f32.partialorder %v269, 1.4
        %vm707 = vcmp.ge.f32.partialorder %v270, 1.4
        %vm708 = vcmp.ge.f32.partialorder %v271, 1.4
        %vm709 = vcmp.ge.f32.partialorder %v272, 1.4
        %vm710 = vcmp.ge.f32.partialorder %v273, 1.4
        %vm711 = vcmp.ge.f32.partialorder %v274, 1.4
        %v712 = vsel %vm704, 1, 0
        %v713 = vsel %vm705, 1, 0
        %v714 = vsel %vm706, 1, 0
        %v715 = vsel %vm707, 1, 0
        %v716 = vsel %vm708, 1, 0
        %v717 = vsel %vm709, 1, 0
        %v718 = vsel %vm710, 1, 0
        %v719 = vsel %vm711, 1, 0
        %v720 = vcvt.s32.f32 %v712
        %v721 = vcvt.s32.f32 %v713
        %v722 = vcvt.s32.f32 %v714
        %v723 = vcvt.s32.f32 %v715
        %v724 = vcvt.s32.f32 %v716
        %v725 = vcvt.s32.f32 %v717
        %v726 = vcvt.s32.f32 %v718
        %v727 = vcvt.s32.f32 %v719
        %vm728 = vcmp.ge.f32.partialorder %v267, 1.8
        %vm729 = vcmp.ge.f32.partialorder %v268, 1.8
        %vm730 = vcmp.ge.f32.partialorder %v269, 1.8
        %vm731 = vcmp.ge.f32.partialorder %v270, 1.8
        %vm732 = vcmp.ge.f32.partialorder %v271, 1.8
        %vm733 = vcmp.ge.f32.partialorder %v272, 1.8
        %vm734 = vcmp.ge.f32.partialorder %v273, 1.8
        %vm735 = vcmp.ge.f32.partialorder %v274, 1.8
        %v736 = vsel %vm728, 1, 0
        %v737 = vsel %vm729, 1, 0
        %v738 = vsel %vm730, 1, 0
        %v739 = vsel %vm731, 1, 0
        %v740 = vsel %vm732, 1, 0
        %v741 = vsel %vm733, 1, 0
        %v742 = vsel %vm734, 1, 0
        %v743 = vsel %vm735, 1, 0
        %v744 = vcvt.s32.f32 %v736
        %v745 = vcvt.s32.f32 %v737
        %v746 = vcvt.s32.f32 %v738
        %v747 = vcvt.s32.f32 %v739
        %v748 = vcvt.s32.f32 %v740
        %v749 = vcvt.s32.f32 %v741
        %v750 = vcvt.s32.f32 %v742
        %v751 = vcvt.s32.f32 %v743
        %vm752 = vcmp.ge.f32.partialorder %v267, 2.2
        %vm753 = vcmp.ge.f32.partialorder %v268, 2.2
        %vm754 = vcmp.ge.f32.partialorder %v269, 2.2
        %vm755 = vcmp.ge.f32.partialorder %v270, 2.2
        %vm756 = vcmp.ge.f32.partialorder %v271, 2.2
        %vm757 = vcmp.ge.f32.partialorder %v272, 2.2
        %vm758 = vcmp.ge.f32.partialorder %v273, 2.2
        %vm759 = vcmp.ge.f32.partialorder %v274, 2.2
        %v760 = vsel %vm752, 1, 0
        %v761 = vsel %vm753, 1, 0
        %v762 = vsel %vm754, 1, 0
        %v763 = vsel %vm755, 1, 0
        %v764 = vsel %vm756, 1, 0
        %v765 = vsel %vm757, 1, 0
        %v766 = vsel %vm758, 1, 0
        %v767 = vsel %vm759, 1, 0
        %v768 = vcvt.s32.f32 %v760
        %v769 = vcvt.s32.f32 %v761
        %v770 = vcvt.s32.f32 %v762
        %v771 = vcvt.s32.f32 %v763
        %v772 = vcvt.s32.f32 %v764
        %v773 = vcvt.s32.f32 %v765
        %v774 = vcvt.s32.f32 %v766
        %v775 = vcvt.s32.f32 %v767
        %v776 = vsub.f32 %v504, %v528
        %v777 = vsub.f32 %v505, %v529
        %v778 = vsub.f32 %v506, %v530
        %v779 = vsub.f32 %v507, %v531
        %v780 = vsub.f32 %v508, %v532
        %v781 = vsub.f32 %v509, %v533
        %v782 = vsub.f32 %v510, %v534
        %v783 = vsub.f32 %v511, %v535
        %v784 = vsub.f32 %v528, %v552
        %v785 = vsub.f32 %v529, %v553
        %v786 = vsub.f32 %v530, %v554
        %v787 = vsub.f32 %v531, %v555
        %v788 = vsub.f32 %v532, %v556
        %v789 = vsub.f32 %v533, %v557
        %v790 = vsub.f32 %v534, %v558
        %v791 = vsub.f32 %v535, %v559
        %v792 = vsub.f32 %v552, %v576
        %v793 = vsub.f32 %v553, %v577
        %v794 = vsub.f32 %v554, %v578
        %v795 = vsub.f32 %v555, %v579
        %v796 = vsub.f32 %v556, %v580
        %v797 = vsub.f32 %v557, %v581
        %v798 = vsub.f32 %v558, %v582
        %v799 = vsub.f32 %v559, %v583
        %v800 = vsub.f32 %v576, %v600
        %v801 = vsub.f32 %v577, %v601
        %v802 = vsub.f32 %v578, %v602
        %v803 = vsub.f32 %v579, %v603
        %v804 = vsub.f32 %v580, %v604
        %v805 = vsub.f32 %v581, %v605
        %v806 = vsub.f32 %v582, %v606
        %v807 = vsub.f32 %v583, %v607
        %v808 = vsub.f32 %v600, %v624
        %v809 = vsub.f32 %v601, %v625
        %v810 = vsub.f32 %v602, %v626
        %v811 = vsub.f32 %v603, %v627
        %v812 = vsub.f32 %v604, %v628
        %v813 = vsub.f32 %v605, %v629
        %v814 = vsub.f32 %v606, %v630
        %v815 = vsub.f32 %v607, %v631
        %v816 = vsub.f32 %v624, %v648
        %v817 = vsub.f32 %v625, %v649
        %v818 = vsub.f32 %v626, %v650
        %v819 = vsub.f32 %v627, %v651
        %v820 = vsub.f32 %v628, %v652
        %v821 = vsub.f32 %v629, %v653
        %v822 = vsub.f32 %v630, %v654
        %v823 = vsub.f32 %v631, %v655
        %v824 = vsub.f32 %v648, %v672
        %v825 = vsub.f32 %v649, %v673
        %v826 = vsub.f32 %v650, %v674
        %v827 = vsub.f32 %v651, %v675
        %v828 = vsub.f32 %v652, %v676
        %v829 = vsub.f32 %v653, %v677
        %v830 = vsub.f32 %v654, %v678
        %v831 = vsub.f32 %v655, %v679
        %v832 = vsub.f32 %v672, %v696
        %v833 = vsub.f32 %v673, %v697
        %v834 = vsub.f32 %v674, %v698
        %v835 = vsub.f32 %v675, %v699
        %v836 = vsub.f32 %v676, %v700
        %v837 = vsub.f32 %v677, %v701
        %v838 = vsub.f32 %v678, %v702
        %v839 = vsub.f32 %v679, %v703
        %v840 = vsub.f32 %v696, %v720
        %v841 = vsub.f32 %v697, %v721
        %v842 = vsub.f32 %v698, %v722
        %v843 = vsub.f32 %v699, %v723
        %v844 = vsub.f32 %v700, %v724
        %v845 = vsub.f32 %v701, %v725
        %v846 = vsub.f32 %v702, %v726
        %v847 = vsub.f32 %v703, %v727
        %v848 = vsub.f32 %v720, %v744
        %v849 = vsub.f32 %v721, %v745
        %v850 = vsub.f32 %v722, %v746
        %v851 = vsub.f32 %v723, %v747
        %v852 = vsub.f32 %v724, %v748
        %v853 = vsub.f32 %v725, %v749
        %v854 = vsub.f32 %v726, %v750
        %v855 = vsub.f32 %v727, %v751
        %v856 = vsub.f32 %v744, %v768
        %v857 = vsub.f32 %v745, %v769
        %v858 = vsub.f32 %v746, %v770
        %v859 = vsub.f32 %v747, %v771
        %v860 = vsub.f32 %v748, %v772
        %v861 = vsub.f32 %v749, %v773
        %v862 = vsub.f32 %v750, %v774
        %v863 = vsub.f32 %v751, %v775
        %v864 = vsub.f32 %v267, -2.2
        %v865 = vsub.f32 %v268, -2.2
        %v866 = vsub.f32 %v269, -2.2
        %v867 = vsub.f32 %v270, -2.2
        %v868 = vsub.f32 %v271, -2.2
        %v869 = vsub.f32 %v272, -2.2
        %v870 = vsub.f32 %v273, -2.2
        %v871 = vsub.f32 %v274, -2.2
        %v872 = vmul.f32 %v864, 2.4999995
        %v873 = vmul.f32 %v865, 2.4999995
        %v874 = vmul.f32 %v866, 2.4999995
        %v875 = vmul.f32 %v867, 2.4999995
        %v876 = vmul.f32 %v868, 2.4999995
        %v877 = vmul.f32 %v869, 2.4999995
        %v878 = vmul.f32 %v870, 2.4999995
        %v879 = vmul.f32 %v871, 2.4999995
        %v880 = vmul.f32 %v872, %v776
        %v881 = vmul.f32 %v873, %v777
        %v882 = vmul.f32 %v874, %v778
        %v883 = vmul.f32 %v875, %v779
        %v884 = vmul.f32 %v876, %v780
        %v885 = vmul.f32 %v877, %v781
        %v886 = vmul.f32 %v878, %v782
        %v887 = vmul.f32 %v879, %v783
        %v888 = vsub.f32 -1.4, %v267
        %v889 = vsub.f32 -1.4, %v268
        %v890 = vsub.f32 -1.4, %v269
        %v891 = vsub.f32 -1.4, %v270
        %v892 = vsub.f32 -1.4, %v271
        %v893 = vsub.f32 -1.4, %v272
        %v894 = vsub.f32 -1.4, %v273
        %v895 = vsub.f32 -1.4, %v274
        %v896 = vmul.f32 %v888, 2.5000002
        %v897 = vmul.f32 %v889, 2.5000002
        %v898 = vmul.f32 %v890, 2.5000002
        %v899 = vmul.f32 %v891, 2.5000002
        %v900 = vmul.f32 %v892, 2.5000002
        %v901 = vmul.f32 %v893, 2.5000002
        %v902 = vmul.f32 %v894, 2.5000002
        %v903 = vmul.f32 %v895, 2.5000002
        %v904 = vmul.f32 %v896, %v784
        %v905 = vmul.f32 %v897, %v785
        %v906 = vmul.f32 %v898, %v786
        %v907 = vmul.f32 %v899, %v787
        %v908 = vmul.f32 %v900, %v788
        %v909 = vmul.f32 %v901, %v789
        %v910 = vmul.f32 %v902, %v790
        %v911 = vmul.f32 %v903, %v791
        %v912 = vadd.f32 %v880, %v904
        %v913 = vadd.f32 %v881, %v905
        %v914 = vadd.f32 %v882, %v906
        %v915 = vadd.f32 %v883, %v907
        %v916 = vadd.f32 %v884, %v908
        %v917 = vadd.f32 %v885, %v909
        %v918 = vadd.f32 %v886, %v910
        %v919 = vadd.f32 %v887, %v911
        %v920 = vsub.f32 %v267, -1.8
        %v921 = vsub.f32 %v268, -1.8
        %v922 = vsub.f32 %v269, -1.8
        %v923 = vsub.f32 %v270, -1.8
        %v924 = vsub.f32 %v271, -1.8
        %v925 = vsub.f32 %v272, -1.8
        %v926 = vsub.f32 %v273, -1.8
        %v927 = vsub.f32 %v274, -1.8
        %v928 = vmul.f32 %v920, 2.5000002
        %v929 = vmul.f32 %v921, 2.5000002
        %v930 = vmul.f32 %v922, 2.5000002
        %v931 = vmul.f32 %v923, 2.5000002
        %v932 = vmul.f32 %v924, 2.5000002
        %v933 = vmul.f32 %v925, 2.5000002
        %v934 = vmul.f32 %v926, 2.5000002
        %v935 = vmul.f32 %v927, 2.5000002
        %v936 = vmul.f32 %v928, %v784
        %v937 = vmul.f32 %v929, %v785
        %v938 = vmul.f32 %v930, %v786
        %v939 = vmul.f32 %v931, %v787
        %v940 = vmul.f32 %v932, %v788
        %v941 = vmul.f32 %v933, %v789
        %v942 = vmul.f32 %v934, %v790
        %v943 = vmul.f32 %v935, %v791
        %v944 = vsub.f32 -1.0, %v267
        %v945 = vsub.f32 -1.0, %v268
        %v946 = vsub.f32 -1.0, %v269
        %v947 = vsub.f32 -1.0, %v270
        %v948 = vsub.f32 -1.0, %v271
        %v949 = vsub.f32 -1.0, %v272
        %v950 = vsub.f32 -1.0, %v273
        %v951 = vsub.f32 -1.0, %v274
        %v952 = vmul.f32 %v944, 2.5000002
        %v953 = vmul.f32 %v945, 2.5000002
        %v954 = vmul.f32 %v946, 2.5000002
        %v955 = vmul.f32 %v947, 2.5000002
        %v956 = vmul.f32 %v948, 2.5000002
        %v957 = vmul.f32 %v949, 2.5000002
        %v958 = vmul.f32 %v950, 2.5000002
        %v959 = vmul.f32 %v951, 2.5000002
        %v960 = vmul.f32 %v952, %v792
        %v961 = vmul.f32 %v953, %v793
        %v962 = vmul.f32 %v954, %v794
        %v963 = vmul.f32 %v955, %v795
        %v964 = vmul.f32 %v956, %v796
        %v965 = vmul.f32 %v957, %v797
        %v966 = vmul.f32 %v958, %v798
        %v967 = vmul.f32 %v959, %v799
        %v968 = vadd.f32 %v936, %v960
        %v969 = vadd.f32 %v937, %v961
        %v970 = vadd.f32 %v938, %v962
        %v971 = vadd.f32 %v939, %v963
        %v972 = vadd.f32 %v940, %v964
        %v973 = vadd.f32 %v941, %v965
        %v974 = vadd.f32 %v942, %v966
        %v975 = vadd.f32 %v943, %v967
        %v976 = vsub.f32 %v267, -1.4
        %v977 = vsub.f32 %v268, -1.4
        %v978 = vsub.f32 %v269, -1.4
        %v979 = vsub.f32 %v270, -1.4
        %v980 = vsub.f32 %v271, -1.4
        %v981 = vsub.f32 %v272, -1.4
        %v982 = vsub.f32 %v273, -1.4
        %v983 = vsub.f32 %v274, -1.4
        %v984 = vmul.f32 %v976, 2.5000002
        %v985 = vmul.f32 %v977, 2.5000002
        %v986 = vmul.f32 %v978, 2.5000002
        %v987 = vmul.f32 %v979, 2.5000002
        %v988 = vmul.f32 %v980, 2.5000002
        %v989 = vmul.f32 %v981, 2.5000002
        %v990 = vmul.f32 %v982, 2.5000002
        %v991 = vmul.f32 %v983, 2.5000002
        %v992 = vmul.f32 %v984, %v792
        %v993 = vmul.f32 %v985, %v793
        %v994 = vmul.f32 %v986, %v794
        %v995 = vmul.f32 %v987, %v795
        %v996 = vmul.f32 %v988, %v796
        %v997 = vmul.f32 %v989, %v797
        %v998 = vmul.f32 %v990, %v798
        %v999 = vmul.f32 %v991, %v799
        %v1000 = vsub.f32 -0.6, %v267
        %v1001 = vsub.f32 -0.6, %v268
        %v1002 = vsub.f32 -0.6, %v269
        %v1003 = vsub.f32 -0.6, %v270
        %v1004 = vsub.f32 -0.6, %v271
        %v1005 = vsub.f32 -0.6, %v272
        %v1006 = vsub.f32 -0.6, %v273
        %v1007 = vsub.f32 -0.6, %v274
        %v1008 = vmul.f32 %v1000, 2.5000002
        %v1009 = vmul.f32 %v1001, 2.5000002
        %v1010 = vmul.f32 %v1002, 2.5000002
        %v1011 = vmul.f32 %v1003, 2.5000002
        %v1012 = vmul.f32 %v1004, 2.5000002
        %v1013 = vmul.f32 %v1005, 2.5000002
        %v1014 = vmul.f32 %v1006, 2.5000002
        %v1015 = vmul.f32 %v1007, 2.5000002
        %v1016 = vmul.f32 %v1008, %v800
        %v1017 = vmul.f32 %v1009, %v801
        %v1018 = vmul.f32 %v1010, %v802
        %v1019 = vmul.f32 %v1011, %v803
        %v1020 = vmul.f32 %v1012, %v804
        %v1021 = vmul.f32 %v1013, %v805
        %v1022 = vmul.f32 %v1014, %v806
        %v1023 = vmul.f32 %v1015, %v807
        %v1024 = vadd.f32 %v992, %v1016
        %v1025 = vadd.f32 %v993, %v1017
        %v1026 = vadd.f32 %v994, %v1018
        %v1027 = vadd.f32 %v995, %v1019
        %v1028 = vadd.f32 %v996, %v1020
        %v1029 = vadd.f32 %v997, %v1021
        %v1030 = vadd.f32 %v998, %v1022
        %v1031 = vadd.f32 %v999, %v1023
        %v1032 = vsub.f32 %v267, -1.0
        %v1033 = vsub.f32 %v268, -1.0
        %v1034 = vsub.f32 %v269, -1.0
        %v1035 = vsub.f32 %v270, -1.0
        %v1036 = vsub.f32 %v271, -1.0
        %v1037 = vsub.f32 %v272, -1.0
        %v1038 = vsub.f32 %v273, -1.0
        %v1039 = vsub.f32 %v274, -1.0
        %v1040 = vmul.f32 %v1032, 2.5000002
        %v1041 = vmul.f32 %v1033, 2.5000002
        %v1042 = vmul.f32 %v1034, 2.5000002
        %v1043 = vmul.f32 %v1035, 2.5000002
        %v1044 = vmul.f32 %v1036, 2.5000002
        %v1045 = vmul.f32 %v1037, 2.5000002
        %v1046 = vmul.f32 %v1038, 2.5000002
        %v1047 = vmul.f32 %v1039, 2.5000002
        %v1048 = vmul.f32 %v1040, %v800
        %v1049 = vmul.f32 %v1041, %v801
        %v1050 = vmul.f32 %v1042, %v802
        %v1051 = vmul.f32 %v1043, %v803
        %v1052 = vmul.f32 %v1044, %v804
        %v1053 = vmul.f32 %v1045, %v805
        %v1054 = vmul.f32 %v1046, %v806
        %v1055 = vmul.f32 %v1047, %v807
        %v1056 = vsub.f32 -0.2, %v267
        %v1057 = vsub.f32 -0.2, %v268
        %v1058 = vsub.f32 -0.2, %v269
        %v1059 = vsub.f32 -0.2, %v270
        %v1060 = vsub.f32 -0.2, %v271
        %v1061 = vsub.f32 -0.2, %v272
        %v1062 = vsub.f32 -0.2, %v273
        %v1063 = vsub.f32 -0.2, %v274
        %v1064 = vmul.f32 %v1056, 2.4999998
        %v1065 = vmul.f32 %v1057, 2.4999998
        %v1066 = vmul.f32 %v1058, 2.4999998
        %v1067 = vmul.f32 %v1059, 2.4999998
        %v1068 = vmul.f32 %v1060, 2.4999998
        %v1069 = vmul.f32 %v1061, 2.4999998
        %v1070 = vmul.f32 %v1062, 2.4999998
        %v1071 = vmul.f32 %v1063, 2.4999998
        %v1072 = vmul.f32 %v1064, %v808
        %v1073 = vmul.f32 %v1065, %v809
        %v1074 = vmul.f32 %v1066, %v810
        %v1075 = vmul.f32 %v1067, %v811
        %v1076 = vmul.f32 %v1068, %v812
        %v1077 = vmul.f32 %v1069, %v813
        %v1078 = vmul.f32 %v1070, %v814
        %v1079 = vmul.f32 %v1071, %v815
        %v1080 = vadd.f32 %v1048, %v1072
        %v1081 = vadd.f32 %v1049, %v1073
        %v1082 = vadd.f32 %v1050, %v1074
        %v1083 = vadd.f32 %v1051, %v1075
        %v1084 = vadd.f32 %v1052, %v1076
        %v1085 = vadd.f32 %v1053, %v1077
        %v1086 = vadd.f32 %v1054, %v1078
        %v1087 = vadd.f32 %v1055, %v1079
        %v1088 = vsub.f32 %v267, -0.6
        %v1089 = vsub.f32 %v268, -0.6
        %v1090 = vsub.f32 %v269, -0.6
        %v1091 = vsub.f32 %v270, -0.6
        %v1092 = vsub.f32 %v271, -0.6
        %v1093 = vsub.f32 %v272, -0.6
        %v1094 = vsub.f32 %v273, -0.6
        %v1095 = vsub.f32 %v274, -0.6
        %v1096 = vmul.f32 %v1088, 2.4999998
        %v1097 = vmul.f32 %v1089, 2.4999998
        %v1098 = vmul.f32 %v1090, 2.4999998
        %v1099 = vmul.f32 %v1091, 2.4999998
        %v1100 = vmul.f32 %v1092, 2.4999998
        %v1101 = vmul.f32 %v1093, 2.4999998
        %v1102 = vmul.f32 %v1094, 2.4999998
        %v1103 = vmul.f32 %v1095, 2.4999998
        %v1104 = vmul.f32 %v1096, %v808
        %v1105 = vmul.f32 %v1097, %v809
        %v1106 = vmul.f32 %v1098, %v810
        %v1107 = vmul.f32 %v1099, %v811
        %v1108 = vmul.f32 %v1100, %v812
        %v1109 = vmul.f32 %v1101, %v813
        %v1110 = vmul.f32 %v1102, %v814
        %v1111 = vmul.f32 %v1103, %v815
        %v1112 = vsub.f32 0.2, %v267
        %v1113 = vsub.f32 0.2, %v268
        %v1114 = vsub.f32 0.2, %v269
        %v1115 = vsub.f32 0.2, %v270
        %v1116 = vsub.f32 0.2, %v271
        %v1117 = vsub.f32 0.2, %v272
        %v1118 = vsub.f32 0.2, %v273
        %v1119 = vsub.f32 0.2, %v274
        %v1120 = vmul.f32 %v1112, 2.5
        %v1121 = vmul.f32 %v1113, 2.5
        %v1122 = vmul.f32 %v1114, 2.5
        %v1123 = vmul.f32 %v1115, 2.5
        %v1124 = vmul.f32 %v1116, 2.5
        %v1125 = vmul.f32 %v1117, 2.5
        %v1126 = vmul.f32 %v1118, 2.5
        %v1127 = vmul.f32 %v1119, 2.5
        %v1128 = vmul.f32 %v1120, %v816
        %v1129 = vmul.f32 %v1121, %v817
        %v1130 = vmul.f32 %v1122, %v818
        %v1131 = vmul.f32 %v1123, %v819
        %v1132 = vmul.f32 %v1124, %v820
        %v1133 = vmul.f32 %v1125, %v821
        %v1134 = vmul.f32 %v1126, %v822
        %v1135 = vmul.f32 %v1127, %v823
        %v1136 = vadd.f32 %v1104, %v1128
        %v1137 = vadd.f32 %v1105, %v1129
        %v1138 = vadd.f32 %v1106, %v1130
        %v1139 = vadd.f32 %v1107, %v1131
        %v1140 = vadd.f32 %v1108, %v1132
        %v1141 = vadd.f32 %v1109, %v1133
        %v1142 = vadd.f32 %v1110, %v1134
        %v1143 = vadd.f32 %v1111, %v1135
        %v1144 = vsub.f32 %v267, -0.2
        %v1145 = vsub.f32 %v268, -0.2
        %v1146 = vsub.f32 %v269, -0.2
        %v1147 = vsub.f32 %v270, -0.2
        %v1148 = vsub.f32 %v271, -0.2
        %v1149 = vsub.f32 %v272, -0.2
        %v1150 = vsub.f32 %v273, -0.2
        %v1151 = vsub.f32 %v274, -0.2
        %v1152 = vmul.f32 %v1144, 2.5
        %v1153 = vmul.f32 %v1145, 2.5
        %v1154 = vmul.f32 %v1146, 2.5
        %v1155 = vmul.f32 %v1147, 2.5
        %v1156 = vmul.f32 %v1148, 2.5
        %v1157 = vmul.f32 %v1149, 2.5
        %v1158 = vmul.f32 %v1150, 2.5
        %v1159 = vmul.f32 %v1151, 2.5
        %v1160 = vmul.f32 %v1152, %v816
        %v1161 = vmul.f32 %v1153, %v817
        %v1162 = vmul.f32 %v1154, %v818
        %v1163 = vmul.f32 %v1155, %v819
        %v1164 = vmul.f32 %v1156, %v820
        %v1165 = vmul.f32 %v1157, %v821
        %v1166 = vmul.f32 %v1158, %v822
        %v1167 = vmul.f32 %v1159, %v823
        %v1168 = vsub.f32 0.6, %v267
        %v1169 = vsub.f32 0.6, %v268
        %v1170 = vsub.f32 0.6, %v269
        %v1171 = vsub.f32 0.6, %v270
        %v1172 = vsub.f32 0.6, %v271
        %v1173 = vsub.f32 0.6, %v272
        %v1174 = vsub.f32 0.6, %v273
        %v1175 = vsub.f32 0.6, %v274
        %v1176 = vmul.f32 %v1168, 2.4999998
        %v1177 = vmul.f32 %v1169, 2.4999998
        %v1178 = vmul.f32 %v1170, 2.4999998
        %v1179 = vmul.f32 %v1171, 2.4999998
        %v1180 = vmul.f32 %v1172, 2.4999998
        %v1181 = vmul.f32 %v1173, 2.4999998
        %v1182 = vmul.f32 %v1174, 2.4999998
        %v1183 = vmul.f32 %v1175, 2.4999998
        %v1184 = vmul.f32 %v1176, %v824
        %v1185 = vmul.f32 %v1177, %v825
        %v1186 = vmul.f32 %v1178, %v826
        %v1187 = vmul.f32 %v1179, %v827
        %v1188 = vmul.f32 %v1180, %v828
        %v1189 = vmul.f32 %v1181, %v829
        %v1190 = vmul.f32 %v1182, %v830
        %v1191 = vmul.f32 %v1183, %v831
        %v1192 = vadd.f32 %v1160, %v1184
        %v1193 = vadd.f32 %v1161, %v1185
        %v1194 = vadd.f32 %v1162, %v1186
        %v1195 = vadd.f32 %v1163, %v1187
        %v1196 = vadd.f32 %v1164, %v1188
        %v1197 = vadd.f32 %v1165, %v1189
        %v1198 = vadd.f32 %v1166, %v1190
        %v1199 = vadd.f32 %v1167, %v1191
        %v1200 = vsub.f32 %v267, 0.2
        %v1201 = vsub.f32 %v268, 0.2
        %v1202 = vsub.f32 %v269, 0.2
        %v1203 = vsub.f32 %v270, 0.2
        %v1204 = vsub.f32 %v271, 0.2
        %v1205 = vsub.f32 %v272, 0.2
        %v1206 = vsub.f32 %v273, 0.2
        %v1207 = vsub.f32 %v274, 0.2
        %v1208 = vmul.f32 %v1200, 2.4999998
        %v1209 = vmul.f32 %v1201, 2.4999998
        %v1210 = vmul.f32 %v1202, 2.4999998
        %v1211 = vmul.f32 %v1203, 2.4999998
        %v1212 = vmul.f32 %v1204, 2.4999998
        %v1213 = vmul.f32 %v1205, 2.4999998
        %v1214 = vmul.f32 %v1206, 2.4999998
        %v1215 = vmul.f32 %v1207, 2.4999998
        %v1216 = vmul.f32 %v1208, %v824
        %v1217 = vmul.f32 %v1209, %v825
        %v1218 = vmul.f32 %v1210, %v826
        %v1219 = vmul.f32 %v1211, %v827
        %v1220 = vmul.f32 %v1212, %v828
        %v1221 = vmul.f32 %v1213, %v829
        %v1222 = vmul.f32 %v1214, %v830
        %v1223 = vmul.f32 %v1215, %v831
        %v1224 = vsub.f32 1.0, %v267
        %v1225 = vsub.f32 1.0, %v268
        %v1226 = vsub.f32 1.0, %v269
        %v1227 = vsub.f32 1.0, %v270
        %v1228 = vsub.f32 1.0, %v271
        %v1229 = vsub.f32 1.0, %v272
        %v1230 = vsub.f32 1.0, %v273
        %v1231 = vsub.f32 1.0, %v274
        %v1232 = vmul.f32 %v1224, 2.5000002
        %v1233 = vmul.f32 %v1225, 2.5000002
        %v1234 = vmul.f32 %v1226, 2.5000002
        %v1235 = vmul.f32 %v1227, 2.5000002
        %v1236 = vmul.f32 %v1228, 2.5000002
        %v1237 = vmul.f32 %v1229, 2.5000002
        %v1238 = vmul.f32 %v1230, 2.5000002
        %v1239 = vmul.f32 %v1231, 2.5000002
        %v1240 = vmul.f32 %v1232, %v832
        %v1241 = vmul.f32 %v1233, %v833
        %v1242 = vmul.f32 %v1234, %v834
        %v1243 = vmul.f32 %v1235, %v835
        %v1244 = vmul.f32 %v1236, %v836
        %v1245 = vmul.f32 %v1237, %v837
        %v1246 = vmul.f32 %v1238, %v838
        %v1247 = vmul.f32 %v1239, %v839
        %v1248 = vadd.f32 %v1216, %v1240
        %v1249 = vadd.f32 %v1217, %v1241
        %v1250 = vadd.f32 %v1218, %v1242
        %v1251 = vadd.f32 %v1219, %v1243
        %v1252 = vadd.f32 %v1220, %v1244
        %v1253 = vadd.f32 %v1221, %v1245
        %v1254 = vadd.f32 %v1222, %v1246
        %v1255 = vadd.f32 %v1223, %v1247
        %v1256 = vsub.f32 %v267, 0.6
        %v1257 = vsub.f32 %v268, 0.6
        %v1258 = vsub.f32 %v269, 0.6
        %v1259 = vsub.f32 %v270, 0.6
        %v1260 = vsub.f32 %v271, 0.6
        %v1261 = vsub.f32 %v272, 0.6
        %v1262 = vsub.f32 %v273, 0.6
        %v1263 = vsub.f32 %v274, 0.6
        %v1264 = vmul.f32 %v1256, 2.5000002
        %v1265 = vmul.f32 %v1257, 2.5000002
        %v1266 = vmul.f32 %v1258, 2.5000002
        %v1267 = vmul.f32 %v1259, 2.5000002
        %v1268 = vmul.f32 %v1260, 2.5000002
        %v1269 = vmul.f32 %v1261, 2.5000002
        %v1270 = vmul.f32 %v1262, 2.5000002
        %v1271 = vmul.f32 %v1263, 2.5000002
        %v1272 = vmul.f32 %v1264, %v832
        %v1273 = vmul.f32 %v1265, %v833
        %v1274 = vmul.f32 %v1266, %v834
        %v1275 = vmul.f32 %v1267, %v835
        %v1276 = vmul.f32 %v1268, %v836
        %v1277 = vmul.f32 %v1269, %v837
        %v1278 = vmul.f32 %v1270, %v838
        %v1279 = vmul.f32 %v1271, %v839
        %v1280 = vsub.f32 1.4, %v267
        %v1281 = vsub.f32 1.4, %v268
        %v1282 = vsub.f32 1.4, %v269
        %v1283 = vsub.f32 1.4, %v270
        %v1284 = vsub.f32 1.4, %v271
        %v1285 = vsub.f32 1.4, %v272
        %v1286 = vsub.f32 1.4, %v273
        %v1287 = vsub.f32 1.4, %v274
        %v1288 = vmul.f32 %v1280, 2.5000002
        %v1289 = vmul.f32 %v1281, 2.5000002
        %v1290 = vmul.f32 %v1282, 2.5000002
        %v1291 = vmul.f32 %v1283, 2.5000002
        %v1292 = vmul.f32 %v1284, 2.5000002
        %v1293 = vmul.f32 %v1285, 2.5000002
        %v1294 = vmul.f32 %v1286, 2.5000002
        %v1295 = vmul.f32 %v1287, 2.5000002
        %v1296 = vmul.f32 %v1288, %v840
        %v1297 = vmul.f32 %v1289, %v841
        %v1298 = vmul.f32 %v1290, %v842
        %v1299 = vmul.f32 %v1291, %v843
        %v1300 = vmul.f32 %v1292, %v844
        %v1301 = vmul.f32 %v1293, %v845
        %v1302 = vmul.f32 %v1294, %v846
        %v1303 = vmul.f32 %v1295, %v847
        %v1304 = vadd.f32 %v1272, %v1296
        %v1305 = vadd.f32 %v1273, %v1297
        %v1306 = vadd.f32 %v1274, %v1298
        %v1307 = vadd.f32 %v1275, %v1299
        %v1308 = vadd.f32 %v1276, %v1300
        %v1309 = vadd.f32 %v1277, %v1301
        %v1310 = vadd.f32 %v1278, %v1302
        %v1311 = vadd.f32 %v1279, %v1303
        %v1312 = vsub.f32 %v267, 1.0
        %v1313 = vsub.f32 %v268, 1.0
        %v1314 = vsub.f32 %v269, 1.0
        %v1315 = vsub.f32 %v270, 1.0
        %v1316 = vsub.f32 %v271, 1.0
        %v1317 = vsub.f32 %v272, 1.0
        %v1318 = vsub.f32 %v273, 1.0
        %v1319 = vsub.f32 %v274, 1.0
        %v1320 = vmul.f32 %v1312, 2.5000002
        %v1321 = vmul.f32 %v1313, 2.5000002
        %v1322 = vmul.f32 %v1314, 2.5000002
        %v1323 = vmul.f32 %v1315, 2.5000002
        %v1324 = vmul.f32 %v1316, 2.5000002
        %v1325 = vmul.f32 %v1317, 2.5000002
        %v1326 = vmul.f32 %v1318, 2.5000002
        %v1327 = vmul.f32 %v1319, 2.5000002
        %v1328 = vmul.f32 %v1320, %v840
        %v1329 = vmul.f32 %v1321, %v841
        %v1330 = vmul.f32 %v1322, %v842
        %v1331 = vmul.f32 %v1323, %v843
        %v1332 = vmul.f32 %v1324, %v844
        %v1333 = vmul.f32 %v1325, %v845
        %v1334 = vmul.f32 %v1326, %v846
        %v1335 = vmul.f32 %v1327, %v847
        %v1336 = vsub.f32 1.8, %v267
        %v1337 = vsub.f32 1.8, %v268
        %v1338 = vsub.f32 1.8, %v269
        %v1339 = vsub.f32 1.8, %v270
        %v1340 = vsub.f32 1.8, %v271
        %v1341 = vsub.f32 1.8, %v272
        %v1342 = vsub.f32 1.8, %v273
        %v1343 = vsub.f32 1.8, %v274
        %v1344 = vmul.f32 %v1336, 2.5000002
        %v1345 = vmul.f32 %v1337, 2.5000002
        %v1346 = vmul.f32 %v1338, 2.5000002
        %v1347 = vmul.f32 %v1339, 2.5000002
        %v1348 = vmul.f32 %v1340, 2.5000002
        %v1349 = vmul.f32 %v1341, 2.5000002
        %v1350 = vmul.f32 %v1342, 2.5000002
        %v1351 = vmul.f32 %v1343, 2.5000002
        %v1352 = vmul.f32 %v1344, %v848
        %v1353 = vmul.f32 %v1345, %v849
        %v1354 = vmul.f32 %v1346, %v850
        %v1355 = vmul.f32 %v1347, %v851
        %v1356 = vmul.f32 %v1348, %v852
        %v1357 = vmul.f32 %v1349, %v853
        %v1358 = vmul.f32 %v1350, %v854
        %v1359 = vmul.f32 %v1351, %v855
        %v1360 = vadd.f32 %v1328, %v1352
        %v1361 = vadd.f32 %v1329, %v1353
        %v1362 = vadd.f32 %v1330, %v1354
        %v1363 = vadd.f32 %v1331, %v1355
        %v1364 = vadd.f32 %v1332, %v1356
        %v1365 = vadd.f32 %v1333, %v1357
        %v1366 = vadd.f32 %v1334, %v1358
        %v1367 = vadd.f32 %v1335, %v1359
        %v1368 = vsub.f32 %v267, 1.4
        %v1369 = vsub.f32 %v268, 1.4
        %v1370 = vsub.f32 %v269, 1.4
        %v1371 = vsub.f32 %v270, 1.4
        %v1372 = vsub.f32 %v271, 1.4
        %v1373 = vsub.f32 %v272, 1.4
        %v1374 = vsub.f32 %v273, 1.4
        %v1375 = vsub.f32 %v274, 1.4
        %v1376 = vmul.f32 %v1368, 2.5000002
        %v1377 = vmul.f32 %v1369, 2.5000002
        %v1378 = vmul.f32 %v1370, 2.5000002
        %v1379 = vmul.f32 %v1371, 2.5000002
        %v1380 = vmul.f32 %v1372, 2.5000002
        %v1381 = vmul.f32 %v1373, 2.5000002
        %v1382 = vmul.f32 %v1374, 2.5000002
        %v1383 = vmul.f32 %v1375, 2.5000002
        %v1384 = vmul.f32 %v1376, %v848
        %v1385 = vmul.f32 %v1377, %v849
        %v1386 = vmul.f32 %v1378, %v850
        %v1387 = vmul.f32 %v1379, %v851
        %v1388 = vmul.f32 %v1380, %v852
        %v1389 = vmul.f32 %v1381, %v853
        %v1390 = vmul.f32 %v1382, %v854
        %v1391 = vmul.f32 %v1383, %v855
        %v1392 = vsub.f32 2.2, %v267
        %v1393 = vsub.f32 2.2, %v268
        %v1394 = vsub.f32 2.2, %v269
        %v1395 = vsub.f32 2.2, %v270
        %v1396 = vsub.f32 2.2, %v271
        %v1397 = vsub.f32 2.2, %v272
        %v1398 = vsub.f32 2.2, %v273
        %v1399 = vsub.f32 2.2, %v274
        %v1400 = vmul.f32 %v1392, 2.4999995
        %v1401 = vmul.f32 %v1393, 2.4999995
        %v1402 = vmul.f32 %v1394, 2.4999995
        %v1403 = vmul.f32 %v1395, 2.4999995
        %v1404 = vmul.f32 %v1396, 2.4999995
        %v1405 = vmul.f32 %v1397, 2.4999995
        %v1406 = vmul.f32 %v1398, 2.4999995
        %v1407 = vmul.f32 %v1399, 2.4999995
        %v1408 = vmul.f32 %v1400, %v856
        %v1409 = vmul.f32 %v1401, %v857
        %v1410 = vmul.f32 %v1402, %v858
        %v1411 = vmul.f32 %v1403, %v859
        %v1412 = vmul.f32 %v1404, %v860
        %v1413 = vmul.f32 %v1405, %v861
        %v1414 = vmul.f32 %v1406, %v862
        %v1415 = vmul.f32 %v1407, %v863
        %v1416 = vadd.f32 %v1384, %v1408
        %v1417 = vadd.f32 %v1385, %v1409
        %v1418 = vadd.f32 %v1386, %v1410
        %v1419 = vadd.f32 %v1387, %v1411
        %v1420 = vadd.f32 %v1388, %v1412
        %v1421 = vadd.f32 %v1389, %v1413
        %v1422 = vadd.f32 %v1390, %v1414
        %v1423 = vadd.f32 %v1391, %v1415
        %v1424 = vmul.f32 %v864, 1.2499999
        %v1425 = vmul.f32 %v865, 1.2499999
        %v1426 = vmul.f32 %v866, 1.2499999
        %v1427 = vmul.f32 %v867, 1.2499999
        %v1428 = vmul.f32 %v868, 1.2499999
        %v1429 = vmul.f32 %v869, 1.2499999
        %v1430 = vmul.f32 %v870, 1.2499999
        %v1431 = vmul.f32 %v871, 1.2499999
        %v1432 = vmul.f32 %v1424, %v912
        %v1433 = vmul.f32 %v1425, %v913
        %v1434 = vmul.f32 %v1426, %v914
        %v1435 = vmul.f32 %v1427, %v915
        %v1436 = vmul.f32 %v1428, %v916
        %v1437 = vmul.f32 %v1429, %v917
        %v1438 = vmul.f32 %v1430, %v918
        %v1439 = vmul.f32 %v1431, %v919
        %v1440 = vmul.f32 %v944, 1.2500001
        %v1441 = vmul.f32 %v945, 1.2500001
        %v1442 = vmul.f32 %v946, 1.2500001
        %v1443 = vmul.f32 %v947, 1.2500001
        %v1444 = vmul.f32 %v948, 1.2500001
        %v1445 = vmul.f32 %v949, 1.2500001
        %v1446 = vmul.f32 %v950, 1.2500001
        %v1447 = vmul.f32 %v951, 1.2500001
        %v1448 = vmul.f32 %v1440, %v968
        %v1449 = vmul.f32 %v1441, %v969
        %v1450 = vmul.f32 %v1442, %v970
        %v1451 = vmul.f32 %v1443, %v971
        %v1452 = vmul.f32 %v1444, %v972
        %v1453 = vmul.f32 %v1445, %v973
        %v1454 = vmul.f32 %v1446, %v974
        %v1455 = vmul.f32 %v1447, %v975
        %v1456 = vadd.f32 %v1432, %v1448
        %v1457 = vadd.f32 %v1433, %v1449
        %v1458 = vadd.f32 %v1434, %v1450
        %v1459 = vadd.f32 %v1435, %v1451
        %v1460 = vadd.f32 %v1436, %v1452
        %v1461 = vadd.f32 %v1437, %v1453
        %v1462 = vadd.f32 %v1438, %v1454
        %v1463 = vadd.f32 %v1439, %v1455
        %v1464 = vmul.f32 %v920, 1.2500001
        %v1465 = vmul.f32 %v921, 1.2500001
        %v1466 = vmul.f32 %v922, 1.2500001
        %v1467 = vmul.f32 %v923, 1.2500001
        %v1468 = vmul.f32 %v924, 1.2500001
        %v1469 = vmul.f32 %v925, 1.2500001
        %v1470 = vmul.f32 %v926, 1.2500001
        %v1471 = vmul.f32 %v927, 1.2500001
        %v1472 = vmul.f32 %v1464, %v968
        %v1473 = vmul.f32 %v1465, %v969
        %v1474 = vmul.f32 %v1466, %v970
        %v1475 = vmul.f32 %v1467, %v971
        %v1476 = vmul.f32 %v1468, %v972
        %v1477 = vmul.f32 %v1469, %v973
        %v1478 = vmul.f32 %v1470, %v974
        %v1479 = vmul.f32 %v1471, %v975
        %v1480 = vmul.f32 %v1000, 1.2500001
        %v1481 = vmul.f32 %v1001, 1.2500001
        %v1482 = vmul.f32 %v1002, 1.2500001
        %v1483 = vmul.f32 %v1003, 1.2500001
        %v1484 = vmul.f32 %v1004, 1.2500001
        %v1485 = vmul.f32 %v1005, 1.2500001
        %v1486 = vmul.f32 %v1006, 1.2500001
        %v1487 = vmul.f32 %v1007, 1.2500001
        %v1488 = vmul.f32 %v1480, %v1024
        %v1489 = vmul.f32 %v1481, %v1025
        %v1490 = vmul.f32 %v1482, %v1026
        %v1491 = vmul.f32 %v1483, %v1027
        %v1492 = vmul.f32 %v1484, %v1028
        %v1493 = vmul.f32 %v1485, %v1029
        %v1494 = vmul.f32 %v1486, %v1030
        %v1495 = vmul.f32 %v1487, %v1031
        %v1496 = vadd.f32 %v1472, %v1488
        %v1497 = vadd.f32 %v1473, %v1489
        %v1498 = vadd.f32 %v1474, %v1490
        %v1499 = vadd.f32 %v1475, %v1491
        %v1500 = vadd.f32 %v1476, %v1492
        %v1501 = vadd.f32 %v1477, %v1493
        %v1502 = vadd.f32 %v1478, %v1494
        %v1503 = vadd.f32 %v1479, %v1495
        %v1504 = vmul.f32 %v976, 1.2500001
        %v1505 = vmul.f32 %v977, 1.2500001
        %v1506 = vmul.f32 %v978, 1.2500001
        %v1507 = vmul.f32 %v979, 1.2500001
        %v1508 = vmul.f32 %v980, 1.2500001
        %v1509 = vmul.f32 %v981, 1.2500001
        %v1510 = vmul.f32 %v982, 1.2500001
        %v1511 = vmul.f32 %v983, 1.2500001
        %v1512 = vmul.f32 %v1504, %v1024
        %v1513 = vmul.f32 %v1505, %v1025
        %v1514 = vmul.f32 %v1506, %v1026
        %v1515 = vmul.f32 %v1507, %v1027
        %v1516 = vmul.f32 %v1508, %v1028
        %v1517 = vmul.f32 %v1509, %v1029
        %v1518 = vmul.f32 %v1510, %v1030
        %v1519 = vmul.f32 %v1511, %v1031
        %v1520 = vmul.f32 %v1056, 1.25
        %v1521 = vmul.f32 %v1057, 1.25
        %v1522 = vmul.f32 %v1058, 1.25
        %v1523 = vmul.f32 %v1059, 1.25
        %v1524 = vmul.f32 %v1060, 1.25
        %v1525 = vmul.f32 %v1061, 1.25
        %v1526 = vmul.f32 %v1062, 1.25
        %v1527 = vmul.f32 %v1063, 1.25
        %v1528 = vmul.f32 %v1520, %v1080
        %v1529 = vmul.f32 %v1521, %v1081
        %v1530 = vmul.f32 %v1522, %v1082
        %v1531 = vmul.f32 %v1523, %v1083
        %v1532 = vmul.f32 %v1524, %v1084
        %v1533 = vmul.f32 %v1525, %v1085
        %v1534 = vmul.f32 %v1526, %v1086
        %v1535 = vmul.f32 %v1527, %v1087
        %v1536 = vadd.f32 %v1512, %v1528
        %v1537 = vadd.f32 %v1513, %v1529
        %v1538 = vadd.f32 %v1514, %v1530
        %v1539 = vadd.f32 %v1515, %v1531
        %v1540 = vadd.f32 %v1516, %v1532
        %v1541 = vadd.f32 %v1517, %v1533
        %v1542 = vadd.f32 %v1518, %v1534
        %v1543 = vadd.f32 %v1519, %v1535
        %v1544 = vmul.f32 %v1032, 1.25
        %v1545 = vmul.f32 %v1033, 1.25
        %v1546 = vmul.f32 %v1034, 1.25
        %v1547 = vmul.f32 %v1035, 1.25
        %v1548 = vmul.f32 %v1036, 1.25
        %v1549 = vmul.f32 %v1037, 1.25
        %v1550 = vmul.f32 %v1038, 1.25
        %v1551 = vmul.f32 %v1039, 1.25
        %v1552 = vmul.f32 %v1544, %v1080
        %v1553 = vmul.f32 %v1545, %v1081
        %v1554 = vmul.f32 %v1546, %v1082
        %v1555 = vmul.f32 %v1547, %v1083
        %v1556 = vmul.f32 %v1548, %v1084
        %v1557 = vmul.f32 %v1549, %v1085
        %v1558 = vmul.f32 %v1550, %v1086
        %v1559 = vmul.f32 %v1551, %v1087
        %v1560 = vmul.f32 %v1112, 1.25
        %v1561 = vmul.f32 %v1113, 1.25
        %v1562 = vmul.f32 %v1114, 1.25
        %v1563 = vmul.f32 %v1115, 1.25
        %v1564 = vmul.f32 %v1116, 1.25
        %v1565 = vmul.f32 %v1117, 1.25
        %v1566 = vmul.f32 %v1118, 1.25
        %v1567 = vmul.f32 %v1119, 1.25
        %v1568 = vmul.f32 %v1560, %v1136
        %v1569 = vmul.f32 %v1561, %v1137
        %v1570 = vmul.f32 %v1562, %v1138
        %v1571 = vmul.f32 %v1563, %v1139
        %v1572 = vmul.f32 %v1564, %v1140
        %v1573 = vmul.f32 %v1565, %v1141
        %v1574 = vmul.f32 %v1566, %v1142
        %v1575 = vmul.f32 %v1567, %v1143
        %v1576 = vadd.f32 %v1552, %v1568
        %v1577 = vadd.f32 %v1553, %v1569
        %v1578 = vadd.f32 %v1554, %v1570
        %v1579 = vadd.f32 %v1555, %v1571
        %v1580 = vadd.f32 %v1556, %v1572
        %v1581 = vadd.f32 %v1557, %v1573
        %v1582 = vadd.f32 %v1558, %v1574
        %v1583 = vadd.f32 %v1559, %v1575
        %v1584 = vmul.f32 %v1088, 1.25
        %v1585 = vmul.f32 %v1089, 1.25
        %v1586 = vmul.f32 %v1090, 1.25
        %v1587 = vmul.f32 %v1091, 1.25
        %v1588 = vmul.f32 %v1092, 1.25
        %v1589 = vmul.f32 %v1093, 1.25
        %v1590 = vmul.f32 %v1094, 1.25
        %v1591 = vmul.f32 %v1095, 1.25
        %v1592 = vmul.f32 %v1584, %v1136
        %v1593 = vmul.f32 %v1585, %v1137
        %v1594 = vmul.f32 %v1586, %v1138
        %v1595 = vmul.f32 %v1587, %v1139
        %v1596 = vmul.f32 %v1588, %v1140
        %v1597 = vmul.f32 %v1589, %v1141
        %v1598 = vmul.f32 %v1590, %v1142
        %v1599 = vmul.f32 %v1591, %v1143
        %v1600 = vmul.f32 %v1168, 1.25
        %v1601 = vmul.f32 %v1169, 1.25
        %v1602 = vmul.f32 %v1170, 1.25
        %v1603 = vmul.f32 %v1171, 1.25
        %v1604 = vmul.f32 %v1172, 1.25
        %v1605 = vmul.f32 %v1173, 1.25
        %v1606 = vmul.f32 %v1174, 1.25
        %v1607 = vmul.f32 %v1175, 1.25
        %v1608 = vmul.f32 %v1600, %v1192
        %v1609 = vmul.f32 %v1601, %v1193
        %v1610 = vmul.f32 %v1602, %v1194
        %v1611 = vmul.f32 %v1603, %v1195
        %v1612 = vmul.f32 %v1604, %v1196
        %v1613 = vmul.f32 %v1605, %v1197
        %v1614 = vmul.f32 %v1606, %v1198
        %v1615 = vmul.f32 %v1607, %v1199
        %v1616 = vadd.f32 %v1592, %v1608
        %v1617 = vadd.f32 %v1593, %v1609
        %v1618 = vadd.f32 %v1594, %v1610
        %v1619 = vadd.f32 %v1595, %v1611
        %v1620 = vadd.f32 %v1596, %v1612
        %v1621 = vadd.f32 %v1597, %v1613
        %v1622 = vadd.f32 %v1598, %v1614
        %v1623 = vadd.f32 %v1599, %v1615
        %v1624 = vmul.f32 %v1144, 1.25
        %v1625 = vmul.f32 %v1145, 1.25
        %v1626 = vmul.f32 %v1146, 1.25
        %v1627 = vmul.f32 %v1147, 1.25
        %v1628 = vmul.f32 %v1148, 1.25
        %v1629 = vmul.f32 %v1149, 1.25
        %v1630 = vmul.f32 %v1150, 1.25
        %v1631 = vmul.f32 %v1151, 1.25
        %v1632 = vmul.f32 %v1624, %v1192
        %v1633 = vmul.f32 %v1625, %v1193
        %v1634 = vmul.f32 %v1626, %v1194
        %v1635 = vmul.f32 %v1627, %v1195
        %v1636 = vmul.f32 %v1628, %v1196
        %v1637 = vmul.f32 %v1629, %v1197
        %v1638 = vmul.f32 %v1630, %v1198
        %v1639 = vmul.f32 %v1631, %v1199
        %v1640 = vmul.f32 %v1224, 1.25
        %v1641 = vmul.f32 %v1225, 1.25
        %v1642 = vmul.f32 %v1226, 1.25
        %v1643 = vmul.f32 %v1227, 1.25
        %v1644 = vmul.f32 %v1228, 1.25
        %v1645 = vmul.f32 %v1229, 1.25
        %v1646 = vmul.f32 %v1230, 1.25
        %v1647 = vmul.f32 %v1231, 1.25
        %v1648 = vmul.f32 %v1640, %v1248
        %v1649 = vmul.f32 %v1641, %v1249
        %v1650 = vmul.f32 %v1642, %v1250
        %v1651 = vmul.f32 %v1643, %v1251
        %v1652 = vmul.f32 %v1644, %v1252
        %v1653 = vmul.f32 %v1645, %v1253
        %v1654 = vmul.f32 %v1646, %v1254
        %v1655 = vmul.f32 %v1647, %v1255
        %v1656 = vadd.f32 %v1632, %v1648
        %v1657 = vadd.f32 %v1633, %v1649
        %v1658 = vadd.f32 %v1634, %v1650
        %v1659 = vadd.f32 %v1635, %v1651
        %v1660 = vadd.f32 %v1636, %v1652
        %v1661 = vadd.f32 %v1637, %v1653
        %v1662 = vadd.f32 %v1638, %v1654
        %v1663 = vadd.f32 %v1639, %v1655
        %v1664 = vmul.f32 %v1200, 1.25
        %v1665 = vmul.f32 %v1201, 1.25
        %v1666 = vmul.f32 %v1202, 1.25
        %v1667 = vmul.f32 %v1203, 1.25
        %v1668 = vmul.f32 %v1204, 1.25
        %v1669 = vmul.f32 %v1205, 1.25
        %v1670 = vmul.f32 %v1206, 1.25
        %v1671 = vmul.f32 %v1207, 1.25
        %v1672 = vmul.f32 %v1664, %v1248
        %v1673 = vmul.f32 %v1665, %v1249
        %v1674 = vmul.f32 %v1666, %v1250
        %v1675 = vmul.f32 %v1667, %v1251
        %v1676 = vmul.f32 %v1668, %v1252
        %v1677 = vmul.f32 %v1669, %v1253
        %v1678 = vmul.f32 %v1670, %v1254
        %v1679 = vmul.f32 %v1671, %v1255
        %v1680 = vmul.f32 %v1280, 1.2500001
        %v1681 = vmul.f32 %v1281, 1.2500001
        %v1682 = vmul.f32 %v1282, 1.2500001
        %v1683 = vmul.f32 %v1283, 1.2500001
        %v1684 = vmul.f32 %v1284, 1.2500001
        %v1685 = vmul.f32 %v1285, 1.2500001
        %v1686 = vmul.f32 %v1286, 1.2500001
        %v1687 = vmul.f32 %v1287, 1.2500001
        %v1688 = vmul.f32 %v1680, %v1304
        %v1689 = vmul.f32 %v1681, %v1305
        %v1690 = vmul.f32 %v1682, %v1306
        %v1691 = vmul.f32 %v1683, %v1307
        %v1692 = vmul.f32 %v1684, %v1308
        %v1693 = vmul.f32 %v1685, %v1309
        %v1694 = vmul.f32 %v1686, %v1310
        %v1695 = vmul.f32 %v1687, %v1311
        %v1696 = vadd.f32 %v1672, %v1688
        %v1697 = vadd.f32 %v1673, %v1689
        %v1698 = vadd.f32 %v1674, %v1690
        %v1699 = vadd.f32 %v1675, %v1691
        %v1700 = vadd.f32 %v1676, %v1692
        %v1701 = vadd.f32 %v1677, %v1693
        %v1702 = vadd.f32 %v1678, %v1694
        %v1703 = vadd.f32 %v1679, %v1695
        %v1704 = vmul.f32 %v1256, 1.2500001
        %v1705 = vmul.f32 %v1257, 1.2500001
        %v1706 = vmul.f32 %v1258, 1.2500001
        %v1707 = vmul.f32 %v1259, 1.2500001
        %v1708 = vmul.f32 %v1260, 1.2500001
        %v1709 = vmul.f32 %v1261, 1.2500001
        %v1710 = vmul.f32 %v1262, 1.2500001
        %v1711 = vmul.f32 %v1263, 1.2500001
        %v1712 = vmul.f32 %v1704, %v1304
        %v1713 = vmul.f32 %v1705, %v1305
        %v1714 = vmul.f32 %v1706, %v1306
        %v1715 = vmul.f32 %v1707, %v1307
        %v1716 = vmul.f32 %v1708, %v1308
        %v1717 = vmul.f32 %v1709, %v1309
        %v1718 = vmul.f32 %v1710, %v1310
        %v1719 = vmul.f32 %v1711, %v1311
        %v1720 = vmul.f32 %v1336, 1.2500001
        %v1721 = vmul.f32 %v1337, 1.2500001
        %v1722 = vmul.f32 %v1338, 1.2500001
        %v1723 = vmul.f32 %v1339, 1.2500001
        %v1724 = vmul.f32 %v1340, 1.2500001
        %v1725 = vmul.f32 %v1341, 1.2500001
        %v1726 = vmul.f32 %v1342, 1.2500001
        %v1727 = vmul.f32 %v1343, 1.2500001
        %v1728 = vmul.f32 %v1720, %v1360
        %v1729 = vmul.f32 %v1721, %v1361
        %v1730 = vmul.f32 %v1722, %v1362
        %v1731 = vmul.f32 %v1723, %v1363
        %v1732 = vmul.f32 %v1724, %v1364
        %v1733 = vmul.f32 %v1725, %v1365
        %v1734 = vmul.f32 %v1726, %v1366
        %v1735 = vmul.f32 %v1727, %v1367
        %v1736 = vadd.f32 %v1712, %v1728
        %v1737 = vadd.f32 %v1713, %v1729
        %v1738 = vadd.f32 %v1714, %v1730
        %v1739 = vadd.f32 %v1715, %v1731
        %v1740 = vadd.f32 %v1716, %v1732
        %v1741 = vadd.f32 %v1717, %v1733
        %v1742 = vadd.f32 %v1718, %v1734
        %v1743 = vadd.f32 %v1719, %v1735
        %v1744 = vmul.f32 %v1312, 1.2500001
        %v1745 = vmul.f32 %v1313, 1.2500001
        %v1746 = vmul.f32 %v1314, 1.2500001
        %v1747 = vmul.f32 %v1315, 1.2500001
        %v1748 = vmul.f32 %v1316, 1.2500001
        %v1749 = vmul.f32 %v1317, 1.2500001
        %v1750 = vmul.f32 %v1318, 1.2500001
        %v1751 = vmul.f32 %v1319, 1.2500001
        %v1752 = vmul.f32 %v1744, %v1360
        %v1753 = vmul.f32 %v1745, %v1361
        %v1754 = vmul.f32 %v1746, %v1362
        %v1755 = vmul.f32 %v1747, %v1363
        %v1756 = vmul.f32 %v1748, %v1364
        %v1757 = vmul.f32 %v1749, %v1365
        %v1758 = vmul.f32 %v1750, %v1366
        %v1759 = vmul.f32 %v1751, %v1367
        %v1760 = vmul.f32 %v1392, 1.2499999
        %v1761 = vmul.f32 %v1393, 1.2499999
        %v1762 = vmul.f32 %v1394, 1.2499999
        %v1763 = vmul.f32 %v1395, 1.2499999
        %v1764 = vmul.f32 %v1396, 1.2499999
        %v1765 = vmul.f32 %v1397, 1.2499999
        %v1766 = vmul.f32 %v1398, 1.2499999
        %v1767 = vmul.f32 %v1399, 1.2499999
        %v1768 = vmul.f32 %v1760, %v1416
        %v1769 = vmul.f32 %v1761, %v1417
        %v1770 = vmul.f32 %v1762, %v1418
        %v1771 = vmul.f32 %v1763, %v1419
        %v1772 = vmul.f32 %v1764, %v1420
        %v1773 = vmul.f32 %v1765, %v1421
        %v1774 = vmul.f32 %v1766, %v1422
        %v1775 = vmul.f32 %v1767, %v1423
        %v1776 = vadd.f32 %v1752, %v1768
        %v1777 = vadd.f32 %v1753, %v1769
        %v1778 = vadd.f32 %v1754, %v1770
        %v1779 = vadd.f32 %v1755, %v1771
        %v1780 = vadd.f32 %v1756, %v1772
        %v1781 = vadd.f32 %v1757, %v1773
        %v1782 = vadd.f32 %v1758, %v1774
        %v1783 = vadd.f32 %v1759, %v1775
        %v1784 = vmul.f32 %v864, 0.8333333
        %v1785 = vmul.f32 %v865, 0.8333333
        %v1786 = vmul.f32 %v866, 0.8333333
        %v1787 = vmul.f32 %v867, 0.8333333
        %v1788 = vmul.f32 %v868, 0.8333333
        %v1789 = vmul.f32 %v869, 0.8333333
        %v1790 = vmul.f32 %v870, 0.8333333
        %v1791 = vmul.f32 %v871, 0.8333333
        %v1792 = vmul.f32 %v1784, %v1456
        %v1793 = vmul.f32 %v1785, %v1457
        %v1794 = vmul.f32 %v1786, %v1458
        %v1795 = vmul.f32 %v1787, %v1459
        %v1796 = vmul.f32 %v1788, %v1460
        %v1797 = vmul.f32 %v1789, %v1461
        %v1798 = vmul.f32 %v1790, %v1462
        %v1799 = vmul.f32 %v1791, %v1463
        %v1800 = vmul.f32 %v1000, 0.8333334
        %v1801 = vmul.f32 %v1001, 0.8333334
        %v1802 = vmul.f32 %v1002, 0.8333334
        %v1803 = vmul.f32 %v1003, 0.8333334
        %v1804 = vmul.f32 %v1004, 0.8333334
        %v1805 = vmul.f32 %v1005, 0.8333334
        %v1806 = vmul.f32 %v1006, 0.8333334
        %v1807 = vmul.f32 %v1007, 0.8333334
        %v1808 = vmul.f32 %v1800, %v1496
        %v1809 = vmul.f32 %v1801, %v1497
        %v1810 = vmul.f32 %v1802, %v1498
        %v1811 = vmul.f32 %v1803, %v1499
        %v1812 = vmul.f32 %v1804, %v1500
        %v1813 = vmul.f32 %v1805, %v1501
        %v1814 = vmul.f32 %v1806, %v1502
        %v1815 = vmul.f32 %v1807, %v1503
        %v1816 = vadd.f32 %v1792, %v1808
        %v1817 = vadd.f32 %v1793, %v1809
        %v1818 = vadd.f32 %v1794, %v1810
        %v1819 = vadd.f32 %v1795, %v1811
        %v1820 = vadd.f32 %v1796, %v1812
        %v1821 = vadd.f32 %v1797, %v1813
        %v1822 = vadd.f32 %v1798, %v1814
        %v1823 = vadd.f32 %v1799, %v1815
        %v1824 = vmul.f32 %v920, 0.8333334
        %v1825 = vmul.f32 %v921, 0.8333334
        %v1826 = vmul.f32 %v922, 0.8333334
        %v1827 = vmul.f32 %v923, 0.8333334
        %v1828 = vmul.f32 %v924, 0.8333334
        %v1829 = vmul.f32 %v925, 0.8333334
        %v1830 = vmul.f32 %v926, 0.8333334
        %v1831 = vmul.f32 %v927, 0.8333334
        %v1832 = vmul.f32 %v1824, %v1496
        %v1833 = vmul.f32 %v1825, %v1497
        %v1834 = vmul.f32 %v1826, %v1498
        %v1835 = vmul.f32 %v1827, %v1499
        %v1836 = vmul.f32 %v1828, %v1500
        %v1837 = vmul.f32 %v1829, %v1501
        %v1838 = vmul.f32 %v1830, %v1502
        %v1839 = vmul.f32 %v1831, %v1503
        %v1840 = vmul.f32 %v1056, 0.8333334
        %v1841 = vmul.f32 %v1057, 0.8333334
        %v1842 = vmul.f32 %v1058, 0.8333334
        %v1843 = vmul.f32 %v1059, 0.8333334
        %v1844 = vmul.f32 %v1060, 0.8333334
        %v1845 = vmul.f32 %v1061, 0.8333334
        %v1846 = vmul.f32 %v1062, 0.8333334
        %v1847 = vmul.f32 %v1063, 0.8333334
        %v1848 = vmul.f32 %v1840, %v1536
        %v1849 = vmul.f32 %v1841, %v1537
        %v1850 = vmul.f32 %v1842, %v1538
        %v1851 = vmul.f32 %v1843, %v1539
        %v1852 = vmul.f32 %v1844, %v1540
        %v1853 = vmul.f32 %v1845, %v1541
        %v1854 = vmul.f32 %v1846, %v1542
        %v1855 = vmul.f32 %v1847, %v1543
        %v1856 = vadd.f32 %v1832, %v1848
        %v1857 = vadd.f32 %v1833, %v1849
        %v1858 = vadd.f32 %v1834, %v1850
        %v1859 = vadd.f32 %v1835, %v1851
        %v1860 = vadd.f32 %v1836, %v1852
        %v1861 = vadd.f32 %v1837, %v1853
        %v1862 = vadd.f32 %v1838, %v1854
        %v1863 = vadd.f32 %v1839, %v1855
        %v1864 = vmul.f32 %v976, 0.8333334
        %v1865 = vmul.f32 %v977, 0.8333334
        %v1866 = vmul.f32 %v978, 0.8333334
        %v1867 = vmul.f32 %v979, 0.8333334
        %v1868 = vmul.f32 %v980, 0.8333334
        %v1869 = vmul.f32 %v981, 0.8333334
        %v1870 = vmul.f32 %v982, 0.8333334
        %v1871 = vmul.f32 %v983, 0.8333334
        %v1872 = vmul.f32 %v1864, %v1536
        %v1873 = vmul.f32 %v1865, %v1537
        %v1874 = vmul.f32 %v1866, %v1538
        %v1875 = vmul.f32 %v1867, %v1539
        %v1876 = vmul.f32 %v1868, %v1540
        %v1877 = vmul.f32 %v1869, %v1541
        %v1878 = vmul.f32 %v1870, %v1542
        %v1879 = vmul.f32 %v1871, %v1543
        %v1880 = vmul.f32 %v1112, 0.8333333
        %v1881 = vmul.f32 %v1113, 0.8333333
        %v1882 = vmul.f32 %v1114, 0.8333333
        %v1883 = vmul.f32 %v1115, 0.8333333
        %v1884 = vmul.f32 %v1116, 0.8333333
        %v1885 = vmul.f32 %v1117, 0.8333333
        %v1886 = vmul.f32 %v1118, 0.8333333
        %v1887 = vmul.f32 %v1119, 0.8333333
        %v1888 = vmul.f32 %v1880, %v1576
        %v1889 = vmul.f32 %v1881, %v1577
        %v1890 = vmul.f32 %v1882, %v1578
        %v1891 = vmul.f32 %v1883, %v1579
        %v1892 = vmul.f32 %v1884, %v1580
        %v1893 = vmul.f32 %v1885, %v1581
        %v1894 = vmul.f32 %v1886, %v1582
        %v1895 = vmul.f32 %v1887, %v1583
        %v1896 = vadd.f32 %v1872, %v1888
        %v1897 = vadd.f32 %v1873, %v1889
        %v1898 = vadd.f32 %v1874, %v1890
        %v1899 = vadd.f32 %v1875, %v1891
        %v1900 = vadd.f32 %v1876, %v1892
        %v1901 = vadd.f32 %v1877, %v1893
        %v1902 = vadd.f32 %v1878, %v1894
        %v1903 = vadd.f32 %v1879, %v1895
        %v1904 = vmul.f32 %v1032, 0.8333333
        %v1905 = vmul.f32 %v1033, 0.8333333
        %v1906 = vmul.f32 %v1034, 0.8333333
        %v1907 = vmul.f32 %v1035, 0.8333333
        %v1908 = vmul.f32 %v1036, 0.8333333
        %v1909 = vmul.f32 %v1037, 0.8333333
        %v1910 = vmul.f32 %v1038, 0.8333333
        %v1911 = vmul.f32 %v1039, 0.8333333
        %v1912 = vmul.f32 %v1904, %v1576
        %v1913 = vmul.f32 %v1905, %v1577
        %v1914 = vmul.f32 %v1906, %v1578
        %v1915 = vmul.f32 %v1907, %v1579
        %v1916 = vmul.f32 %v1908, %v1580
        %v1917 = vmul.f32 %v1909, %v1581
        %v1918 = vmul.f32 %v1910, %v1582
        %v1919 = vmul.f32 %v1911, %v1583
        %v1920 = vmul.f32 %v1168, 0.8333333
        %v1921 = vmul.f32 %v1169, 0.8333333
        %v1922 = vmul.f32 %v1170, 0.8333333
        %v1923 = vmul.f32 %v1171, 0.8333333
        %v1924 = vmul.f32 %v1172, 0.8333333
        %v1925 = vmul.f32 %v1173, 0.8333333
        %v1926 = vmul.f32 %v1174, 0.8333333
        %v1927 = vmul.f32 %v1175, 0.8333333
        %v1928 = vmul.f32 %v1920, %v1616
        %v1929 = vmul.f32 %v1921, %v1617
        %v1930 = vmul.f32 %v1922, %v1618
        %v1931 = vmul.f32 %v1923, %v1619
        %v1932 = vmul.f32 %v1924, %v1620
        %v1933 = vmul.f32 %v1925, %v1621
        %v1934 = vmul.f32 %v1926, %v1622
        %v1935 = vmul.f32 %v1927, %v1623
        %v1936 = vadd.f32 %v1912, %v1928
        %v1937 = vadd.f32 %v1913, %v1929
        %v1938 = vadd.f32 %v1914, %v1930
        %v1939 = vadd.f32 %v1915, %v1931
        %v1940 = vadd.f32 %v1916, %v1932
        %v1941 = vadd.f32 %v1917, %v1933
        %v1942 = vadd.f32 %v1918, %v1934
        %v1943 = vadd.f32 %v1919, %v1935
        %v1944 = vmul.f32 %v1088, 0.8333333
        %v1945 = vmul.f32 %v1089, 0.8333333
        %v1946 = vmul.f32 %v1090, 0.8333333
        %v1947 = vmul.f32 %v1091, 0.8333333
        %v1948 = vmul.f32 %v1092, 0.8333333
        %v1949 = vmul.f32 %v1093, 0.8333333
        %v1950 = vmul.f32 %v1094, 0.8333333
        %v1951 = vmul.f32 %v1095, 0.8333333
        %v1952 = vmul.f32 %v1944, %v1616
        %v1953 = vmul.f32 %v1945, %v1617
        %v1954 = vmul.f32 %v1946, %v1618
        %v1955 = vmul.f32 %v1947, %v1619
        %v1956 = vmul.f32 %v1948, %v1620
        %v1957 = vmul.f32 %v1949, %v1621
        %v1958 = vmul.f32 %v1950, %v1622
        %v1959 = vmul.f32 %v1951, %v1623
        %v1960 = vmul.f32 %v1224, 0.8333333
        %v1961 = vmul.f32 %v1225, 0.8333333
        %v1962 = vmul.f32 %v1226, 0.8333333
        %v1963 = vmul.f32 %v1227, 0.8333333
        %v1964 = vmul.f32 %v1228, 0.8333333
        %v1965 = vmul.f32 %v1229, 0.8333333
        %v1966 = vmul.f32 %v1230, 0.8333333
        %v1967 = vmul.f32 %v1231, 0.8333333
        %v1968 = vmul.f32 %v1960, %v1656
        %v1969 = vmul.f32 %v1961, %v1657
        %v1970 = vmul.f32 %v1962, %v1658
        %v1971 = vmul.f32 %v1963, %v1659
        %v1972 = vmul.f32 %v1964, %v1660
        %v1973 = vmul.f32 %v1965, %v1661
        %v1974 = vmul.f32 %v1966, %v1662
        %v1975 = vmul.f32 %v1967, %v1663
        %v1976 = vadd.f32 %v1952, %v1968
        %v1977 = vadd.f32 %v1953, %v1969
        %v1978 = vadd.f32 %v1954, %v1970
        %v1979 = vadd.f32 %v1955, %v1971
        %v1980 = vadd.f32 %v1956, %v1972
        %v1981 = vadd.f32 %v1957, %v1973
        %v1982 = vadd.f32 %v1958, %v1974
        %v1983 = vadd.f32 %v1959, %v1975
        %v1984 = vmul.f32 %v1144, 0.8333333
        %v1985 = vmul.f32 %v1145, 0.8333333
        %v1986 = vmul.f32 %v1146, 0.8333333
        %v1987 = vmul.f32 %v1147, 0.8333333
        %v1988 = vmul.f32 %v1148, 0.8333333
        %v1989 = vmul.f32 %v1149, 0.8333333
        %v1990 = vmul.f32 %v1150, 0.8333333
        %v1991 = vmul.f32 %v1151, 0.8333333
        %v1992 = vmul.f32 %v1984, %v1656
        %v1993 = vmul.f32 %v1985, %v1657
        %v1994 = vmul.f32 %v1986, %v1658
        %v1995 = vmul.f32 %v1987, %v1659
        %v1996 = vmul.f32 %v1988, %v1660
        %v1997 = vmul.f32 %v1989, %v1661
        %v1998 = vmul.f32 %v1990, %v1662
        %v1999 = vmul.f32 %v1991, %v1663
        %v2000 = vmul.f32 %v1280, 0.8333334
        %v2001 = vmul.f32 %v1281, 0.8333334
        %v2002 = vmul.f32 %v1282, 0.8333334
        %v2003 = vmul.f32 %v1283, 0.8333334
        %v2004 = vmul.f32 %v1284, 0.8333334
        %v2005 = vmul.f32 %v1285, 0.8333334
        %v2006 = vmul.f32 %v1286, 0.8333334
        %v2007 = vmul.f32 %v1287, 0.8333334
        %v2008 = vmul.f32 %v2000, %v1696
        %v2009 = vmul.f32 %v2001, %v1697
        %v2010 = vmul.f32 %v2002, %v1698
        %v2011 = vmul.f32 %v2003, %v1699
        %v2012 = vmul.f32 %v2004, %v1700
        %v2013 = vmul.f32 %v2005, %v1701
        %v2014 = vmul.f32 %v2006, %v1702
        %v2015 = vmul.f32 %v2007, %v1703
        %v2016 = vadd.f32 %v1992, %v2008
        %v2017 = vadd.f32 %v1993, %v2009
        %v2018 = vadd.f32 %v1994, %v2010
        %v2019 = vadd.f32 %v1995, %v2011
        %v2020 = vadd.f32 %v1996, %v2012
        %v2021 = vadd.f32 %v1997, %v2013
        %v2022 = vadd.f32 %v1998, %v2014
        %v2023 = vadd.f32 %v1999, %v2015
        %v2024 = vmul.f32 %v1200, 0.8333334
        %v2025 = vmul.f32 %v1201, 0.8333334
        %v2026 = vmul.f32 %v1202, 0.8333334
        %v2027 = vmul.f32 %v1203, 0.8333334
        %v2028 = vmul.f32 %v1204, 0.8333334
        %v2029 = vmul.f32 %v1205, 0.8333334
        %v2030 = vmul.f32 %v1206, 0.8333334
        %v2031 = vmul.f32 %v1207, 0.8333334
        %v2032 = vmul.f32 %v2024, %v1696
        %v2033 = vmul.f32 %v2025, %v1697
        %v2034 = vmul.f32 %v2026, %v1698
        %v2035 = vmul.f32 %v2027, %v1699
        %v2036 = vmul.f32 %v2028, %v1700
        %v2037 = vmul.f32 %v2029, %v1701
        %v2038 = vmul.f32 %v2030, %v1702
        %v2039 = vmul.f32 %v2031, %v1703
        %v2040 = vmul.f32 %v1336, 0.8333334
        %v2041 = vmul.f32 %v1337, 0.8333334
        %v2042 = vmul.f32 %v1338, 0.8333334
        %v2043 = vmul.f32 %v1339, 0.8333334
        %v2044 = vmul.f32 %v1340, 0.8333334
        %v2045 = vmul.f32 %v1341, 0.8333334
        %v2046 = vmul.f32 %v1342, 0.8333334
        %v2047 = vmul.f32 %v1343, 0.8333334
        %v2048 = vmul.f32 %v2040, %v1736
        %v2049 = vmul.f32 %v2041, %v1737
        %v2050 = vmul.f32 %v2042, %v1738
        %v2051 = vmul.f32 %v2043, %v1739
        %v2052 = vmul.f32 %v2044, %v1740
        %v2053 = vmul.f32 %v2045, %v1741
        %v2054 = vmul.f32 %v2046, %v1742
        %v2055 = vmul.f32 %v2047, %v1743
        %v2056 = vadd.f32 %v2032, %v2048
        %v2057 = vadd.f32 %v2033, %v2049
        %v2058 = vadd.f32 %v2034, %v2050
        %v2059 = vadd.f32 %v2035, %v2051
        %v2060 = vadd.f32 %v2036, %v2052
        %v2061 = vadd.f32 %v2037, %v2053
        %v2062 = vadd.f32 %v2038, %v2054
        %v2063 = vadd.f32 %v2039, %v2055
        %v2064 = vmul.f32 %v1256, 0.8333334
        %v2065 = vmul.f32 %v1257, 0.8333334
        %v2066 = vmul.f32 %v1258, 0.8333334
        %v2067 = vmul.f32 %v1259, 0.8333334
        %v2068 = vmul.f32 %v1260, 0.8333334
        %v2069 = vmul.f32 %v1261, 0.8333334
        %v2070 = vmul.f32 %v1262, 0.8333334
        %v2071 = vmul.f32 %v1263, 0.8333334
        %v2072 = vmul.f32 %v2064, %v1736
        %v2073 = vmul.f32 %v2065, %v1737
        %v2074 = vmul.f32 %v2066, %v1738
        %v2075 = vmul.f32 %v2067, %v1739
        %v2076 = vmul.f32 %v2068, %v1740
        %v2077 = vmul.f32 %v2069, %v1741
        %v2078 = vmul.f32 %v2070, %v1742
        %v2079 = vmul.f32 %v2071, %v1743
        %v2080 = vmul.f32 %v1392, 0.8333333
        %v2081 = vmul.f32 %v1393, 0.8333333
        %v2082 = vmul.f32 %v1394, 0.8333333
        %v2083 = vmul.f32 %v1395, 0.8333333
        %v2084 = vmul.f32 %v1396, 0.8333333
        %v2085 = vmul.f32 %v1397, 0.8333333
        %v2086 = vmul.f32 %v1398, 0.8333333
        %v2087 = vmul.f32 %v1399, 0.8333333
        %v2088 = vmul.f32 %v2080, %v1776
        %v2089 = vmul.f32 %v2081, %v1777
        %v2090 = vmul.f32 %v2082, %v1778
        %v2091 = vmul.f32 %v2083, %v1779
        %v2092 = vmul.f32 %v2084, %v1780
        %v2093 = vmul.f32 %v2085, %v1781
        %v2094 = vmul.f32 %v2086, %v1782
        %v2095 = vmul.f32 %v2087, %v1783
        %v2096 = vadd.f32 %v2072, %v2088
        %v2097 = vadd.f32 %v2073, %v2089
        %v2098 = vadd.f32 %v2074, %v2090
        %v2099 = vadd.f32 %v2075, %v2091
        %v2100 = vadd.f32 %v2076, %v2092
        %v2101 = vadd.f32 %v2077, %v2093
        %v2102 = vadd.f32 %v2078, %v2094
        %v2103 = vadd.f32 %v2079, %v2095
        %v2104 = vld [vmem:[%s2] sm:$0xff]
        %v2105 = vld [vmem:[%s2 + $0x8] sm:$0xff]
        %v2106 = vld [vmem:[%s2 + $0x10] sm:$0xff]
        %v2107 = vld [vmem:[%s2 + $0x18] sm:$0xff]
        %v2108 = vld [vmem:[%s2 + $0x20] sm:$0xf]
        %vm2109 = vcmask 293888
        %v2111 = vsel %vm2109, %v1816, 0
        %v2114 = vsel %vm2109, %v1817, 0
        %v2117 = vsel %vm2109, %v1818, 0
        %v2120 = vsel %vm2109, %v1819, 0
        %v2123 = vsel %vm2109, %v1820, 0
        %v2126 = vsel %vm2109, %v1821, 0
        %v2129 = vsel %vm2109, %v1822, 0
        %v2132 = vsel %vm2109, %v1823, 0
        %vm2134 = vcmask 1043456
        %v2136 = vsel %vm2134, %v2108, 0
        %2138 = vmatprep.subr.mxu0 0.0
        %2139 = vmatpush1.msra.mxu0 %v2104
        %2140 = vmatprep.subr.mxu0 0.0
        %2141 = vmatpush1.msra.mxu0 %v2105
        %2142 = vmatprep.subr.mxu0 0.0
        %2143 = vmatpush1.msra.mxu0 %v2106
        %2144 = vmatprep.subr.mxu0 0.0
        %2145 = vmatpush1.msra.mxu0 %v2107
        %2146 = vmatprep.subr.mxu0 0.0
        %2147 = vmatpush1.msra.mxu0 %v2136
        %2148 = vmatprep.subr.mxu0 0.0
        %2149 = vmatpush1.msra.mxu0 0.0
        %2150 = vmatprep.subr.mxu0 0.0
        %2151 = vmatpush1.msra.mxu0 0.0
        %2152 = vmatprep.subr.mxu0 0.0
        %2153 = vmatpush1.msra.mxu0 0.0
        %2154 = vmatprep.subr.mxu0 0.0
        %2155 = vmatpush1.msra.mxu0 0.0
        %2156 = vmatprep.subr.mxu0 0.0
        %2157 = vmatpush1.msra.mxu0 0.0
        %2158 = vmatprep.subr.mxu0 0.0
        %2159 = vmatpush1.msra.mxu0 0.0
        %2160 = vmatprep.subr.mxu0 0.0
        %2161 = vmatpush1.msra.mxu0 0.0
        %2162 = vmatprep.subr.mxu0 0.0
        %2163 = vmatpush1.msra.mxu0 0.0
        %2164 = vmatprep.subr.mxu0 0.0
        %2165 = vmatpush1.msra.mxu0 0.0
        %2166 = vmatprep.subr.mxu0 0.0
        %2167 = vmatpush1.msra.mxu0 0.0
        %2168 = vmatprep.subr.mxu0 0.0
        %2169 = vmatpush1.msra.mxu0 0.0
        %2170 = vmatprep.subr.mxu0 0.0
        %2171 = vmatpush1.msra.mxu0 0.0
        %2172 = vmatprep.subr.mxu0 0.0
        %2173 = vmatpush1.msra.mxu0 0.0
        %2174 = vmatprep.subr.mxu0 0.0
        %2175 = vmatpush1.msra.mxu0 0.0
        %2176 = vmatprep.subr.mxu0 0.0
        %2177 = vmatpush1.msra.mxu0 0.0
        %2178 = vmatprep.subr.mxu0 0.0
        %2179 = vmatpush1.msra.mxu0 0.0
        %2180 = vmatprep.subr.mxu0 0.0
        %2181 = vmatpush1.msra.mxu0 0.0
        %2182 = vmatprep.subr.mxu0 0.0
        %2183 = vmatpush1.msra.mxu0 0.0
        %2184 = vmatprep.subr.mxu0 0.0
        %2185 = vmatpush1.msra.mxu0 0.0
        %2186 = vmatprep.subr.mxu0 0.0
        %2187 = vmatpush1.msra.mxu0 0.0
        %2188 = vmatprep.subr.mxu0 0.0
        %2189 = vmatpush1.msra.mxu0 0.0
        %2190 = vmatprep.subr.mxu0 0.0
        %2191 = vmatpush1.msra.mxu0 0.0
        %2192 = vmatprep.subr.mxu0 0.0
        %2193 = vmatpush1.msra.mxu0 0.0
        %2194 = vmatprep.subr.mxu0 0.0
        %2195 = vmatpush1.msra.mxu0 0.0
        %2196 = vmatprep.subr.mxu0 0.0
        %2197 = vmatpush1.msra.mxu0 0.0
        %2198 = vmatprep.subr.mxu0 0.0
        %2199 = vmatpush1.msra.mxu0 0.0
        %2200 = vmatprep.subr.mxu0 0.0
        %2201 = vmatpush1.msra.mxu0 0.0
        %2202 = vmatprep.mubr.f32.mxu0 0.0
        %2203 = vmatmul.mubr.f32.gmra.mrb[0].mxu0 %v2111
        %v2204 = vpop.f32.mrb[0].mxu0
        %v2205 = vadd.f32 0.0, %v2204
        %v2206 = vpop.f32.mrb[0].mxu0
        %2207 = vmatprep.mubr.f32.mxu0 0.0
        %2208 = vmatmul.mubr.f32.gmra.mrb[0].mxu0 %v2114
        %v2209 = vpop.f32.mrb[0].mxu0
        %v2210 = vadd.f32 0.0, %v2209
        %v2211 = vpop.f32.mrb[0].mxu0
        %2212 = vmatprep.mubr.f32.mxu0 0.0
        %2213 = vmatmul.mubr.f32.gmra.mrb[0].mxu0 %v2117
        %v2214 = vpop.f32.mrb[0].mxu0
        %v2215 = vadd.f32 0.0, %v2214
        %v2216 = vpop.f32.mrb[0].mxu0
        %2217 = vmatprep.mubr.f32.mxu0 0.0
        %2218 = vmatmul.mubr.f32.gmra.mrb[0].mxu0 %v2120
        %v2219 = vpop.f32.mrb[0].mxu0
        %v2220 = vadd.f32 0.0, %v2219
        %v2221 = vpop.f32.mrb[0].mxu0
        %2222 = vmatprep.mubr.f32.mxu0 0.0
        %2223 = vmatmul.mubr.f32.gmra.mrb[0].mxu0 %v2123
        %v2224 = vpop.f32.mrb[0].mxu0
        %v2225 = vadd.f32 0.0, %v2224
        %v2226 = vpop.f32.mrb[0].mxu0
        %2227 = vmatprep.mubr.f32.mxu0 0.0
        %2228 = vmatmul.mubr.f32.gmra.mrb[0].mxu0 %v2126
        %v2229 = vpop.f32.mrb[0].mxu0
        %v2230 = vadd.f32 0.0, %v2229
        %v2231 = vpop.f32.mrb[0].mxu0
        %2232 = vmatprep.mubr.f32.mxu0 0.0
        %2233 = vmatmul.mubr.f32.gmra.mrb[0].mxu0 %v2129
        %v2234 = vpop.f32.mrb[0].mxu0
        %v2235 = vadd.f32 0.0, %v2234
        %v2236 = vpop.f32.mrb[0].mxu0
        %2237 = vmatprep.mubr.f32.mxu0 0.0
        %2238 = vmatmul.mubr.f32.gmra.mrb[0].mxu0 %v2132
        %v2239 = vpop.f32.mrb[0].mxu0
        %v2240 = vadd.f32 0.0, %v2239
        %v2241 = vpop.f32.mrb[0].mxu0
        %2242 = vdwg.mxu0
        %v2244 = vsel %vm2109, %v475, 0
        %v2247 = vsel %vm2109, %v476, 0
        %v2250 = vsel %vm2109, %v477, 0
        %v2253 = vsel %vm2109, %v478, 0
        %v2256 = vsel %vm2109, %v479, 0
        %v2259 = vsel %vm2109, %v480, 0
        %v2262 = vsel %vm2109, %v481, 0
        %v2265 = vsel %vm2109, %v482, 0
        %v2268 = vsel %vm2134, %v487, 0
        %2270 = vmatprep.subr.mxu0 0.0
        %2271 = vmatpush1.msra.mxu0 %v483
        %2272 = vmatprep.subr.mxu0 0.0
        %2273 = vmatpush1.msra.mxu0 %v484
        %2274 = vmatprep.subr.mxu0 0.0
        %2275 = vmatpush1.msra.mxu0 %v485
        %2276 = vmatprep.subr.mxu0 0.0
        %2277 = vmatpush1.msra.mxu0 %v486
        %2278 = vmatprep.subr.mxu0 0.0
        %2279 = vmatpush1.msra.mxu0 %v2268
        %2280 = vmatprep.subr.mxu0 0.0
        %2281 = vmatpush1.msra.mxu0 0.0
        %2282 = vmatprep.subr.mxu0 0.0
        %2283 = vmatpush1.msra.mxu0 0.0
        %2284 = vmatprep.subr.mxu0 0.0
        %2285 = vmatpush1.msra.mxu0 0.0
        %2286 = vmatprep.subr.mxu0 0.0
        %2287 = vmatpush1.msra.mxu0 0.0
        %2288 = vmatprep.subr.mxu0 0.0
        %2289 = vmatpush1.msra.mxu0 0.0
        %2290 = vmatprep.subr.mxu0 0.0
        %2291 = vmatpush1.msra.mxu0 0.0
        %2292 = vmatprep.subr.mxu0 0.0
        %2293 = vmatpush1.msra.mxu0 0.0
        %2294 = vmatprep.subr.mxu0 0.0
        %2295 = vmatpush1.msra.mxu0 0.0
        %2296 = vmatprep.subr.mxu0 0.0
        %2297 = vmatpush1.msra.mxu0 0.0
        %2298 = vmatprep.subr.mxu0 0.0
        %2299 = vmatpush1.msra.mxu0 0.0
        %2300 = vmatprep.subr.mxu0 0.0
        %2301 = vmatpush1.msra.mxu0 0.0
        %2302 = vmatprep.subr.mxu0 0.0
        %2303 = vmatpush1.msra.mxu0 0.0
        %2304 = vmatprep.subr.mxu0 0.0
        %2305 = vmatpush1.msra.mxu0 0.0
        %2306 = vmatprep.subr.mxu0 0.0
        %2307 = vmatpush1.msra.mxu0 0.0
        %2308 = vmatprep.subr.mxu0 0.0
        %2309 = vmatpush1.msra.mxu0 0.0
        %2310 = vmatprep.subr.mxu0 0.0
        %2311 = vmatpush1.msra.mxu0 0.0
        %2312 = vmatprep.subr.mxu0 0.0
        %2313 = vmatpush1.msra.mxu0 0.0
        %2314 = vmatprep.subr.mxu0 0.0
        %2315 = vmatpush1.msra.mxu0 0.0
        %2316 = vmatprep.subr.mxu0 0.0
        %2317 = vmatpush1.msra.mxu0 0.0
        %2318 = vmatprep.subr.mxu0 0.0
        %2319 = vmatpush1.msra.mxu0 0.0
        %2320 = vmatprep.subr.mxu0 0.0
        %2321 = vmatpush1.msra.mxu0 0.0
        %2322 = vmatprep.subr.mxu0 0.0
        %2323 = vmatpush1.msra.mxu0 0.0
        %2324 = vmatprep.subr.mxu0 0.0
        %2325 = vmatpush1.msra.mxu0 0.0
        %2326 = vmatprep.subr.mxu0 0.0
        %2327 = vmatpush1.msra.mxu0 0.0
        %2328 = vmatprep.subr.mxu0 0.0
        %2329 = vmatpush1.msra.mxu0 0.0
        %2330 = vmatprep.subr.mxu0 0.0
        %2331 = vmatpush1.msra.mxu0 0.0
        %2332 = vmatprep.subr.mxu0 0.0
        %2333 = vmatpush1.msra.mxu0 0.0
        %2334 = vmatprep.mubr.f32.mxu0 0.0
        %2335 = vmatmul.mubr.f32.gmra.mrb[0].mxu0 %v2244
        %v2336 = vpop.f32.mrb[0].mxu0
        %v2337 = vadd.f32 %v2205, %v2336
        %v2338 = vpop.f32.mrb[0].mxu0
        %2339 = vmatprep.mubr.f32.mxu0 0.0
        %2340 = vmatmul.mubr.f32.gmra.mrb[0].mxu0 %v2247
        %v2341 = vpop.f32.mrb[0].mxu0
        %v2342 = vadd.f32 %v2210, %v2341
        %v2343 = vpop.f32.mrb[0].mxu0
        %2344 = vmatprep.mubr.f32.mxu0 0.0
        %2345 = vmatmul.mubr.f32.gmra.mrb[0].mxu0 %v2250
        %v2346 = vpop.f32.mrb[0].mxu0
        %v2347 = vadd.f32 %v2215, %v2346
        %v2348 = vpop.f32.mrb[0].mxu0
        %2349 = vmatprep.mubr.f32.mxu0 0.0
        %2350 = vmatmul.mubr.f32.gmra.mrb[0].mxu0 %v2253
        %v2351 = vpop.f32.mrb[0].mxu0
        %v2352 = vadd.f32 %v2220, %v2351
        %v2353 = vpop.f32.mrb[0].mxu0
        %2354 = vmatprep.mubr.f32.mxu0 0.0
        %2355 = vmatmul.mubr.f32.gmra.mrb[0].mxu0 %v2256
        %v2356 = vpop.f32.mrb[0].mxu0
        %v2357 = vadd.f32 %v2225, %v2356
        %v2358 = vpop.f32.mrb[0].mxu0
        %2359 = vmatprep.mubr.f32.mxu0 0.0
        %2360 = vmatmul.mubr.f32.gmra.mrb[0].mxu0 %v2259
        %v2361 = vpop.f32.mrb[0].mxu0
        %v2362 = vadd.f32 %v2230, %v2361
        %v2363 = vpop.f32.mrb[0].mxu0
        %2364 = vmatprep.mubr.f32.mxu0 0.0
        %2365 = vmatmul.mubr.f32.gmra.mrb[0].mxu0 %v2262
        %v2366 = vpop.f32.mrb[0].mxu0
        %v2367 = vadd.f32 %v2235, %v2366
        %v2368 = vpop.f32.mrb[0].mxu0
        %2369 = vmatprep.mubr.f32.mxu0 0.0
        %2370 = vmatmul.mubr.f32.gmra.mrb[0].mxu0 %v2265
        %v2371 = vpop.f32.mrb[0].mxu0
        %v2372 = vadd.f32 %v2240, %v2371
        %v2373 = vpop.f32.mrb[0].mxu0
        %2374 = vdwg.mxu0
        %s2375 = scalar_lea.vmem %s2, 40
        %v2376 = vld [vmem:[%s2375] sm:$0xff]
        %v2377 = vld [vmem:[%s2375 + $0x8] sm:$0xff]
        %v2378 = vld [vmem:[%s2375 + $0x10] sm:$0xff]
        %v2379 = vld [vmem:[%s2375 + $0x18] sm:$0xff]
        %v2380 = vld [vmem:[%s2375 + $0x20] sm:$0xf]
        %v2382 = vsel %vm2109, %v1856, 0
        %v2385 = vsel %vm2109, %v1857, 0
        %v2388 = vsel %vm2109, %v1858, 0
        %v2391 = vsel %vm2109, %v1859, 0
        %v2394 = vsel %vm2109, %v1860, 0
        %v2397 = vsel %vm2109, %v1861, 0
        %v2400 = vsel %vm2109, %v1862, 0
        %v2403 = vsel %vm2109, %v1863, 0
        %v2406 = vsel %vm2134, %v2380, 0
        %2408 = vmatprep.subr.mxu0 0.0
        %2409 = vmatpush1.msra.mxu0 %v2376
        %2410 = vmatprep.subr.mxu0 0.0
        %2411 = vmatpush1.msra.mxu0 %v2377
        %2412 = vmatprep.subr.mxu0 0.0
        %2413 = vmatpush1.msra.mxu0 %v2378
        %2414 = vmatprep.subr.mxu0 0.0
        %2415 = vmatpush1.msra.mxu0 %v2379
        %2416 = vmatprep.subr.mxu0 0.0
        %2417 = vmatpush1.msra.mxu0 %v2406
        %2418 = vmatprep.subr.mxu0 0.0
        %2419 = vmatpush1.msra.mxu0 0.0
        %2420 = vmatprep.subr.mxu0 0.0
        %2421 = vmatpush1.msra.mxu0 0.0
        %2422 = vmatprep.subr.mxu0 0.0
        %2423 = vmatpush1.msra.mxu0 0.0
        %2424 = vmatprep.subr.mxu0 0.0
        %2425 = vmatpush1.msra.mxu0 0.0
        %2426 = vmatprep.subr.mxu0 0.0
        %2427 = vmatpush1.msra.mxu0 0.0
        %2428 = vmatprep.subr.mxu0 0.0
        %2429 = vmatpush1.msra.mxu0 0.0
        %2430 = vmatprep.subr.mxu0 0.0
        %2431 = vmatpush1.msra.mxu0 0.0
        %2432 = vmatprep.subr.mxu0 0.0
        %2433 = vmatpush1.msra.mxu0 0.0
        %2434 = vmatprep.subr.mxu0 0.0
        %2435 = vmatpush1.msra.mxu0 0.0
        %2436 = vmatprep.subr.mxu0 0.0
        %2437 = vmatpush1.msra.mxu0 0.0
        %2438 = vmatprep.subr.mxu0 0.0
        %2439 = vmatpush1.msra.mxu0 0.0
        %2440 = vmatprep.subr.mxu0 0.0
        %2441 = vmatpush1.msra.mxu0 0.0
        %2442 = vmatprep.subr.mxu0 0.0
        %2443 = vmatpush1.msra.mxu0 0.0
        %2444 = vmatprep.subr.mxu0 0.0
        %2445 = vmatpush1.msra.mxu0 0.0
        %2446 = vmatprep.subr.mxu0 0.0
        %2447 = vmatpush1.msra.mxu0 0.0
        %2448 = vmatprep.subr.mxu0 0.0
        %2449 = vmatpush1.msra.mxu0 0.0
        %2450 = vmatprep.subr.mxu0 0.0
        %2451 = vmatpush1.msra.mxu0 0.0
        %2452 = vmatprep.subr.mxu0 0.0
        %2453 = vmatpush1.msra.mxu0 0.0
        %2454 = vmatprep.subr.mxu0 0.0
        %2455 = vmatpush1.msra.mxu0 0.0
        %2456 = vmatprep.subr.mxu0 0.0
        %2457 = vmatpush1.msra.mxu0 0.0
        %2458 = vmatprep.subr.mxu0 0.0
        %2459 = vmatpush1.msra.mxu0 0.0
        %2460 = vmatprep.subr.mxu0 0.0
        %2461 = vmatpush1.msra.mxu0 0.0
        %2462 = vmatprep.subr.mxu0 0.0
        %2463 = vmatpush1.msra.mxu0 0.0
        %2464 = vmatprep.subr.mxu0 0.0
        %2465 = vmatpush1.msra.mxu0 0.0
        %2466 = vmatprep.subr.mxu0 0.0
        %2467 = vmatpush1.msra.mxu0 0.0
        %2468 = vmatprep.subr.mxu0 0.0
        %2469 = vmatpush1.msra.mxu0 0.0
        %2470 = vmatprep.subr.mxu0 0.0
        %2471 = vmatpush1.msra.mxu0 0.0
        %2472 = vmatprep.mubr.f32.mxu0 0.0
        %2473 = vmatmul.mubr.f32.gmra.mrb[0].mxu0 %v2382
        %v2474 = vpop.f32.mrb[0].mxu0
        %v2475 = vadd.f32 0.0, %v2474
        %v2476 = vpop.f32.mrb[0].mxu0
        %2477 = vmatprep.mubr.f32.mxu0 0.0
        %2478 = vmatmul.mubr.f32.gmra.mrb[0].mxu0 %v2385
        %v2479 = vpop.f32.mrb[0].mxu0
        %v2480 = vadd.f32 0.0, %v2479
        %v2481 = vpop.f32.mrb[0].mxu0
        %2482 = vmatprep.mubr.f32.mxu0 0.0
        %2483 = vmatmul.mubr.f32.gmra.mrb[0].mxu0 %v2388
        %v2484 = vpop.f32.mrb[0].mxu0
        %v2485 = vadd.f32 0.0, %v2484
        %v2486 = vpop.f32.mrb[0].mxu0
        %2487 = vmatprep.mubr.f32.mxu0 0.0
        %2488 = vmatmul.mubr.f32.gmra.mrb[0].mxu0 %v2391
        %v2489 = vpop.f32.mrb[0].mxu0
        %v2490 = vadd.f32 0.0, %v2489
        %v2491 = vpop.f32.mrb[0].mxu0
        %2492 = vmatprep.mubr.f32.mxu0 0.0
        %2493 = vmatmul.mubr.f32.gmra.mrb[0].mxu0 %v2394
        %v2494 = vpop.f32.mrb[0].mxu0
        %v2495 = vadd.f32 0.0, %v2494
        %v2496 = vpop.f32.mrb[0].mxu0
        %2497 = vmatprep.mubr.f32.mxu0 0.0
        %2498 = vmatmul.mubr.f32.gmra.mrb[0].mxu0 %v2397
        %v2499 = vpop.f32.mrb[0].mxu0
        %v2500 = vadd.f32 0.0, %v2499
        %v2501 = vpop.f32.mrb[0].mxu0
        %2502 = vmatprep.mubr.f32.mxu0 0.0
        %2503 = vmatmul.mubr.f32.gmra.mrb[0].mxu0 %v2400
        %v2504 = vpop.f32.mrb[0].mxu0
        %v2505 = vadd.f32 0.0, %v2504
        %v2506 = vpop.f32.mrb[0].mxu0
        %2507 = vmatprep.mubr.f32.mxu0 0.0
        %2508 = vmatmul.mubr.f32.gmra.mrb[0].mxu0 %v2403
        %v2509 = vpop.f32.mrb[0].mxu0
        %v2510 = vadd.f32 0.0, %v2509
        %v2511 = vpop.f32.mrb[0].mxu0
        %2512 = vdwg.mxu0
        %v2513 = vadd.f32 %v2337, %v2475
        %v2514 = vadd.f32 %v2342, %v2480
        %v2515 = vadd.f32 %v2347, %v2485
        %v2516 = vadd.f32 %v2352, %v2490
        %v2517 = vadd.f32 %v2357, %v2495
        %v2518 = vadd.f32 %v2362, %v2500
        %v2519 = vadd.f32 %v2367, %v2505
        %v2520 = vadd.f32 %v2372, %v2510
        %s2521 = scalar_lea.vmem %s2, 80
        %v2522 = vld [vmem:[%s2521] sm:$0xff]
        %v2523 = vld [vmem:[%s2521 + $0x8] sm:$0xff]
        %v2524 = vld [vmem:[%s2521 + $0x10] sm:$0xff]
        %v2525 = vld [vmem:[%s2521 + $0x18] sm:$0xff]
        %v2526 = vld [vmem:[%s2521 + $0x20] sm:$0xf]
        %v2528 = vsel %vm2109, %v1896, 0
        %v2531 = vsel %vm2109, %v1897, 0
        %v2534 = vsel %vm2109, %v1898, 0
        %v2537 = vsel %vm2109, %v1899, 0
        %v2540 = vsel %vm2109, %v1900, 0
        %v2543 = vsel %vm2109, %v1901, 0
        %v2546 = vsel %vm2109, %v1902, 0
        %v2549 = vsel %vm2109, %v1903, 0
        %v2552 = vsel %vm2134, %v2526, 0
        %2554 = vmatprep.subr.mxu0 0.0
        %2555 = vmatpush1.msra.mxu0 %v2522
        %2556 = vmatprep.subr.mxu0 0.0
        %2557 = vmatpush1.msra.mxu0 %v2523
        %2558 = vmatprep.subr.mxu0 0.0
        %2559 = vmatpush1.msra.mxu0 %v2524
        %2560 = vmatprep.subr.mxu0 0.0
        %2561 = vmatpush1.msra.mxu0 %v2525
        %2562 = vmatprep.subr.mxu0 0.0
        %2563 = vmatpush1.msra.mxu0 %v2552
        %2564 = vmatprep.subr.mxu0 0.0
        %2565 = vmatpush1.msra.mxu0 0.0
        %2566 = vmatprep.subr.mxu0 0.0
        %2567 = vmatpush1.msra.mxu0 0.0
        %2568 = vmatprep.subr.mxu0 0.0
        %2569 = vmatpush1.msra.mxu0 0.0
        %2570 = vmatprep.subr.mxu0 0.0
        %2571 = vmatpush1.msra.mxu0 0.0
        %2572 = vmatprep.subr.mxu0 0.0
        %2573 = vmatpush1.msra.mxu0 0.0
        %2574 = vmatprep.subr.mxu0 0.0
        %2575 = vmatpush1.msra.mxu0 0.0
        %2576 = vmatprep.subr.mxu0 0.0
        %2577 = vmatpush1.msra.mxu0 0.0
        %2578 = vmatprep.subr.mxu0 0.0
        %2579 = vmatpush1.msra.mxu0 0.0
        %2580 = vmatprep.subr.mxu0 0.0
        %2581 = vmatpush1.msra.mxu0 0.0
        %2582 = vmatprep.subr.mxu0 0.0
        %2583 = vmatpush1.msra.mxu0 0.0
        %2584 = vmatprep.subr.mxu0 0.0
        %2585 = vmatpush1.msra.mxu0 0.0
        %2586 = vmatprep.subr.mxu0 0.0
        %2587 = vmatpush1.msra.mxu0 0.0
        %2588 = vmatprep.subr.mxu0 0.0
        %2589 = vmatpush1.msra.mxu0 0.0
        %2590 = vmatprep.subr.mxu0 0.0
        %2591 = vmatpush1.msra.mxu0 0.0
        %2592 = vmatprep.subr.mxu0 0.0
        %2593 = vmatpush1.msra.mxu0 0.0
        %2594 = vmatprep.subr.mxu0 0.0
        %2595 = vmatpush1.msra.mxu0 0.0
        %2596 = vmatprep.subr.mxu0 0.0
        %2597 = vmatpush1.msra.mxu0 0.0
        %2598 = vmatprep.subr.mxu0 0.0
        %2599 = vmatpush1.msra.mxu0 0.0
        %2600 = vmatprep.subr.mxu0 0.0
        %2601 = vmatpush1.msra.mxu0 0.0
        %2602 = vmatprep.subr.mxu0 0.0
        %2603 = vmatpush1.msra.mxu0 0.0
        %2604 = vmatprep.subr.mxu0 0.0
        %2605 = vmatpush1.msra.mxu0 0.0
        %2606 = vmatprep.subr.mxu0 0.0
        %2607 = vmatpush1.msra.mxu0 0.0
        %2608 = vmatprep.subr.mxu0 0.0
        %2609 = vmatpush1.msra.mxu0 0.0
        %2610 = vmatprep.subr.mxu0 0.0
        %2611 = vmatpush1.msra.mxu0 0.0
        %2612 = vmatprep.subr.mxu0 0.0
        %2613 = vmatpush1.msra.mxu0 0.0
        %2614 = vmatprep.subr.mxu0 0.0
        %2615 = vmatpush1.msra.mxu0 0.0
        %2616 = vmatprep.subr.mxu0 0.0
        %2617 = vmatpush1.msra.mxu0 0.0
        %2618 = vmatprep.mubr.f32.mxu0 0.0
        %2619 = vmatmul.mubr.f32.gmra.mrb[0].mxu0 %v2528
        %v2620 = vpop.f32.mrb[0].mxu0
        %v2621 = vadd.f32 0.0, %v2620
        %v2622 = vpop.f32.mrb[0].mxu0
        %2623 = vmatprep.mubr.f32.mxu0 0.0
        %2624 = vmatmul.mubr.f32.gmra.mrb[0].mxu0 %v2531
        %v2625 = vpop.f32.mrb[0].mxu0
        %v2626 = vadd.f32 0.0, %v2625
        %v2627 = vpop.f32.mrb[0].mxu0
        %2628 = vmatprep.mubr.f32.mxu0 0.0
        %2629 = vmatmul.mubr.f32.gmra.mrb[0].mxu0 %v2534
        %v2630 = vpop.f32.mrb[0].mxu0
        %v2631 = vadd.f32 0.0, %v2630
        %v2632 = vpop.f32.mrb[0].mxu0
        %2633 = vmatprep.mubr.f32.mxu0 0.0
        %2634 = vmatmul.mubr.f32.gmra.mrb[0].mxu0 %v2537
        %v2635 = vpop.f32.mrb[0].mxu0
        %v2636 = vadd.f32 0.0, %v2635
        %v2637 = vpop.f32.mrb[0].mxu0
        %2638 = vmatprep.mubr.f32.mxu0 0.0
        %2639 = vmatmul.mubr.f32.gmra.mrb[0].mxu0 %v2540
        %v2640 = vpop.f32.mrb[0].mxu0
        %v2641 = vadd.f32 0.0, %v2640
        %v2642 = vpop.f32.mrb[0].mxu0
        %2643 = vmatprep.mubr.f32.mxu0 0.0
        %2644 = vmatmul.mubr.f32.gmra.mrb[0].mxu0 %v2543
        %v2645 = vpop.f32.mrb[0].mxu0
        %v2646 = vadd.f32 0.0, %v2645
        %v2647 = vpop.f32.mrb[0].mxu0
        %2648 = vmatprep.mubr.f32.mxu0 0.0
        %2649 = vmatmul.mubr.f32.gmra.mrb[0].mxu0 %v2546
        %v2650 = vpop.f32.mrb[0].mxu0
        %v2651 = vadd.f32 0.0, %v2650
        %v2652 = vpop.f32.mrb[0].mxu0
        %2653 = vmatprep.mubr.f32.mxu0 0.0
        %2654 = vmatmul.mubr.f32.gmra.mrb[0].mxu0 %v2549
        %v2655 = vpop.f32.mrb[0].mxu0
        %v2656 = vadd.f32 0.0, %v2655
        %v2657 = vpop.f32.mrb[0].mxu0
        %2658 = vdwg.mxu0
        %v2659 = vadd.f32 %v2513, %v2621
        %v2660 = vadd.f32 %v2514, %v2626
        %v2661 = vadd.f32 %v2515, %v2631
        %v2662 = vadd.f32 %v2516, %v2636
        %v2663 = vadd.f32 %v2517, %v2641
        %v2664 = vadd.f32 %v2518, %v2646
        %v2665 = vadd.f32 %v2519, %v2651
        %v2666 = vadd.f32 %v2520, %v2656
        %s2667 = scalar_lea.vmem %s2, 120
        %v2668 = vld [vmem:[%s2667] sm:$0xff]
        %v2669 = vld [vmem:[%s2667 + $0x8] sm:$0xff]
        %v2670 = vld [vmem:[%s2667 + $0x10] sm:$0xff]
        %v2671 = vld [vmem:[%s2667 + $0x18] sm:$0xff]
        %v2672 = vld [vmem:[%s2667 + $0x20] sm:$0xf]
        %v2674 = vsel %vm2109, %v1936, 0
        %v2677 = vsel %vm2109, %v1937, 0
        %v2680 = vsel %vm2109, %v1938, 0
        %v2683 = vsel %vm2109, %v1939, 0
        %v2686 = vsel %vm2109, %v1940, 0
        %v2689 = vsel %vm2109, %v1941, 0
        %v2692 = vsel %vm2109, %v1942, 0
        %v2695 = vsel %vm2109, %v1943, 0
        %v2698 = vsel %vm2134, %v2672, 0
        %2700 = vmatprep.subr.mxu0 0.0
        %2701 = vmatpush1.msra.mxu0 %v2668
        %2702 = vmatprep.subr.mxu0 0.0
        %2703 = vmatpush1.msra.mxu0 %v2669
        %2704 = vmatprep.subr.mxu0 0.0
        %2705 = vmatpush1.msra.mxu0 %v2670
        %2706 = vmatprep.subr.mxu0 0.0
        %2707 = vmatpush1.msra.mxu0 %v2671
        %2708 = vmatprep.subr.mxu0 0.0
        %2709 = vmatpush1.msra.mxu0 %v2698
        %2710 = vmatprep.subr.mxu0 0.0
        %2711 = vmatpush1.msra.mxu0 0.0
        %2712 = vmatprep.subr.mxu0 0.0
        %2713 = vmatpush1.msra.mxu0 0.0
        %2714 = vmatprep.subr.mxu0 0.0
        %2715 = vmatpush1.msra.mxu0 0.0
        %2716 = vmatprep.subr.mxu0 0.0
        %2717 = vmatpush1.msra.mxu0 0.0
        %2718 = vmatprep.subr.mxu0 0.0
        %2719 = vmatpush1.msra.mxu0 0.0
        %2720 = vmatprep.subr.mxu0 0.0
        %2721 = vmatpush1.msra.mxu0 0.0
        %2722 = vmatprep.subr.mxu0 0.0
        %2723 = vmatpush1.msra.mxu0 0.0
        %2724 = vmatprep.subr.mxu0 0.0
        %2725 = vmatpush1.msra.mxu0 0.0
        %2726 = vmatprep.subr.mxu0 0.0
        %2727 = vmatpush1.msra.mxu0 0.0
        %2728 = vmatprep.subr.mxu0 0.0
        %2729 = vmatpush1.msra.mxu0 0.0
        %2730 = vmatprep.subr.mxu0 0.0
        %2731 = vmatpush1.msra.mxu0 0.0
        %2732 = vmatprep.subr.mxu0 0.0
        %2733 = vmatpush1.msra.mxu0 0.0
        %2734 = vmatprep.subr.mxu0 0.0
        %2735 = vmatpush1.msra.mxu0 0.0
        %2736 = vmatprep.subr.mxu0 0.0
        %2737 = vmatpush1.msra.mxu0 0.0
        %2738 = vmatprep.subr.mxu0 0.0
        %2739 = vmatpush1.msra.mxu0 0.0
        %2740 = vmatprep.subr.mxu0 0.0
        %2741 = vmatpush1.msra.mxu0 0.0
        %2742 = vmatprep.subr.mxu0 0.0
        %2743 = vmatpush1.msra.mxu0 0.0
        %2744 = vmatprep.subr.mxu0 0.0
        %2745 = vmatpush1.msra.mxu0 0.0
        %2746 = vmatprep.subr.mxu0 0.0
        %2747 = vmatpush1.msra.mxu0 0.0
        %2748 = vmatprep.subr.mxu0 0.0
        %2749 = vmatpush1.msra.mxu0 0.0
        %2750 = vmatprep.subr.mxu0 0.0
        %2751 = vmatpush1.msra.mxu0 0.0
        %2752 = vmatprep.subr.mxu0 0.0
        %2753 = vmatpush1.msra.mxu0 0.0
        %2754 = vmatprep.subr.mxu0 0.0
        %2755 = vmatpush1.msra.mxu0 0.0
        %2756 = vmatprep.subr.mxu0 0.0
        %2757 = vmatpush1.msra.mxu0 0.0
        %2758 = vmatprep.subr.mxu0 0.0
        %2759 = vmatpush1.msra.mxu0 0.0
        %2760 = vmatprep.subr.mxu0 0.0
        %2761 = vmatpush1.msra.mxu0 0.0
        %2762 = vmatprep.subr.mxu0 0.0
        %2763 = vmatpush1.msra.mxu0 0.0
        %2764 = vmatprep.mubr.f32.mxu0 0.0
        %2765 = vmatmul.mubr.f32.gmra.mrb[0].mxu0 %v2674
        %v2766 = vpop.f32.mrb[0].mxu0
        %v2767 = vadd.f32 0.0, %v2766
        %v2768 = vpop.f32.mrb[0].mxu0
        %2769 = vmatprep.mubr.f32.mxu0 0.0
        %2770 = vmatmul.mubr.f32.gmra.mrb[0].mxu0 %v2677
        %v2771 = vpop.f32.mrb[0].mxu0
        %v2772 = vadd.f32 0.0, %v2771
        %v2773 = vpop.f32.mrb[0].mxu0
        %2774 = vmatprep.mubr.f32.mxu0 0.0
        %2775 = vmatmul.mubr.f32.gmra.mrb[0].mxu0 %v2680
        %v2776 = vpop.f32.mrb[0].mxu0
        %v2777 = vadd.f32 0.0, %v2776
        %v2778 = vpop.f32.mrb[0].mxu0
        %2779 = vmatprep.mubr.f32.mxu0 0.0
        %2780 = vmatmul.mubr.f32.gmra.mrb[0].mxu0 %v2683
        %v2781 = vpop.f32.mrb[0].mxu0
        %v2782 = vadd.f32 0.0, %v2781
        %v2783 = vpop.f32.mrb[0].mxu0
        %2784 = vmatprep.mubr.f32.mxu0 0.0
        %2785 = vmatmul.mubr.f32.gmra.mrb[0].mxu0 %v2686
        %v2786 = vpop.f32.mrb[0].mxu0
        %v2787 = vadd.f32 0.0, %v2786
        %v2788 = vpop.f32.mrb[0].mxu0
        %2789 = vmatprep.mubr.f32.mxu0 0.0
        %2790 = vmatmul.mubr.f32.gmra.mrb[0].mxu0 %v2689
        %v2791 = vpop.f32.mrb[0].mxu0
        %v2792 = vadd.f32 0.0, %v2791
        %v2793 = vpop.f32.mrb[0].mxu0
        %2794 = vmatprep.mubr.f32.mxu0 0.0
        %2795 = vmatmul.mubr.f32.gmra.mrb[0].mxu0 %v2692
        %v2796 = vpop.f32.mrb[0].mxu0
        %v2797 = vadd.f32 0.0, %v2796
        %v2798 = vpop.f32.mrb[0].mxu0
        %2799 = vmatprep.mubr.f32.mxu0 0.0
        %2800 = vmatmul.mubr.f32.gmra.mrb[0].mxu0 %v2695
        %v2801 = vpop.f32.mrb[0].mxu0
        %v2802 = vadd.f32 0.0, %v2801
        %v2803 = vpop.f32.mrb[0].mxu0
        %2804 = vdwg.mxu0
        %v2805 = vadd.f32 %v2659, %v2767
        %v2806 = vadd.f32 %v2660, %v2772
        %v2807 = vadd.f32 %v2661, %v2777
        %v2808 = vadd.f32 %v2662, %v2782
        %v2809 = vadd.f32 %v2663, %v2787
        %v2810 = vadd.f32 %v2664, %v2792
        %v2811 = vadd.f32 %v2665, %v2797
        %v2812 = vadd.f32 %v2666, %v2802
        %s2813 = scalar_lea.vmem %s2, 160
        %v2814 = vld [vmem:[%s2813] sm:$0xff]
        %v2815 = vld [vmem:[%s2813 + $0x8] sm:$0xff]
        %v2816 = vld [vmem:[%s2813 + $0x10] sm:$0xff]
        %v2817 = vld [vmem:[%s2813 + $0x18] sm:$0xff]
        %v2818 = vld [vmem:[%s2813 + $0x20] sm:$0xf]
        %v2820 = vsel %vm2109, %v1976, 0
        %v2823 = vsel %vm2109, %v1977, 0
        %v2826 = vsel %vm2109, %v1978, 0
        %v2829 = vsel %vm2109, %v1979, 0
        %v2832 = vsel %vm2109, %v1980, 0
        %v2835 = vsel %vm2109, %v1981, 0
        %v2838 = vsel %vm2109, %v1982, 0
        %v2841 = vsel %vm2109, %v1983, 0
        %v2844 = vsel %vm2134, %v2818, 0
        %2846 = vmatprep.subr.mxu0 0.0
        %2847 = vmatpush1.msra.mxu0 %v2814
        %2848 = vmatprep.subr.mxu0 0.0
        %2849 = vmatpush1.msra.mxu0 %v2815
        %2850 = vmatprep.subr.mxu0 0.0
        %2851 = vmatpush1.msra.mxu0 %v2816
        %2852 = vmatprep.subr.mxu0 0.0
        %2853 = vmatpush1.msra.mxu0 %v2817
        %2854 = vmatprep.subr.mxu0 0.0
        %2855 = vmatpush1.msra.mxu0 %v2844
        %2856 = vmatprep.subr.mxu0 0.0
        %2857 = vmatpush1.msra.mxu0 0.0
        %2858 = vmatprep.subr.mxu0 0.0
        %2859 = vmatpush1.msra.mxu0 0.0
        %2860 = vmatprep.subr.mxu0 0.0
        %2861 = vmatpush1.msra.mxu0 0.0
        %2862 = vmatprep.subr.mxu0 0.0
        %2863 = vmatpush1.msra.mxu0 0.0
        %2864 = vmatprep.subr.mxu0 0.0
        %2865 = vmatpush1.msra.mxu0 0.0
        %2866 = vmatprep.subr.mxu0 0.0
        %2867 = vmatpush1.msra.mxu0 0.0
        %2868 = vmatprep.subr.mxu0 0.0
        %2869 = vmatpush1.msra.mxu0 0.0
        %2870 = vmatprep.subr.mxu0 0.0
        %2871 = vmatpush1.msra.mxu0 0.0
        %2872 = vmatprep.subr.mxu0 0.0
        %2873 = vmatpush1.msra.mxu0 0.0
        %2874 = vmatprep.subr.mxu0 0.0
        %2875 = vmatpush1.msra.mxu0 0.0
        %2876 = vmatprep.subr.mxu0 0.0
        %2877 = vmatpush1.msra.mxu0 0.0
        %2878 = vmatprep.subr.mxu0 0.0
        %2879 = vmatpush1.msra.mxu0 0.0
        %2880 = vmatprep.subr.mxu0 0.0
        %2881 = vmatpush1.msra.mxu0 0.0
        %2882 = vmatprep.subr.mxu0 0.0
        %2883 = vmatpush1.msra.mxu0 0.0
        %2884 = vmatprep.subr.mxu0 0.0
        %2885 = vmatpush1.msra.mxu0 0.0
        %2886 = vmatprep.subr.mxu0 0.0
        %2887 = vmatpush1.msra.mxu0 0.0
        %2888 = vmatprep.subr.mxu0 0.0
        %2889 = vmatpush1.msra.mxu0 0.0
        %2890 = vmatprep.subr.mxu0 0.0
        %2891 = vmatpush1.msra.mxu0 0.0
        %2892 = vmatprep.subr.mxu0 0.0
        %2893 = vmatpush1.msra.mxu0 0.0
        %2894 = vmatprep.subr.mxu0 0.0
        %2895 = vmatpush1.msra.mxu0 0.0
        %2896 = vmatprep.subr.mxu0 0.0
        %2897 = vmatpush1.msra.mxu0 0.0
        %2898 = vmatprep.subr.mxu0 0.0
        %2899 = vmatpush1.msra.mxu0 0.0
        %2900 = vmatprep.subr.mxu0 0.0
        %2901 = vmatpush1.msra.mxu0 0.0
        %2902 = vmatprep.subr.mxu0 0.0
        %2903 = vmatpush1.msra.mxu0 0.0
        %2904 = vmatprep.subr.mxu0 0.0
        %2905 = vmatpush1.msra.mxu0 0.0
        %2906 = vmatprep.subr.mxu0 0.0
        %2907 = vmatpush1.msra.mxu0 0.0
        %2908 = vmatprep.subr.mxu0 0.0
        %2909 = vmatpush1.msra.mxu0 0.0
        %2910 = vmatprep.mubr.f32.mxu0 0.0
        %2911 = vmatmul.mubr.f32.gmra.mrb[0].mxu0 %v2820
        %v2912 = vpop.f32.mrb[0].mxu0
        %v2913 = vadd.f32 0.0, %v2912
        %v2914 = vpop.f32.mrb[0].mxu0
        %2915 = vmatprep.mubr.f32.mxu0 0.0
        %2916 = vmatmul.mubr.f32.gmra.mrb[0].mxu0 %v2823
        %v2917 = vpop.f32.mrb[0].mxu0
        %v2918 = vadd.f32 0.0, %v2917
        %v2919 = vpop.f32.mrb[0].mxu0
        %2920 = vmatprep.mubr.f32.mxu0 0.0
        %2921 = vmatmul.mubr.f32.gmra.mrb[0].mxu0 %v2826
        %v2922 = vpop.f32.mrb[0].mxu0
        %v2923 = vadd.f32 0.0, %v2922
        %v2924 = vpop.f32.mrb[0].mxu0
        %2925 = vmatprep.mubr.f32.mxu0 0.0
        %2926 = vmatmul.mubr.f32.gmra.mrb[0].mxu0 %v2829
        %v2927 = vpop.f32.mrb[0].mxu0
        %v2928 = vadd.f32 0.0, %v2927
        %v2929 = vpop.f32.mrb[0].mxu0
        %2930 = vmatprep.mubr.f32.mxu0 0.0
        %2931 = vmatmul.mubr.f32.gmra.mrb[0].mxu0 %v2832
        %v2932 = vpop.f32.mrb[0].mxu0
        %v2933 = vadd.f32 0.0, %v2932
        %v2934 = vpop.f32.mrb[0].mxu0
        %2935 = vmatprep.mubr.f32.mxu0 0.0
        %2936 = vmatmul.mubr.f32.gmra.mrb[0].mxu0 %v2835
        %v2937 = vpop.f32.mrb[0].mxu0
        %v2938 = vadd.f32 0.0, %v2937
        %v2939 = vpop.f32.mrb[0].mxu0
        %2940 = vmatprep.mubr.f32.mxu0 0.0
        %2941 = vmatmul.mubr.f32.gmra.mrb[0].mxu0 %v2838
        %v2942 = vpop.f32.mrb[0].mxu0
        %v2943 = vadd.f32 0.0, %v2942
        %v2944 = vpop.f32.mrb[0].mxu0
        %2945 = vmatprep.mubr.f32.mxu0 0.0
        %2946 = vmatmul.mubr.f32.gmra.mrb[0].mxu0 %v2841
        %v2947 = vpop.f32.mrb[0].mxu0
        %v2948 = vadd.f32 0.0, %v2947
        %v2949 = vpop.f32.mrb[0].mxu0
        %2950 = vdwg.mxu0
        %v2951 = vadd.f32 %v2805, %v2913
        %v2952 = vadd.f32 %v2806, %v2918
        %v2953 = vadd.f32 %v2807, %v2923
        %v2954 = vadd.f32 %v2808, %v2928
        %v2955 = vadd.f32 %v2809, %v2933
        %v2956 = vadd.f32 %v2810, %v2938
        %v2957 = vadd.f32 %v2811, %v2943
        %v2958 = vadd.f32 %v2812, %v2948
        %s2959 = scalar_lea.vmem %s2, 200
        %v2960 = vld [vmem:[%s2959] sm:$0xff]
        %v2961 = vld [vmem:[%s2959 + $0x8] sm:$0xff]
        %v2962 = vld [vmem:[%s2959 + $0x10] sm:$0xff]
        %v2963 = vld [vmem:[%s2959 + $0x18] sm:$0xff]
        %v2964 = vld [vmem:[%s2959 + $0x20] sm:$0xf]
        %v2966 = vsel %vm2109, %v2016, 0
        %v2969 = vsel %vm2109, %v2017, 0
        %v2972 = vsel %vm2109, %v2018, 0
        %v2975 = vsel %vm2109, %v2019, 0
        %v2978 = vsel %vm2109, %v2020, 0
        %v2981 = vsel %vm2109, %v2021, 0
        %v2984 = vsel %vm2109, %v2022, 0
        %v2987 = vsel %vm2109, %v2023, 0
        %v2990 = vsel %vm2134, %v2964, 0
        %2992 = vmatprep.subr.mxu0 0.0
        %2993 = vmatpush1.msra.mxu0 %v2960
        %2994 = vmatprep.subr.mxu0 0.0
        %2995 = vmatpush1.msra.mxu0 %v2961
        %2996 = vmatprep.subr.mxu0 0.0
        %2997 = vmatpush1.msra.mxu0 %v2962
        %2998 = vmatprep.subr.mxu0 0.0
        %2999 = vmatpush1.msra.mxu0 %v2963
        %3000 = vmatprep.subr.mxu0 0.0
        %3001 = vmatpush1.msra.mxu0 %v2990
        %3002 = vmatprep.subr.mxu0 0.0
        %3003 = vmatpush1.msra.mxu0 0.0
        %3004 = vmatprep.subr.mxu0 0.0
        %3005 = vmatpush1.msra.mxu0 0.0
        %3006 = vmatprep.subr.mxu0 0.0
        %3007 = vmatpush1.msra.mxu0 0.0
        %3008 = vmatprep.subr.mxu0 0.0
        %3009 = vmatpush1.msra.mxu0 0.0
        %3010 = vmatprep.subr.mxu0 0.0
        %3011 = vmatpush1.msra.mxu0 0.0
        %3012 = vmatprep.subr.mxu0 0.0
        %3013 = vmatpush1.msra.mxu0 0.0
        %3014 = vmatprep.subr.mxu0 0.0
        %3015 = vmatpush1.msra.mxu0 0.0
        %3016 = vmatprep.subr.mxu0 0.0
        %3017 = vmatpush1.msra.mxu0 0.0
        %3018 = vmatprep.subr.mxu0 0.0
        %3019 = vmatpush1.msra.mxu0 0.0
        %3020 = vmatprep.subr.mxu0 0.0
        %3021 = vmatpush1.msra.mxu0 0.0
        %3022 = vmatprep.subr.mxu0 0.0
        %3023 = vmatpush1.msra.mxu0 0.0
        %3024 = vmatprep.subr.mxu0 0.0
        %3025 = vmatpush1.msra.mxu0 0.0
        %3026 = vmatprep.subr.mxu0 0.0
        %3027 = vmatpush1.msra.mxu0 0.0
        %3028 = vmatprep.subr.mxu0 0.0
        %3029 = vmatpush1.msra.mxu0 0.0
        %3030 = vmatprep.subr.mxu0 0.0
        %3031 = vmatpush1.msra.mxu0 0.0
        %3032 = vmatprep.subr.mxu0 0.0
        %3033 = vmatpush1.msra.mxu0 0.0
        %3034 = vmatprep.subr.mxu0 0.0
        %3035 = vmatpush1.msra.mxu0 0.0
        %3036 = vmatprep.subr.mxu0 0.0
        %3037 = vmatpush1.msra.mxu0 0.0
        %3038 = vmatprep.subr.mxu0 0.0
        %3039 = vmatpush1.msra.mxu0 0.0
        %3040 = vmatprep.subr.mxu0 0.0
        %3041 = vmatpush1.msra.mxu0 0.0
        %3042 = vmatprep.subr.mxu0 0.0
        %3043 = vmatpush1.msra.mxu0 0.0
        %3044 = vmatprep.subr.mxu0 0.0
        %3045 = vmatpush1.msra.mxu0 0.0
        %3046 = vmatprep.subr.mxu0 0.0
        %3047 = vmatpush1.msra.mxu0 0.0
        %3048 = vmatprep.subr.mxu0 0.0
        %3049 = vmatpush1.msra.mxu0 0.0
        %3050 = vmatprep.subr.mxu0 0.0
        %3051 = vmatpush1.msra.mxu0 0.0
        %3052 = vmatprep.subr.mxu0 0.0
        %3053 = vmatpush1.msra.mxu0 0.0
        %3054 = vmatprep.subr.mxu0 0.0
        %3055 = vmatpush1.msra.mxu0 0.0
        %3056 = vmatprep.mubr.f32.mxu0 0.0
        %3057 = vmatmul.mubr.f32.gmra.mrb[0].mxu0 %v2966
        %v3058 = vpop.f32.mrb[0].mxu0
        %v3059 = vadd.f32 0.0, %v3058
        %v3060 = vpop.f32.mrb[0].mxu0
        %3061 = vmatprep.mubr.f32.mxu0 0.0
        %3062 = vmatmul.mubr.f32.gmra.mrb[0].mxu0 %v2969
        %v3063 = vpop.f32.mrb[0].mxu0
        %v3064 = vadd.f32 0.0, %v3063
        %v3065 = vpop.f32.mrb[0].mxu0
        %3066 = vmatprep.mubr.f32.mxu0 0.0
        %3067 = vmatmul.mubr.f32.gmra.mrb[0].mxu0 %v2972
        %v3068 = vpop.f32.mrb[0].mxu0
        %v3069 = vadd.f32 0.0, %v3068
        %v3070 = vpop.f32.mrb[0].mxu0
        %3071 = vmatprep.mubr.f32.mxu0 0.0
        %3072 = vmatmul.mubr.f32.gmra.mrb[0].mxu0 %v2975
        %v3073 = vpop.f32.mrb[0].mxu0
        %v3074 = vadd.f32 0.0, %v3073
        %v3075 = vpop.f32.mrb[0].mxu0
        %3076 = vmatprep.mubr.f32.mxu0 0.0
        %3077 = vmatmul.mubr.f32.gmra.mrb[0].mxu0 %v2978
        %v3078 = vpop.f32.mrb[0].mxu0
        %v3079 = vadd.f32 0.0, %v3078
        %v3080 = vpop.f32.mrb[0].mxu0
        %3081 = vmatprep.mubr.f32.mxu0 0.0
        %3082 = vmatmul.mubr.f32.gmra.mrb[0].mxu0 %v2981
        %v3083 = vpop.f32.mrb[0].mxu0
        %v3084 = vadd.f32 0.0, %v3083
        %v3085 = vpop.f32.mrb[0].mxu0
        %3086 = vmatprep.mubr.f32.mxu0 0.0
        %3087 = vmatmul.mubr.f32.gmra.mrb[0].mxu0 %v2984
        %v3088 = vpop.f32.mrb[0].mxu0
        %v3089 = vadd.f32 0.0, %v3088
        %v3090 = vpop.f32.mrb[0].mxu0
        %3091 = vmatprep.mubr.f32.mxu0 0.0
        %3092 = vmatmul.mubr.f32.gmra.mrb[0].mxu0 %v2987
        %v3093 = vpop.f32.mrb[0].mxu0
        %v3094 = vadd.f32 0.0, %v3093
        %v3095 = vpop.f32.mrb[0].mxu0
        %3096 = vdwg.mxu0
        %v3097 = vadd.f32 %v2951, %v3059
        %v3098 = vadd.f32 %v2952, %v3064
        %v3099 = vadd.f32 %v2953, %v3069
        %v3100 = vadd.f32 %v2954, %v3074
        %v3101 = vadd.f32 %v2955, %v3079
        %v3102 = vadd.f32 %v2956, %v3084
        %v3103 = vadd.f32 %v2957, %v3089
        %v3104 = vadd.f32 %v2958, %v3094
        %s3105 = scalar_lea.vmem %s2, 240
        %v3106 = vld [vmem:[%s3105] sm:$0xff]
        %v3107 = vld [vmem:[%s3105 + $0x8] sm:$0xff]
        %v3108 = vld [vmem:[%s3105 + $0x10] sm:$0xff]
        %v3109 = vld [vmem:[%s3105 + $0x18] sm:$0xff]
        %v3110 = vld [vmem:[%s3105 + $0x20] sm:$0xf]
        %v3112 = vsel %vm2109, %v2056, 0
        %v3115 = vsel %vm2109, %v2057, 0
        %v3118 = vsel %vm2109, %v2058, 0
        %v3121 = vsel %vm2109, %v2059, 0
        %v3124 = vsel %vm2109, %v2060, 0
        %v3127 = vsel %vm2109, %v2061, 0
        %v3130 = vsel %vm2109, %v2062, 0
        %v3133 = vsel %vm2109, %v2063, 0
        %v3136 = vsel %vm2134, %v3110, 0
        %3138 = vmatprep.subr.mxu0 0.0
        %3139 = vmatpush1.msra.mxu0 %v3106
        %3140 = vmatprep.subr.mxu0 0.0
        %3141 = vmatpush1.msra.mxu0 %v3107
        %3142 = vmatprep.subr.mxu0 0.0
        %3143 = vmatpush1.msra.mxu0 %v3108
        %3144 = vmatprep.subr.mxu0 0.0
        %3145 = vmatpush1.msra.mxu0 %v3109
        %3146 = vmatprep.subr.mxu0 0.0
        %3147 = vmatpush1.msra.mxu0 %v3136
        %3148 = vmatprep.subr.mxu0 0.0
        %3149 = vmatpush1.msra.mxu0 0.0
        %3150 = vmatprep.subr.mxu0 0.0
        %3151 = vmatpush1.msra.mxu0 0.0
        %3152 = vmatprep.subr.mxu0 0.0
        %3153 = vmatpush1.msra.mxu0 0.0
        %3154 = vmatprep.subr.mxu0 0.0
        %3155 = vmatpush1.msra.mxu0 0.0
        %3156 = vmatprep.subr.mxu0 0.0
        %3157 = vmatpush1.msra.mxu0 0.0
        %3158 = vmatprep.subr.mxu0 0.0
        %3159 = vmatpush1.msra.mxu0 0.0
        %3160 = vmatprep.subr.mxu0 0.0
        %3161 = vmatpush1.msra.mxu0 0.0
        %3162 = vmatprep.subr.mxu0 0.0
        %3163 = vmatpush1.msra.mxu0 0.0
        %3164 = vmatprep.subr.mxu0 0.0
        %3165 = vmatpush1.msra.mxu0 0.0
        %3166 = vmatprep.subr.mxu0 0.0
        %3167 = vmatpush1.msra.mxu0 0.0
        %3168 = vmatprep.subr.mxu0 0.0
        %3169 = vmatpush1.msra.mxu0 0.0
        %3170 = vmatprep.subr.mxu0 0.0
        %3171 = vmatpush1.msra.mxu0 0.0
        %3172 = vmatprep.subr.mxu0 0.0
        %3173 = vmatpush1.msra.mxu0 0.0
        %3174 = vmatprep.subr.mxu0 0.0
        %3175 = vmatpush1.msra.mxu0 0.0
        %3176 = vmatprep.subr.mxu0 0.0
        %3177 = vmatpush1.msra.mxu0 0.0
        %3178 = vmatprep.subr.mxu0 0.0
        %3179 = vmatpush1.msra.mxu0 0.0
        %3180 = vmatprep.subr.mxu0 0.0
        %3181 = vmatpush1.msra.mxu0 0.0
        %3182 = vmatprep.subr.mxu0 0.0
        %3183 = vmatpush1.msra.mxu0 0.0
        %3184 = vmatprep.subr.mxu0 0.0
        %3185 = vmatpush1.msra.mxu0 0.0
        %3186 = vmatprep.subr.mxu0 0.0
        %3187 = vmatpush1.msra.mxu0 0.0
        %3188 = vmatprep.subr.mxu0 0.0
        %3189 = vmatpush1.msra.mxu0 0.0
        %3190 = vmatprep.subr.mxu0 0.0
        %3191 = vmatpush1.msra.mxu0 0.0
        %3192 = vmatprep.subr.mxu0 0.0
        %3193 = vmatpush1.msra.mxu0 0.0
        %3194 = vmatprep.subr.mxu0 0.0
        %3195 = vmatpush1.msra.mxu0 0.0
        %3196 = vmatprep.subr.mxu0 0.0
        %3197 = vmatpush1.msra.mxu0 0.0
        %3198 = vmatprep.subr.mxu0 0.0
        %3199 = vmatpush1.msra.mxu0 0.0
        %3200 = vmatprep.subr.mxu0 0.0
        %3201 = vmatpush1.msra.mxu0 0.0
        %3202 = vmatprep.mubr.f32.mxu0 0.0
        %3203 = vmatmul.mubr.f32.gmra.mrb[0].mxu0 %v3112
        %v3204 = vpop.f32.mrb[0].mxu0
        %v3205 = vadd.f32 0.0, %v3204
        %v3206 = vpop.f32.mrb[0].mxu0
        %3207 = vmatprep.mubr.f32.mxu0 0.0
        %3208 = vmatmul.mubr.f32.gmra.mrb[0].mxu0 %v3115
        %v3209 = vpop.f32.mrb[0].mxu0
        %v3210 = vadd.f32 0.0, %v3209
        %v3211 = vpop.f32.mrb[0].mxu0
        %3212 = vmatprep.mubr.f32.mxu0 0.0
        %3213 = vmatmul.mubr.f32.gmra.mrb[0].mxu0 %v3118
        %v3214 = vpop.f32.mrb[0].mxu0
        %v3215 = vadd.f32 0.0, %v3214
        %v3216 = vpop.f32.mrb[0].mxu0
        %3217 = vmatprep.mubr.f32.mxu0 0.0
        %3218 = vmatmul.mubr.f32.gmra.mrb[0].mxu0 %v3121
        %v3219 = vpop.f32.mrb[0].mxu0
        %v3220 = vadd.f32 0.0, %v3219
        %v3221 = vpop.f32.mrb[0].mxu0
        %3222 = vmatprep.mubr.f32.mxu0 0.0
        %3223 = vmatmul.mubr.f32.gmra.mrb[0].mxu0 %v3124
        %v3224 = vpop.f32.mrb[0].mxu0
        %v3225 = vadd.f32 0.0, %v3224
        %v3226 = vpop.f32.mrb[0].mxu0
        %3227 = vmatprep.mubr.f32.mxu0 0.0
        %3228 = vmatmul.mubr.f32.gmra.mrb[0].mxu0 %v3127
        %v3229 = vpop.f32.mrb[0].mxu0
        %v3230 = vadd.f32 0.0, %v3229
        %v3231 = vpop.f32.mrb[0].mxu0
        %3232 = vmatprep.mubr.f32.mxu0 0.0
        %3233 = vmatmul.mubr.f32.gmra.mrb[0].mxu0 %v3130
        %v3234 = vpop.f32.mrb[0].mxu0
        %v3235 = vadd.f32 0.0, %v3234
        %v3236 = vpop.f32.mrb[0].mxu0
        %3237 = vmatprep.mubr.f32.mxu0 0.0
        %3238 = vmatmul.mubr.f32.gmra.mrb[0].mxu0 %v3133
        %v3239 = vpop.f32.mrb[0].mxu0
        %v3240 = vadd.f32 0.0, %v3239
        %v3241 = vpop.f32.mrb[0].mxu0
        %3242 = vdwg.mxu0
        %v3243 = vadd.f32 %v3097, %v3205
        %v3244 = vadd.f32 %v3098, %v3210
        %v3245 = vadd.f32 %v3099, %v3215
        %v3246 = vadd.f32 %v3100, %v3220
        %v3247 = vadd.f32 %v3101, %v3225
        %v3248 = vadd.f32 %v3102, %v3230
        %v3249 = vadd.f32 %v3103, %v3235
        %v3250 = vadd.f32 %v3104, %v3240
        %s3251 = scalar_lea.vmem %s2, 280
        %v3252 = vld [vmem:[%s3251] sm:$0xff]
        %v3253 = vld [vmem:[%s3251 + $0x8] sm:$0xff]
        %v3254 = vld [vmem:[%s3251 + $0x10] sm:$0xff]
        %v3255 = vld [vmem:[%s3251 + $0x18] sm:$0xff]
        %v3256 = vld [vmem:[%s3251 + $0x20] sm:$0xf]
        %v3258 = vsel %vm2109, %v2096, 0
        %v3261 = vsel %vm2109, %v2097, 0
        %v3264 = vsel %vm2109, %v2098, 0
        %v3267 = vsel %vm2109, %v2099, 0
        %v3270 = vsel %vm2109, %v2100, 0
        %v3273 = vsel %vm2109, %v2101, 0
        %v3276 = vsel %vm2109, %v2102, 0
        %v3279 = vsel %vm2109, %v2103, 0
        %v3282 = vsel %vm2134, %v3256, 0
        %3284 = vmatprep.subr.mxu0 0.0
        %3285 = vmatpush1.msra.mxu0 %v3252
        %3286 = vmatprep.subr.mxu0 0.0
        %3287 = vmatpush1.msra.mxu0 %v3253
        %3288 = vmatprep.subr.mxu0 0.0
        %3289 = vmatpush1.msra.mxu0 %v3254
        %3290 = vmatprep.subr.mxu0 0.0
        %3291 = vmatpush1.msra.mxu0 %v3255
        %3292 = vmatprep.subr.mxu0 0.0
        %3293 = vmatpush1.msra.mxu0 %v3282
        %3294 = vmatprep.subr.mxu0 0.0
        %3295 = vmatpush1.msra.mxu0 0.0
        %3296 = vmatprep.subr.mxu0 0.0
        %3297 = vmatpush1.msra.mxu0 0.0
        %3298 = vmatprep.subr.mxu0 0.0
        %3299 = vmatpush1.msra.mxu0 0.0
        %3300 = vmatprep.subr.mxu0 0.0
        %3301 = vmatpush1.msra.mxu0 0.0
        %3302 = vmatprep.subr.mxu0 0.0
        %3303 = vmatpush1.msra.mxu0 0.0
        %3304 = vmatprep.subr.mxu0 0.0
        %3305 = vmatpush1.msra.mxu0 0.0
        %3306 = vmatprep.subr.mxu0 0.0
        %3307 = vmatpush1.msra.mxu0 0.0
        %3308 = vmatprep.subr.mxu0 0.0
        %3309 = vmatpush1.msra.mxu0 0.0
        %3310 = vmatprep.subr.mxu0 0.0
        %3311 = vmatpush1.msra.mxu0 0.0
        %3312 = vmatprep.subr.mxu0 0.0
        %3313 = vmatpush1.msra.mxu0 0.0
        %3314 = vmatprep.subr.mxu0 0.0
        %3315 = vmatpush1.msra.mxu0 0.0
        %3316 = vmatprep.subr.mxu0 0.0
        %3317 = vmatpush1.msra.mxu0 0.0
        %3318 = vmatprep.subr.mxu0 0.0
        %3319 = vmatpush1.msra.mxu0 0.0
        %3320 = vmatprep.subr.mxu0 0.0
        %3321 = vmatpush1.msra.mxu0 0.0
        %3322 = vmatprep.subr.mxu0 0.0
        %3323 = vmatpush1.msra.mxu0 0.0
        %3324 = vmatprep.subr.mxu0 0.0
        %3325 = vmatpush1.msra.mxu0 0.0
        %3326 = vmatprep.subr.mxu0 0.0
        %3327 = vmatpush1.msra.mxu0 0.0
        %3328 = vmatprep.subr.mxu0 0.0
        %3329 = vmatpush1.msra.mxu0 0.0
        %3330 = vmatprep.subr.mxu0 0.0
        %3331 = vmatpush1.msra.mxu0 0.0
        %3332 = vmatprep.subr.mxu0 0.0
        %3333 = vmatpush1.msra.mxu0 0.0
        %3334 = vmatprep.subr.mxu0 0.0
        %3335 = vmatpush1.msra.mxu0 0.0
        %3336 = vmatprep.subr.mxu0 0.0
        %3337 = vmatpush1.msra.mxu0 0.0
        %3338 = vmatprep.subr.mxu0 0.0
        %3339 = vmatpush1.msra.mxu0 0.0
        %3340 = vmatprep.subr.mxu0 0.0
        %3341 = vmatpush1.msra.mxu0 0.0
        %3342 = vmatprep.subr.mxu0 0.0
        %3343 = vmatpush1.msra.mxu0 0.0
        %3344 = vmatprep.subr.mxu0 0.0
        %3345 = vmatpush1.msra.mxu0 0.0
        %3346 = vmatprep.subr.mxu0 0.0
        %3347 = vmatpush1.msra.mxu0 0.0
        %3348 = vmatprep.mubr.f32.mxu0 0.0
        %3349 = vmatmul.mubr.f32.gmra.mrb[0].mxu0 %v3258
        %v3350 = vpop.f32.mrb[0].mxu0
        %v3351 = vadd.f32 0.0, %v3350
        %v3352 = vpop.f32.mrb[0].mxu0
        %3353 = vmatprep.mubr.f32.mxu0 0.0
        %3354 = vmatmul.mubr.f32.gmra.mrb[0].mxu0 %v3261
        %v3355 = vpop.f32.mrb[0].mxu0
        %v3356 = vadd.f32 0.0, %v3355
        %v3357 = vpop.f32.mrb[0].mxu0
        %3358 = vmatprep.mubr.f32.mxu0 0.0
        %3359 = vmatmul.mubr.f32.gmra.mrb[0].mxu0 %v3264
        %v3360 = vpop.f32.mrb[0].mxu0
        %v3361 = vadd.f32 0.0, %v3360
        %v3362 = vpop.f32.mrb[0].mxu0
        %3363 = vmatprep.mubr.f32.mxu0 0.0
        %3364 = vmatmul.mubr.f32.gmra.mrb[0].mxu0 %v3267
        %v3365 = vpop.f32.mrb[0].mxu0
        %v3366 = vadd.f32 0.0, %v3365
        %v3367 = vpop.f32.mrb[0].mxu0
        %3368 = vmatprep.mubr.f32.mxu0 0.0
        %3369 = vmatmul.mubr.f32.gmra.mrb[0].mxu0 %v3270
        %v3370 = vpop.f32.mrb[0].mxu0
        %v3371 = vadd.f32 0.0, %v3370
        %v3372 = vpop.f32.mrb[0].mxu0
        %3373 = vmatprep.mubr.f32.mxu0 0.0
        %3374 = vmatmul.mubr.f32.gmra.mrb[0].mxu0 %v3273
        %v3375 = vpop.f32.mrb[0].mxu0
        %v3376 = vadd.f32 0.0, %v3375
        %v3377 = vpop.f32.mrb[0].mxu0
        %3378 = vmatprep.mubr.f32.mxu0 0.0
        %3379 = vmatmul.mubr.f32.gmra.mrb[0].mxu0 %v3276
        %v3380 = vpop.f32.mrb[0].mxu0
        %v3381 = vadd.f32 0.0, %v3380
        %v3382 = vpop.f32.mrb[0].mxu0
        %3383 = vmatprep.mubr.f32.mxu0 0.0
        %3384 = vmatmul.mubr.f32.gmra.mrb[0].mxu0 %v3279
        %v3385 = vpop.f32.mrb[0].mxu0
        %v3386 = vadd.f32 0.0, %v3385
        %v3387 = vpop.f32.mrb[0].mxu0
        %3388 = vdwg.mxu0
        %v3389 = vadd.f32 %v3243, %v3351
        %v3390 = vadd.f32 %v3244, %v3356
        %v3391 = vadd.f32 %v3245, %v3361
        %v3392 = vadd.f32 %v3246, %v3366
        %v3393 = vadd.f32 %v3247, %v3371
        %v3394 = vadd.f32 %v3248, %v3376
        %v3395 = vadd.f32 %v3249, %v3381
        %v3396 = vadd.f32 %v3250, %v3386
        %3397 = vst [vmem:[%s242] sm:$0xff] %v3389
        %3398 = vst [vmem:[%s242 + $0x8] sm:$0xff] %v3390
        %3399 = vst [vmem:[%s242 + $0x10] sm:$0xff] %v3391
        %3400 = vst [vmem:[%s242 + $0x18] sm:$0xff] %v3392
        %3401 = vst [vmem:[%s242 + $0x20] sm:$0xff] %v3393
        %3402 = vst [vmem:[%s242 + $0x28] sm:$0xff] %v3394
        %3403 = vst [vmem:[%s242 + $0x30] sm:$0xff] %v3395
        %3404 = vst [vmem:[%s242 + $0x38] sm:$0xff] %v3396
        %v3405 = vadd.f32 %v3389, %v3390
        %v3406 = vadd.f32 %v3405, %v3391
        %v3407 = vadd.f32 %v3406, %v3392
        %v3408 = vadd.f32 %v3407, %v3393
        %v3409 = vadd.f32 %v3408, %v3394
        %v3410 = vadd.f32 %v3409, %v3395
        %v3411 = vadd.f32 %v3410, %v3396
        %v3412 = vrot.slane %v3411, 4
        %v3413 = vadd.f32 %v3411, %v3412
        %v3414 = vrot.slane %v3413, 2
        %v3415 = vadd.f32 %v3413, %v3414
        %v3416 = vrot.slane %v3415, 1
        %v3417 = vadd.f32 %v3415, %v3416
        %v3418 = vmul.f32 %v3389, %v3389
        %v3419 = vmul.f32 %v3390, %v3390
        %v3420 = vmul.f32 %v3391, %v3391
        %v3421 = vmul.f32 %v3392, %v3392
        %v3422 = vmul.f32 %v3393, %v3393
        %v3423 = vmul.f32 %v3394, %v3394
        %v3424 = vmul.f32 %v3395, %v3395
        %v3425 = vmul.f32 %v3396, %v3396
        %v3426 = vadd.f32 %v3418, %v3419
        %v3427 = vadd.f32 %v3426, %v3420
        %v3428 = vadd.f32 %v3427, %v3421
        %v3429 = vadd.f32 %v3428, %v3422
        %v3430 = vadd.f32 %v3429, %v3423
        %v3431 = vadd.f32 %v3430, %v3424
        %v3432 = vadd.f32 %v3431, %v3425
        %v3433 = vrot.slane %v3432, 4
        %v3434 = vadd.f32 %v3432, %v3433
        %v3435 = vrot.slane %v3434, 2
        %v3436 = vadd.f32 %v3434, %v3435
        %v3437 = vrot.slane %v3436, 1
        %v3438 = vadd.f32 %v3436, %v3437
        %p3439 = scmp.eq.s32.totalorder %s29, 0
        // Predicated region
        $region33: #{tpu_custom_call.1} parent=31 // pred_check
          %p3440 = pneg %p3439
        $region34: #{tpu_custom_call.1} parent=31 // pred_check_branch
          %3442 = sbr.rel (%p3440) target = $region36
        $region35: #{tpu_custom_call.1} parent=31 // pred_region
          %3443 = vst [vmem:[%s249] sm:$0x1] %v3417
          %3444 = vst [vmem:[%s249 + $0x1] sm:$0x1] %v3438
        $region36: #{tpu_custom_call.1} parent=31 // pred_fallthru
          _
        %p3445 = scmp.ne.s32.totalorder %s29, 0
        // Predicated region
        $region37: #{tpu_custom_call.1} parent=31 // pred_check
          %p3446 = pneg %p3445
        $region38: #{tpu_custom_call.1} parent=31 // pred_check_branch
          %3448 = sbr.rel (%p3446) target = $region40
        $region39: #{tpu_custom_call.1} parent=31 // pred_region
          %v3449 = vld [vmem:[%s249] sm:$0x1]
          %v3450 = vadd.f32 %v3449, %v3417
          %3451 = vst [vmem:[%s249] sm:$0x1] %v3450
          %v3452 = vld [vmem:[%s249 + $0x1] sm:$0x1]
          %v3453 = vadd.f32 %v3452, %v3438
          %3454 = vst [vmem:[%s249 + $0x1] sm:$0x1] %v3453
        $region40: #{tpu_custom_call.1} parent=31 // pred_fallthru
          _
        %s3455 = sand.u32 %s129, 1
        %s3456 = scalar_lea.sflag [#allocation3], %s3455
        %s3457 = sand.u32 %s129, 1
        %s3458 = smul.addr %s3457, 64
        %s3459 = scalar_lea.vmem [#allocation2], %s3458
        %s3460 = sand.u32 %s157, 1
        %s3461 = scalar_lea.sflag [#allocation5], %s3460
        %s3462 = sand.u32 %s157, 1
        %s3463 = smul.addr %s3462, 2
        %s3464 = scalar_lea.vmem [#allocation4], %s3463
        // Predicated region
        $region41: #{tpu_custom_call.1} parent=31 // pred_check
          %p3465 = pneg %p139
        $region42: #{tpu_custom_call.1} parent=31 // pred_check_branch
          %3467 = sbr.rel (%p3465) target = $region44
        $region43: #{tpu_custom_call.1} parent=31 // pred_region
          %s3468 = smul.u32 %s28, 4
          %s3469 = sadd.s32 %s3468, %s29
          %s3470 = smul.u32 8, %s3469
          %s3472 = ssub.s32 1024, 1024
          %3473 = vsyncadd %s3456, %s3472
          %s3474 = smul.addr %s27, 32
          %s3475 = sadd.s32 %s3470, %s3474
          %s3476 = smul.addr %s3475, 128
          %s3477 = scalar_lea.hbm %s3, %s3476
          %s3478 = sshll.u32 %s3459, 4
          %s3479 = int_to_ptr.vmem [resolvable:$true] %s3478
          %3484 = dma.vmem_to_hbm [thread:$0]  %s3479, 1024, %s3477, %s3456, 128, 128, 8
        $region44: #{tpu_custom_call.1} parent=31 // pred_fallthru
          _
        // Predicated region
        $region45: #{tpu_custom_call.1} parent=31 // pred_check
          %p3485 = pneg %p167
        $region46: #{tpu_custom_call.1} parent=31 // pred_check_branch
          %3487 = sbr.rel (%p3485) target = $region48
        $region47: #{tpu_custom_call.1} parent=31 // pred_region
          %s3489 = ssub.s32 32, 32
          %3490 = vsyncadd %s3461, %s3489
          %s3491 = sadd.s32 %s28, %s27
          %s3492 = smul.addr %s3491, 32
          %s3493 = scalar_lea.hbm %s4, %s3492
          %s3495 = sshll.u32 %s3464, 4
          %s3496 = int_to_ptr.vmem [resolvable:$true] %s3495
          %3498 = dma.vmem_to_hbm [thread:$0]  %s3496, 32, %s3493, %s3461
        $region48: #{tpu_custom_call.1} parent=31 // pred_fallthru
          _
      $region32: #{tpu_custom_call.1} parent=5 // pred_fallthru
        _
      %p3499 = scmp.le.s32.totalorder 2, %s17
      // Predicated region
      $region49: #{tpu_custom_call.1} parent=5 // pred_check
        %p3500 = pneg %p3499
      $region50: #{tpu_custom_call.1} parent=5 // pred_check_branch
        %3502 = sbr.rel (%p3500) target = $region52
      $region51: #{tpu_custom_call.1} parent=5 // pred_region
        %s3503 = ssub.s32 %s17, 2
        // Predicated region
        $region53: #{tpu_custom_call.1} parent=51 // pred_check
          %p3504 = pneg %p145
        $region54: #{tpu_custom_call.1} parent=51 // pred_check_branch
          %3506 = sbr.rel (%p3504) target = $region56
        $region55: #{tpu_custom_call.1} parent=51 // pred_region
          %s3507 = sand.u32 %s130, 1
          %s3508 = scalar_lea.sflag [#allocation3], %s3507
          %s3509 = sand.u32 %s130, 1
          %s3510 = smul.addr %s3509, 64
          %s3511 = scalar_lea.vmem [#allocation2], %s3510
          %3512 = dma.done %s3508, 1024
        $region56: #{tpu_custom_call.1} parent=51 // pred_fallthru
          _
        // Predicated region
        $region57: #{tpu_custom_call.1} parent=51 // pred_check
          %p3513 = pneg %p173
        $region58: #{tpu_custom_call.1} parent=51 // pred_check_branch
          %3515 = sbr.rel (%p3513) target = $region60
        $region59: #{tpu_custom_call.1} parent=51 // pred_region
          %s3516 = sand.u32 %s158, 1
          %s3517 = scalar_lea.sflag [#allocation5], %s3516
          %s3518 = sand.u32 %s158, 1
          %s3519 = smul.addr %s3518, 2
          %s3520 = scalar_lea.vmem [#allocation4], %s3519
          %3521 = dma.done %s3517, 32
        $region60: #{tpu_custom_call.1} parent=51 // pred_fallthru
          _
      $region52: #{tpu_custom_call.1} parent=5 // pred_fallthru
        _
    $region6: #{tpu_custom_call.1} parent=1 // loop_footer
      %s21 = sadd.s32 1, %s17
    $region7: #{tpu_custom_call.1} parent=1 // loop_footer_branch
      %16 = sbr.rel target = $region3
    $region8: #{tpu_custom_call.1} parent=1 // loop_exit
      _
    %3522 = vsyncpa [#allocation3], 1
    %s3523 = scalar_lea.sflag [#allocation3], 1
    %3524 = vsyncpa %s3523, 1
    %3525 = vsyncpa [#allocation5], 1
    %s3526 = scalar_lea.sflag [#allocation5], 1
    %3527 = vsyncpa %s3526, 1

</llo_original>
